<compile_context>
chip_gen: v5e
topology: v5e:2x2
jax: 0.10.0
libtpu: 0.0.40
codegen_flags: <defaults>
</compile_context>

<pallas_src>
import functools

import numpy as np

import jax
import jax.numpy as jnp
from jax.experimental import pallas as pl
from jax.experimental.pallas import tpu as pltpu


def _round_up(x, m):
    return ((x + m - 1) // m) * m


def _compiler_params(est_vmem_bytes):
    # Explicit scoped-VMEM budget: raise above v5e's 16 MiB default when
    # needed, stay well under v7x's 64 MiB physical VMEM.
    limit = int(min(40 * 2**20, max(16 * 2**20, est_vmem_bytes)))
    return pltpu.CompilerParams(
        dimension_semantics=("parallel",),
        vmem_limit_bytes=limit,
    )


# ----------------------------------------------------------------------------
# Pallas kernel 1: tiled matmul (im2col conv) + bias + optional LeakyReLU
# ----------------------------------------------------------------------------
def _matmul_bias_act_kernel(x_ref, w_ref, b_ref, o_ref, *, negative_slope):
    acc = jnp.dot(x_ref[...], w_ref[...], preferred_element_type=jnp.float32)
    acc = acc + b_ref[...]                       # (TM, Np) + (1, Np), f32
    if negative_slope is not None:
        acc = jnp.where(acc >= 0, acc, negative_slope * acc)
    o_ref[...] = acc.astype(o_ref.dtype)


def matmul_bias_act(x, w, b, negative_slope, out_dtype):
    # x: (M, Kd) bf16 ; w: (Kd, Np) bf16 ; b: (1, Np) f32.  Kd, Np are already
    # padded by the caller so that blocks satisfy the (8, 128) constraints.
    M, Kd = x.shape
    Np = w.shape[1]

    # Tile M; weight/bias blocks stay resident (constant index_map).
    TM = min(256, _round_up(M, 8))
    Mp = _round_up(M, TM)
    if Mp != M:
        x = jnp.pad(x, ((0, Mp - M), (0, 0)))
    grid = (Mp // TM,)

    out_isz = np.dtype(out_dtype).itemsize
    est = (w.size * w.dtype.itemsize            # resident weight block
           + b.size * 4                         # resident bias
           + 3 * TM * Kd * x.dtype.itemsize     # double/triple-buffered X tile
           + 3 * TM * Np * out_isz              # buffered output tile
           + (2 << 20))                         # slack

    kernel = functools.partial(_matmul_bias_act_kernel,
                               negative_slope=negative_slope)
    out = pl.pallas_call(
        kernel,
        out_shape=jax.ShapeDtypeStruct((Mp, Np), out_dtype),
        grid=grid,
        in_specs=[
            pl.BlockSpec((TM, Kd), lambda i: (i, 0)),   # X tile, pipelined
            pl.BlockSpec((Kd, Np), lambda i: (0, 0)),   # W resident
            pl.BlockSpec((1, Np), lambda i: (0, 0)),    # bias resident
        ],
        out_specs=pl.BlockSpec((TM, Np), lambda i: (i, 0)),
        compiler_params=_compiler_params(est),
    )(x, w, b)
    return out[:M]


# ----------------------------------------------------------------------------
# Pallas kernel 2: InstanceNorm2d (affine=False, eps=1e-5) + LeakyReLU(0.2)
#   One-pass statistics (sum, sum of squares); one sample per grid step.
# ----------------------------------------------------------------------------
def _instnorm_lrelu_kernel(x_ref, o_ref, *, eps, negative_slope):
    x = x_ref[...].astype(jnp.float32)           # (1, H*W, C)
    inv_hw = 1.0 / x.shape[1]
    s1 = jnp.sum(x, axis=1, keepdims=True)
    s2 = jnp.sum(x * x, axis=1, keepdims=True)
    mean = s1 * inv_hw
    var = jnp.maximum(s2 * inv_hw - mean * mean, 0.0)   # biased variance
    y = (x - mean) * jax.lax.rsqrt(var + eps)
    o_ref[...] = jnp.where(y >= 0, y, negative_slope * y).astype(o_ref.dtype)


def instnorm_lrelu(x_nhwc, eps=1e-5, negative_slope=0.2):
    N, H, W, C = x_nhwc.shape
    HW = H * W
    x2 = x_nhwc.reshape(N, HW, C)
    blk_bytes = HW * C * x2.dtype.itemsize
    est = 4 * blk_bytes + (2 << 20)              # in + out, double-buffered
    kernel = functools.partial(_instnorm_lrelu_kernel, eps=eps,
                               negative_slope=negative_slope)
    out = pl.pallas_call(
        kernel,
        out_shape=jax.ShapeDtypeStruct((N, HW, C), x2.dtype),
        grid=(N,),
        in_specs=[pl.BlockSpec((1, HW, C), lambda n: (n, 0, 0))],
        out_specs=pl.BlockSpec((1, HW, C), lambda n: (n, 0, 0)),
        compiler_params=_compiler_params(est),
    )(x2)
    return out.reshape(N, H, W, C)


# ----------------------------------------------------------------------------
# Conv layer = reflect pad + bf16 im2col (glue) + tiled Pallas matmul kernel
# ----------------------------------------------------------------------------
def conv2d_reflect(x_nhwc, w, b, stride, negative_slope,
                   out_dtype=jnp.bfloat16):
    # w: (Cout, Cin, KH, KW) in PyTorch layout; b: (Cout,)
    K = w.shape[2]
    Cout = w.shape[0]
    xp = jnp.pad(x_nhwc, ((0, 0), (1, 1), (1, 1), (0, 0)),
                 mode='reflect').astype(jnp.bfloat16)
    N, Hp, Wp, Cin = xp.shape
    Hout = (Hp - K) // stride + 1
    Wout = (Wp - K) // stride + 1

    cols = []
    for kh in range(K):
        for kw in range(K):
            cols.append(xp[:,
                           kh:kh + stride * Hout:stride,
                           kw:kw + stride * Wout:stride, :])
    patches = jnp.stack(cols, axis=3)            # (N, Hout, Wout, K*K, Cin)
    Kd = K * K * Cin
    Xm = patches.reshape(N * Hout * Wout, Kd)
    # (Cout, Cin, KH, KW) -> (KH, KW, Cin, Cout) -> (KH*KW*Cin, Cout)
    Wm = jnp.transpose(w, (2, 3, 1, 0)).reshape(Kd, Cout).astype(jnp.bfloat16)

    # Pad contraction dim to a multiple of 128 (MXU depth; layer-0 Kd = 48).
    Kdp = _round_up(Kd, 128)
    # Lane-dense output for the tiny final conv (Cout = 1).
    Np = 128 if Cout < 8 else Cout
    if Kdp != Kd:
        Xm = jnp.pad(Xm, ((0, 0), (0, Kdp - Kd)))
    Wm = jnp.pad(Wm, ((0, Kdp - Kd), (0, Np - Cout)))
    bm = jnp.pad(b.astype(jnp.float32), (0, Np - Cout)).reshape(1, Np)

    out = matmul_bias_act(Xm, Wm, bm, negative_slope, out_dtype)
    return out[:, :Cout].reshape(N, Hout, Wout, Cout)


# ----------------------------------------------------------------------------
# Parameter construction (deterministic, matching nn.Module __init__ shapes)
# ----------------------------------------------------------------------------
def init_params(key, in_channels=3, n_filter=64):
    ks = 4
    layers = 3
    specs = [(in_channels, n_filter, 2)]        # conv0 (stride 2)
    ch = n_filter
    for i in range(1, layers):
        mult = 2 ** i
        specs.append((ch, ch * mult, 2))        # conv + IN + LeakyReLU
        ch = ch * mult
    specs.append((ch, ch * 2, 1))               # conv (stride 1) + IN + LeakyReLU
    specs.append((ch * 2, 1, 1))                # final conv -> 1 channel
    params = []
    for cin, cout, stride in specs:
        key, k1, k2 = jax.random.split(key, 3)
        w = jax.random.normal(k1, (cout, cin, ks, ks), jnp.float32) * 0.02
        b = jax.random.normal(k2, (cout,), jnp.float32) * 0.02
        params.append((w, b, stride))
    return params


def discriminator_forward(x_nchw, params):
    x = jnp.transpose(x_nchw, (0, 2, 3, 1))     # NCHW -> NHWC
    n_layers = len(params)
    for idx, (w, b, stride) in enumerate(params):
        if idx == 0:
            # conv + LeakyReLU (fused in matmul kernel), no norm
            x = conv2d_reflect(x, w, b, stride, negative_slope=0.2,
                               out_dtype=jnp.bfloat16)
        elif idx == n_layers - 1:
            # final conv, no norm, no activation, f32 output
            x = conv2d_reflect(x, w, b, stride, negative_slope=None,
                               out_dtype=jnp.float32)
        else:
            # conv -> InstanceNorm -> LeakyReLU
            x = conv2d_reflect(x, w, b, stride, negative_slope=None,
                               out_dtype=jnp.bfloat16)
            x = instnorm_lrelu(x)
    return jnp.transpose(x, (0, 3, 1, 2))       # NHWC -> NCHW


if __name__ == "__main__":
    key = jax.random.PRNGKey(0)
    kx, kp = jax.random.split(key)

    # Small shapes consistent with the module (in_channels=3, reduced n_filter).
    batch, in_channels, n_filter, spatial = 2, 3, 8, 32
    x = jax.random.normal(kx, (batch, in_channels, spatial, spatial),
                          jnp.float32)
    params = init_params(kp, in_channels=in_channels, n_filter=n_filter)

    fwd = jax.jit(lambda inp: discriminator_forward(inp, params))
    out = jax.block_until_ready(fwd(x))

    # 32 -(s2)-> 16 -(s2)-> 8 -(s2)-> 4 -(s1,k4,p1)-> 3 -(s1,k4,p1)-> 2
    assert out.shape == (batch, 1, 2, 2), out.shape
    assert out.dtype == jnp.float32
    print("KERNEL_OK")
</pallas_src>

<mosaic_0001>
module attributes {stable_mosaic.version = 11 : i64} {
  func.func @_matmul_bias_act_kernel(%arg0: i32, %arg1: memref<256x128xbf16, #tpu.memory_space<vmem>>, %arg2: memref<128x8xbf16, #tpu.memory_space<vmem>>, %arg3: memref<1x8xf32, #tpu.memory_space<vmem>>, %arg4: memref<256x8xbf16, #tpu.memory_space<vmem>>) attributes {dimension_semantics = [#tpu.dimension_semantics<parallel>], iteration_bounds = array<i64: 2>, scalar_prefetch = 0 : i64, scratch_operands = 0 : i64, tpu.core_type = #tpu.core_type<tc>, window_params = [{transform_indices = @transform_0, window_bounds = array<i64: 256, 128>}, {pipeline_mode = #tpu.pipeline_mode<synchronous>, transform_indices = @transform_1, window_bounds = array<i64: 128, 8>}, {pipeline_mode = #tpu.pipeline_mode<synchronous>, transform_indices = @transform_2, window_bounds = array<i64: 1, 8>}, {transform_indices = @transform_3, window_bounds = array<i64: 256, 8>}]} {
    %c0 = arith.constant 0 : index
    %c0_0 = arith.constant 0 : index
    %0 = vector.load %arg1[%c0, %c0_0] : memref<256x128xbf16, #tpu.memory_space<vmem>>, vector<256x128xbf16>
    %c0_1 = arith.constant 0 : index
    %c0_2 = arith.constant 0 : index
    %1 = vector.load %arg2[%c0_1, %c0_2] : memref<128x8xbf16, #tpu.memory_space<vmem>>, vector<128x8xbf16>
    %cst = arith.constant dense<0.000000e+00> : vector<256x8xf32>
    %2 = tpu.matmul %0, %1, %cst {dimension_numbers = #tpu.dot_dimension_numbers<[1], [0], [0], [1], [0, 0, 1, 1], [], []>} : vector<256x128xbf16>, vector<128x8xbf16>, vector<256x8xf32> -> vector<256x8xf32>
    %c0_3 = arith.constant 0 : index
    %c0_4 = arith.constant 0 : index
    %3 = vector.load %arg3[%c0_3, %c0_4] : memref<1x8xf32, #tpu.memory_space<vmem>>, vector<1x8xf32>
    %4 = vector.broadcast %3 : vector<1x8xf32> to vector<256x8xf32>
    %5 = arith.addf %2, %4 : vector<256x8xf32>
    %cst_5 = arith.constant 0.000000e+00 : f32
    %6 = vector.broadcast %cst_5 : f32 to vector<256x8xf32>
    %7 = arith.cmpf oge, %5, %6 : vector<256x8xf32>
    %cst_6 = arith.constant 2.000000e-01 : f32
    %8 = vector.broadcast %cst_6 : f32 to vector<256x8xf32>
    %9 = arith.mulf %8, %5 : vector<256x8xf32>
    %10 = arith.select %7, %5, %9 : vector<256x8xi1>, vector<256x8xf32>
    %11 = arith.truncf %10 : vector<256x8xf32> to vector<256x8xbf16>
    %c0_7 = arith.constant 0 : index
    %c0_8 = arith.constant 0 : index
    %12 = vector.load %arg4[%c0_7, %c0_8] : memref<256x8xbf16, #tpu.memory_space<vmem>>, vector<256x8xbf16>
    tpu.vector_store %arg4[%c0_7, %c0_8], %11 {strides = array<i32>} : memref<256x8xbf16, #tpu.memory_space<vmem>>, vector<256x8xbf16>,
    return
  }
  func.func @transform_0(%arg0: i32) -> (i32, i32) {
    %c0_i32 = arith.constant 0 : i32
    %c0_i32_0 = arith.constant 0 : i32
    return %arg0, %c0_i32 : i32, i32
  }
  func.func @transform_1(%arg0: i32) -> (i32, i32) {
    %c0_i32 = arith.constant 0 : i32
    %c0_i32_0 = arith.constant 0 : i32
    %c0_i32_1 = arith.constant 0 : i32
    return %c0_i32, %c0_i32_0 : i32, i32
  }
  func.func @transform_2(%arg0: i32) -> (i32, i32) {
    %c0_i32 = arith.constant 0 : i32
    %c0_i32_0 = arith.constant 0 : i32
    %c0_i32_1 = arith.constant 0 : i32
    return %c0_i32, %c0_i32_0 : i32, i32
  }
  func.func @transform_3(%arg0: i32) -> (i32, i32) {
    %c0_i32 = arith.constant 0 : i32
    %c0_i32_0 = arith.constant 0 : i32
    return %arg0, %c0_i32 : i32, i32
  }
}

module attributes {stable_mosaic.version = 11 : i64} {
  func.func @_matmul_bias_act_kernel(%arg0: i32, %arg1: memref<128x128xbf16, #tpu.memory_space<vmem>>, %arg2: memref<128x16xbf16, #tpu.memory_space<vmem>>, %arg3: memref<1x16xf32, #tpu.memory_space<vmem>>, %arg4: memref<128x16xbf16, #tpu.memory_space<vmem>>) attributes {dimension_semantics = [#tpu.dimension_semantics<parallel>], iteration_bounds = array<i64: 1>, scalar_prefetch = 0 : i64, scratch_operands = 0 : i64, tpu.core_type = #tpu.core_type<tc>, window_params = [{transform_indices = @transform_0, window_bounds = array<i64: 128, 128>}, {pipeline_mode = #tpu.pipeline_mode<synchronous>, transform_indices = @transform_1, window_bounds = array<i64: 128, 16>}, {pipeline_mode = #tpu.pipeline_mode<synchronous>, transform_indices = @transform_2, window_bounds = array<i64: 1, 16>}, {transform_indices = @transform_3, window_bounds = array<i64: 128, 16>}]} {
    %c0 = arith.constant 0 : index
    %c0_0 = arith.constant 0 : index
    %0 = vector.load %arg1[%c0, %c0_0] : memref<128x128xbf16, #tpu.memory_space<vmem>>, vector<128x128xbf16>
    %c0_1 = arith.constant 0 : index
    %c0_2 = arith.constant 0 : index
    %1 = vector.load %arg2[%c0_1, %c0_2] : memref<128x16xbf16, #tpu.memory_space<vmem>>, vector<128x16xbf16>
    %cst = arith.constant dense<0.000000e+00> : vector<128x16xf32>
    %2 = tpu.matmul %0, %1, %cst {dimension_numbers = #tpu.dot_dimension_numbers<[1], [0], [0], [1], [0, 0, 1, 1], [], []>} : vector<128x128xbf16>, vector<128x16xbf16>, vector<128x16xf32> -> vector<128x16xf32>
    %c0_3 = arith.constant 0 : index
    %c0_4 = arith.constant 0 : index
    %3 = vector.load %arg3[%c0_3, %c0_4] : memref<1x16xf32, #tpu.memory_space<vmem>>, vector<1x16xf32>
    %4 = vector.broadcast %3 : vector<1x16xf32> to vector<128x16xf32>
    %5 = arith.addf %2, %4 : vector<128x16xf32>
    %6 = arith.truncf %5 : vector<128x16xf32> to vector<128x16xbf16>
    %c0_5 = arith.constant 0 : index
    %c0_6 = arith.constant 0 : index
    %7 = vector.load %arg4[%c0_5, %c0_6] : memref<128x16xbf16, #tpu.memory_space<vmem>>, vector<128x16xbf16>
    tpu.vector_store %arg4[%c0_5, %c0_6], %6 {strides = array<i32>} : memref<128x16xbf16, #tpu.memory_space<vmem>>, vector<128x16xbf16>,
    return
  }
  func.func @transform_0(%arg0: i32) -> (i32, i32) {
    %c0_i32 = arith.constant 0 : i32
    %c0_i32_0 = arith.constant 0 : i32
    return %arg0, %c0_i32 : i32, i32
  }
  func.func @transform_1(%arg0: i32) -> (i32, i32) {
    %c0_i32 = arith.constant 0 : i32
    %c0_i32_0 = arith.constant 0 : i32
    %c0_i32_1 = arith.constant 0 : i32
    return %c0_i32, %c0_i32_0 : i32, i32
  }
  func.func @transform_2(%arg0: i32) -> (i32, i32) {
    %c0_i32 = arith.constant 0 : i32
    %c0_i32_0 = arith.constant 0 : i32
    %c0_i32_1 = arith.constant 0 : i32
    return %c0_i32, %c0_i32_0 : i32, i32
  }
  func.func @transform_3(%arg0: i32) -> (i32, i32) {
    %c0_i32 = arith.constant 0 : i32
    %c0_i32_0 = arith.constant 0 : i32
    return %arg0, %c0_i32 : i32, i32
  }
}

module attributes {stable_mosaic.version = 11 : i64} {
  func.func @_instnorm_lrelu_kernel(%arg0: i32, %arg1: memref<1x64x16xbf16, #tpu.memory_space<vmem>>, %arg2: memref<1x64x16xbf16, #tpu.memory_space<vmem>>) attributes {dimension_semantics = [#tpu.dimension_semantics<parallel>], iteration_bounds = array<i64: 2>, scalar_prefetch = 0 : i64, scratch_operands = 0 : i64, tpu.core_type = #tpu.core_type<tc>, window_params = [{transform_indices = @transform_0, window_bounds = array<i64: 1, 64, 16>}, {transform_indices = @transform_1, window_bounds = array<i64: 1, 64, 16>}]} {
    %c0 = arith.constant 0 : index
    %c0_0 = arith.constant 0 : index
    %c0_1 = arith.constant 0 : index
    %0 = vector.load %arg1[%c0, %c0_0, %c0_1] : memref<1x64x16xbf16, #tpu.memory_space<vmem>>, vector<1x64x16xbf16>
    %1 = arith.extf %0 : vector<1x64x16xbf16> to vector<1x64x16xf32>
    %cst = arith.constant dense<0.000000e+00> : vector<1x16xf32>
    %2 = vector.multi_reduction <add>, %1, %cst [1] : vector<1x64x16xf32> to vector<1x16xf32>
    %3 = vector.shape_cast %2 : vector<1x16xf32> to vector<1x1x16xf32>
    %4 = arith.mulf %1, %1 : vector<1x64x16xf32>
    %cst_2 = arith.constant dense<0.000000e+00> : vector<1x16xf32>
    %5 = vector.multi_reduction <add>, %4, %cst_2 [1] : vector<1x64x16xf32> to vector<1x16xf32>
    %6 = vector.shape_cast %5 : vector<1x16xf32> to vector<1x1x16xf32>
    %cst_3 = arith.constant 1.562500e-02 : f32
    %7 = vector.broadcast %cst_3 : f32 to vector<1x1x16xf32>
    %8 = arith.mulf %3, %7 : vector<1x1x16xf32>
    %cst_4 = arith.constant 1.562500e-02 : f32
    %9 = vector.broadcast %cst_4 : f32 to vector<1x1x16xf32>
    %10 = arith.mulf %6, %9 : vector<1x1x16xf32>
    %11 = arith.mulf %8, %8 : vector<1x1x16xf32>
    %12 = arith.subf %10, %11 : vector<1x1x16xf32>
    %cst_5 = arith.constant 0.000000e+00 : f32
    %13 = vector.broadcast %cst_5 : f32 to vector<1x1x16xf32>
    %14 = arith.maximumf %12, %13 : vector<1x1x16xf32>
    %15 = vector.broadcast %8 : vector<1x1x16xf32> to vector<1x64x16xf32>
    %16 = arith.subf %1, %15 : vector<1x64x16xf32>
    %cst_6 = arith.constant 9.99999974E-6 : f32
    %17 = vector.broadcast %cst_6 : f32 to vector<1x1x16xf32>
    %18 = arith.addf %14, %17 : vector<1x1x16xf32>
    %19 = math.rsqrt %18 : vector<1x1x16xf32>
    %20 = vector.broadcast %19 : vector<1x1x16xf32> to vector<1x64x16xf32>
    %21 = arith.mulf %16, %20 : vector<1x64x16xf32>
    %cst_7 = arith.constant 0.000000e+00 : f32
    %22 = vector.broadcast %cst_7 : f32 to vector<1x64x16xf32>
    %23 = arith.cmpf oge, %21, %22 : vector<1x64x16xf32>
    %cst_8 = arith.constant 2.000000e-01 : f32
    %24 = vector.broadcast %cst_8 : f32 to vector<1x64x16xf32>
    %25 = arith.mulf %24, %21 : vector<1x64x16xf32>
    %26 = arith.select %23, %21, %25 : vector<1x64x16xi1>, vector<1x64x16xf32>
    %27 = arith.truncf %26 : vector<1x64x16xf32> to vector<1x64x16xbf16>
    %c0_9 = arith.constant 0 : index
    %c0_10 = arith.constant 0 : index
    %c0_11 = arith.constant 0 : index
    %28 = vector.load %arg2[%c0_9, %c0_10, %c0_11] : memref<1x64x16xbf16, #tpu.memory_space<vmem>>, vector<1x64x16xbf16>
    tpu.vector_store %arg2[%c0_9, %c0_10, %c0_11], %27 {strides = array<i32>} : memref<1x64x16xbf16, #tpu.memory_space<vmem>>, vector<1x64x16xbf16>,
    return
  }
  func.func @transform_0(%arg0: i32) -> (i32, i32, i32) {
    %c0_i32 = arith.constant 0 : i32
    %c0_i32_0 = arith.constant 0 : i32
    %c0_i32_1 = arith.constant 0 : i32
    return %arg0, %c0_i32, %c0_i32_0 : i32, i32, i32
  }
  func.func @transform_1(%arg0: i32) -> (i32, i32, i32) {
    %c0_i32 = arith.constant 0 : i32
    %c0_i32_0 = arith.constant 0 : i32
    %c0_i32_1 = arith.constant 0 : i32
    return %arg0, %c0_i32, %c0_i32_0 : i32, i32, i32
  }
}

module attributes {stable_mosaic.version = 11 : i64} {
  func.func @_matmul_bias_act_kernel(%arg0: i32, %arg1: memref<32x256xbf16, #tpu.memory_space<vmem>>, %arg2: memref<256x64xbf16, #tpu.memory_space<vmem>>, %arg3: memref<1x64xf32, #tpu.memory_space<vmem>>, %arg4: memref<32x64xbf16, #tpu.memory_space<vmem>>) attributes {dimension_semantics = [#tpu.dimension_semantics<parallel>], iteration_bounds = array<i64: 1>, scalar_prefetch = 0 : i64, scratch_operands = 0 : i64, tpu.core_type = #tpu.core_type<tc>, window_params = [{transform_indices = @transform_0, window_bounds = array<i64: 32, 256>}, {pipeline_mode = #tpu.pipeline_mode<synchronous>, transform_indices = @transform_1, window_bounds = array<i64: 256, 64>}, {pipeline_mode = #tpu.pipeline_mode<synchronous>, transform_indices = @transform_2, window_bounds = array<i64: 1, 64>}, {transform_indices = @transform_3, window_bounds = array<i64: 32, 64>}]} {
    %c0 = arith.constant 0 : index
    %c0_0 = arith.constant 0 : index
    %0 = vector.load %arg1[%c0, %c0_0] : memref<32x256xbf16, #tpu.memory_space<vmem>>, vector<32x256xbf16>
    %c0_1 = arith.constant 0 : index
    %c0_2 = arith.constant 0 : index
    %1 = vector.load %arg2[%c0_1, %c0_2] : memref<256x64xbf16, #tpu.memory_space<vmem>>, vector<256x64xbf16>
    %cst = arith.constant dense<0.000000e+00> : vector<32x64xf32>
    %2 = tpu.matmul %0, %1, %cst {dimension_numbers = #tpu.dot_dimension_numbers<[1], [0], [0], [1], [0, 0, 1, 1], [], []>} : vector<32x256xbf16>, vector<256x64xbf16>, vector<32x64xf32> -> vector<32x64xf32>
    %c0_3 = arith.constant 0 : index
    %c0_4 = arith.constant 0 : index
    %3 = vector.load %arg3[%c0_3, %c0_4] : memref<1x64xf32, #tpu.memory_space<vmem>>, vector<1x64xf32>
    %4 = vector.broadcast %3 : vector<1x64xf32> to vector<32x64xf32>
    %5 = arith.addf %2, %4 : vector<32x64xf32>
    %6 = arith.truncf %5 : vector<32x64xf32> to vector<32x64xbf16>
    %c0_5 = arith.constant 0 : index
    %c0_6 = arith.constant 0 : index
    %7 = vector.load %arg4[%c0_5, %c0_6] : memref<32x64xbf16, #tpu.memory_space<vmem>>, vector<32x64xbf16>
    tpu.vector_store %arg4[%c0_5, %c0_6], %6 {strides = array<i32>} : memref<32x64xbf16, #tpu.memory_space<vmem>>, vector<32x64xbf16>,
    return
  }
  func.func @transform_0(%arg0: i32) -> (i32, i32) {
    %c0_i32 = arith.constant 0 : i32
    %c0_i32_0 = arith.constant 0 : i32
    return %arg0, %c0_i32 : i32, i32
  }
  func.func @transform_1(%arg0: i32) -> (i32, i32) {
    %c0_i32 = arith.constant 0 : i32
    %c0_i32_0 = arith.constant 0 : i32
    %c0_i32_1 = arith.constant 0 : i32
    return %c0_i32, %c0_i32_0 : i32, i32
  }
  func.func @transform_2(%arg0: i32) -> (i32, i32) {
    %c0_i32 = arith.constant 0 : i32
    %c0_i32_0 = arith.constant 0 : i32
    %c0_i32_1 = arith.constant 0 : i32
    return %c0_i32, %c0_i32_0 : i32, i32
  }
  func.func @transform_3(%arg0: i32) -> (i32, i32) {
    %c0_i32 = arith.constant 0 : i32
    %c0_i32_0 = arith.constant 0 : i32
    return %arg0, %c0_i32 : i32, i32
  }
}

module attributes {stable_mosaic.version = 11 : i64} {
  func.func @_instnorm_lrelu_kernel(%arg0: i32, %arg1: memref<1x16x64xbf16, #tpu.memory_space<vmem>>, %arg2: memref<1x16x64xbf16, #tpu.memory_space<vmem>>) attributes {dimension_semantics = [#tpu.dimension_semantics<parallel>], iteration_bounds = array<i64: 2>, scalar_prefetch = 0 : i64, scratch_operands = 0 : i64, tpu.core_type = #tpu.core_type<tc>, window_params = [{transform_indices = @transform_0, window_bounds = array<i64: 1, 16, 64>}, {transform_indices = @transform_1, window_bounds = array<i64: 1, 16, 64>}]} {
    %c0 = arith.constant 0 : index
    %c0_0 = arith.constant 0 : index
    %c0_1 = arith.constant 0 : index
    %0 = vector.load %arg1[%c0, %c0_0, %c0_1] : memref<1x16x64xbf16, #tpu.memory_space<vmem>>, vector<1x16x64xbf16>
    %1 = arith.extf %0 : vector<1x16x64xbf16> to vector<1x16x64xf32>
    %cst = arith.constant dense<0.000000e+00> : vector<1x64xf32>
    %2 = vector.multi_reduction <add>, %1, %cst [1] : vector<1x16x64xf32> to vector<1x64xf32>
    %3 = vector.shape_cast %2 : vector<1x64xf32> to vector<1x1x64xf32>
    %4 = arith.mulf %1, %1 : vector<1x16x64xf32>
    %cst_2 = arith.constant dense<0.000000e+00> : vector<1x64xf32>
    %5 = vector.multi_reduction <add>, %4, %cst_2 [1] : vector<1x16x64xf32> to vector<1x64xf32>
    %6 = vector.shape_cast %5 : vector<1x64xf32> to vector<1x1x64xf32>
    %cst_3 = arith.constant 6.250000e-02 : f32
    %7 = vector.broadcast %cst_3 : f32 to vector<1x1x64xf32>
    %8 = arith.mulf %3, %7 : vector<1x1x64xf32>
    %cst_4 = arith.constant 6.250000e-02 : f32
    %9 = vector.broadcast %cst_4 : f32 to vector<1x1x64xf32>
    %10 = arith.mulf %6, %9 : vector<1x1x64xf32>
    %11 = arith.mulf %8, %8 : vector<1x1x64xf32>
    %12 = arith.subf %10, %11 : vector<1x1x64xf32>
    %cst_5 = arith.constant 0.000000e+00 : f32
    %13 = vector.broadcast %cst_5 : f32 to vector<1x1x64xf32>
    %14 = arith.maximumf %12, %13 : vector<1x1x64xf32>
    %15 = vector.broadcast %8 : vector<1x1x64xf32> to vector<1x16x64xf32>
    %16 = arith.subf %1, %15 : vector<1x16x64xf32>
    %cst_6 = arith.constant 9.99999974E-6 : f32
    %17 = vector.broadcast %cst_6 : f32 to vector<1x1x64xf32>
    %18 = arith.addf %14, %17 : vector<1x1x64xf32>
    %19 = math.rsqrt %18 : vector<1x1x64xf32>
    %20 = vector.broadcast %19 : vector<1x1x64xf32> to vector<1x16x64xf32>
    %21 = arith.mulf %16, %20 : vector<1x16x64xf32>
    %cst_7 = arith.constant 0.000000e+00 : f32
    %22 = vector.broadcast %cst_7 : f32 to vector<1x16x64xf32>
    %23 = arith.cmpf oge, %21, %22 : vector<1x16x64xf32>
    %cst_8 = arith.constant 2.000000e-01 : f32
    %24 = vector.broadcast %cst_8 : f32 to vector<1x16x64xf32>
    %25 = arith.mulf %24, %21 : vector<1x16x64xf32>
    %26 = arith.select %23, %21, %25 : vector<1x16x64xi1>, vector<1x16x64xf32>
    %27 = arith.truncf %26 : vector<1x16x64xf32> to vector<1x16x64xbf16>
    %c0_9 = arith.constant 0 : index
    %c0_10 = arith.constant 0 : index
    %c0_11 = arith.constant 0 : index
    %28 = vector.load %arg2[%c0_9, %c0_10, %c0_11] : memref<1x16x64xbf16, #tpu.memory_space<vmem>>, vector<1x16x64xbf16>
    tpu.vector_store %arg2[%c0_9, %c0_10, %c0_11], %27 {strides = array<i32>} : memref<1x16x64xbf16, #tpu.memory_space<vmem>>, vector<1x16x64xbf16>,
    return
  }
  func.func @transform_0(%arg0: i32) -> (i32, i32, i32) {
    %c0_i32 = arith.constant 0 : i32
    %c0_i32_0 = arith.constant 0 : i32
    %c0_i32_1 = arith.constant 0 : i32
    return %arg0, %c0_i32, %c0_i32_0 : i32, i32, i32
  }
  func.func @transform_1(%arg0: i32) -> (i32, i32, i32) {
    %c0_i32 = arith.constant 0 : i32
    %c0_i32_0 = arith.constant 0 : i32
    %c0_i32_1 = arith.constant 0 : i32
    return %arg0, %c0_i32, %c0_i32_0 : i32, i32, i32
  }
}

module attributes {stable_mosaic.version = 11 : i64} {
  func.func @_matmul_bias_act_kernel(%arg0: i32, %arg1: memref<24x1024xbf16, #tpu.memory_space<vmem>>, %arg2: memref<1024x128xbf16, #tpu.memory_space<vmem>>, %arg3: memref<1x128xf32, #tpu.memory_space<vmem>>, %arg4: memref<24x128xbf16, #tpu.memory_space<vmem>>) attributes {dimension_semantics = [#tpu.dimension_semantics<parallel>], iteration_bounds = array<i64: 1>, scalar_prefetch = 0 : i64, scratch_operands = 0 : i64, tpu.core_type = #tpu.core_type<tc>, window_params = [{transform_indices = @transform_0, window_bounds = array<i64: 24, 1024>}, {pipeline_mode = #tpu.pipeline_mode<synchronous>, transform_indices = @transform_1, window_bounds = array<i64: 1024, 128>}, {pipeline_mode = #tpu.pipeline_mode<synchronous>, transform_indices = @transform_2, window_bounds = array<i64: 1, 128>}, {transform_indices = @transform_3, window_bounds = array<i64: 24, 128>}]} {
    %c0 = arith.constant 0 : index
    %c0_0 = arith.constant 0 : index
    %0 = vector.load %arg1[%c0, %c0_0] : memref<24x1024xbf16, #tpu.memory_space<vmem>>, vector<24x1024xbf16>
    %c0_1 = arith.constant 0 : index
    %c0_2 = arith.constant 0 : index
    %1 = vector.load %arg2[%c0_1, %c0_2] : memref<1024x128xbf16, #tpu.memory_space<vmem>>, vector<1024x128xbf16>
    %cst = arith.constant dense<0.000000e+00> : vector<24x128xf32>
    %2 = tpu.matmul %0, %1, %cst {dimension_numbers = #tpu.dot_dimension_numbers<[1], [0], [0], [1], [0, 0, 1, 1], [], []>} : vector<24x1024xbf16>, vector<1024x128xbf16>, vector<24x128xf32> -> vector<24x128xf32>
    %c0_3 = arith.constant 0 : index
    %c0_4 = arith.constant 0 : index
    %3 = vector.load %arg3[%c0_3, %c0_4] : memref<1x128xf32, #tpu.memory_space<vmem>>, vector<1x128xf32>
    %4 = vector.broadcast %3 : vector<1x128xf32> to vector<24x128xf32>
    %5 = arith.addf %2, %4 : vector<24x128xf32>
    %6 = arith.truncf %5 : vector<24x128xf32> to vector<24x128xbf16>
    %c0_5 = arith.constant 0 : index
    %c0_6 = arith.constant 0 : index
    %7 = vector.load %arg4[%c0_5, %c0_6] : memref<24x128xbf16, #tpu.memory_space<vmem>>, vector<24x128xbf16>
    tpu.vector_store %arg4[%c0_5, %c0_6], %6 {strides = array<i32>} : memref<24x128xbf16, #tpu.memory_space<vmem>>, vector<24x128xbf16>,
    return
  }
  func.func @transform_0(%arg0: i32) -> (i32, i32) {
    %c0_i32 = arith.constant 0 : i32
    %c0_i32_0 = arith.constant 0 : i32
    return %arg0, %c0_i32 : i32, i32
  }
  func.func @transform_1(%arg0: i32) -> (i32, i32) {
    %c0_i32 = arith.constant 0 : i32
    %c0_i32_0 = arith.constant 0 : i32
    %c0_i32_1 = arith.constant 0 : i32
    return %c0_i32, %c0_i32_0 : i32, i32
  }
  func.func @transform_2(%arg0: i32) -> (i32, i32) {
    %c0_i32 = arith.constant 0 : i32
    %c0_i32_0 = arith.constant 0 : i32
    %c0_i32_1 = arith.constant 0 : i32
    return %c0_i32, %c0_i32_0 : i32, i32
  }
  func.func @transform_3(%arg0: i32) -> (i32, i32) {
    %c0_i32 = arith.constant 0 : i32
    %c0_i32_0 = arith.constant 0 : i32
    return %arg0, %c0_i32 : i32, i32
  }
}

module attributes {stable_mosaic.version = 11 : i64} {
  func.func @_instnorm_lrelu_kernel(%arg0: i32, %arg1: memref<1x9x128xbf16, #tpu.memory_space<vmem>>, %arg2: memref<1x9x128xbf16, #tpu.memory_space<vmem>>) attributes {dimension_semantics = [#tpu.dimension_semantics<parallel>], iteration_bounds = array<i64: 2>, scalar_prefetch = 0 : i64, scratch_operands = 0 : i64, tpu.core_type = #tpu.core_type<tc>, window_params = [{transform_indices = @transform_0, window_bounds = array<i64: 1, 9, 128>}, {transform_indices = @transform_1, window_bounds = array<i64: 1, 9, 128>}]} {
    %c0 = arith.constant 0 : index
    %c0_0 = arith.constant 0 : index
    %c0_1 = arith.constant 0 : index
    %0 = vector.load %arg1[%c0, %c0_0, %c0_1] : memref<1x9x128xbf16, #tpu.memory_space<vmem>>, vector<1x9x128xbf16>
    %1 = arith.extf %0 : vector<1x9x128xbf16> to vector<1x9x128xf32>
    %cst = arith.constant dense<0.000000e+00> : vector<1x128xf32>
    %2 = vector.multi_reduction <add>, %1, %cst [1] : vector<1x9x128xf32> to vector<1x128xf32>
    %3 = vector.shape_cast %2 : vector<1x128xf32> to vector<1x1x128xf32>
    %4 = arith.mulf %1, %1 : vector<1x9x128xf32>
    %cst_2 = arith.constant dense<0.000000e+00> : vector<1x128xf32>
    %5 = vector.multi_reduction <add>, %4, %cst_2 [1] : vector<1x9x128xf32> to vector<1x128xf32>
    %6 = vector.shape_cast %5 : vector<1x128xf32> to vector<1x1x128xf32>
    %cst_3 = arith.constant 0.111111112 : f32
    %7 = vector.broadcast %cst_3 : f32 to vector<1x1x128xf32>
    %8 = arith.mulf %3, %7 : vector<1x1x128xf32>
    %cst_4 = arith.constant 0.111111112 : f32
    %9 = vector.broadcast %cst_4 : f32 to vector<1x1x128xf32>
    %10 = arith.mulf %6, %9 : vector<1x1x128xf32>
    %11 = arith.mulf %8, %8 : vector<1x1x128xf32>
    %12 = arith.subf %10, %11 : vector<1x1x128xf32>
    %cst_5 = arith.constant 0.000000e+00 : f32
    %13 = vector.broadcast %cst_5 : f32 to vector<1x1x128xf32>
    %14 = arith.maximumf %12, %13 : vector<1x1x128xf32>
    %15 = vector.broadcast %8 : vector<1x1x128xf32> to vector<1x9x128xf32>
    %16 = arith.subf %1, %15 : vector<1x9x128xf32>
    %cst_6 = arith.constant 9.99999974E-6 : f32
    %17 = vector.broadcast %cst_6 : f32 to vector<1x1x128xf32>
    %18 = arith.addf %14, %17 : vector<1x1x128xf32>
    %19 = math.rsqrt %18 : vector<1x1x128xf32>
    %20 = vector.broadcast %19 : vector<1x1x128xf32> to vector<1x9x128xf32>
    %21 = arith.mulf %16, %20 : vector<1x9x128xf32>
    %cst_7 = arith.constant 0.000000e+00 : f32
    %22 = vector.broadcast %cst_7 : f32 to vector<1x9x128xf32>
    %23 = arith.cmpf oge, %21, %22 : vector<1x9x128xf32>
    %cst_8 = arith.constant 2.000000e-01 : f32
    %24 = vector.broadcast %cst_8 : f32 to vector<1x9x128xf32>
    %25 = arith.mulf %24, %21 : vector<1x9x128xf32>
    %26 = arith.select %23, %21, %25 : vector<1x9x128xi1>, vector<1x9x128xf32>
    %27 = arith.truncf %26 : vector<1x9x128xf32> to vector<1x9x128xbf16>
    %c0_9 = arith.constant 0 : index
    %c0_10 = arith.constant 0 : index
    %c0_11 = arith.constant 0 : index
    %28 = vector.load %arg2[%c0_9, %c0_10, %c0_11] : memref<1x9x128xbf16, #tpu.memory_space<vmem>>, vector<1x9x128xbf16>
    tpu.vector_store %arg2[%c0_9, %c0_10, %c0_11], %27 {strides = array<i32>} : memref<1x9x128xbf16, #tpu.memory_space<vmem>>, vector<1x9x128xbf16>,
    return
  }
  func.func @transform_0(%arg0: i32) -> (i32, i32, i32) {
    %c0_i32 = arith.constant 0 : i32
    %c0_i32_0 = arith.constant 0 : i32
    %c0_i32_1 = arith.constant 0 : i32
    return %arg0, %c0_i32, %c0_i32_0 : i32, i32, i32
  }
  func.func @transform_1(%arg0: i32) -> (i32, i32, i32) {
    %c0_i32 = arith.constant 0 : i32
    %c0_i32_0 = arith.constant 0 : i32
    %c0_i32_1 = arith.constant 0 : i32
    return %arg0, %c0_i32, %c0_i32_0 : i32, i32, i32
  }
}

module attributes {stable_mosaic.version = 11 : i64} {
  func.func @_matmul_bias_act_kernel(%arg0: i32, %arg1: memref<8x2048xbf16, #tpu.memory_space<vmem>>, %arg2: memref<2048x128xbf16, #tpu.memory_space<vmem>>, %arg3: memref<1x128xf32, #tpu.memory_space<vmem>>, %arg4: memref<8x128xf32, #tpu.memory_space<vmem>>) attributes {dimension_semantics = [#tpu.dimension_semantics<parallel>], iteration_bounds = array<i64: 1>, scalar_prefetch = 0 : i64, scratch_operands = 0 : i64, tpu.core_type = #tpu.core_type<tc>, window_params = [{transform_indices = @transform_0, window_bounds = array<i64: 8, 2048>}, {pipeline_mode = #tpu.pipeline_mode<synchronous>, transform_indices = @transform_1, window_bounds = array<i64: 2048, 128>}, {pipeline_mode = #tpu.pipeline_mode<synchronous>, transform_indices = @transform_2, window_bounds = array<i64: 1, 128>}, {transform_indices = @transform_3, window_bounds = array<i64: 8, 128>}]} {
    %c0 = arith.constant 0 : index
    %c0_0 = arith.constant 0 : index
    %0 = vector.load %arg1[%c0, %c0_0] : memref<8x2048xbf16, #tpu.memory_space<vmem>>, vector<8x2048xbf16>
    %c0_1 = arith.constant 0 : index
    %c0_2 = arith.constant 0 : index
    %1 = vector.load %arg2[%c0_1, %c0_2] : memref<2048x128xbf16, #tpu.memory_space<vmem>>, vector<2048x128xbf16>
    %cst = arith.constant dense<0.000000e+00> : vector<8x128xf32>
    %2 = tpu.matmul %0, %1, %cst {dimension_numbers = #tpu.dot_dimension_numbers<[1], [0], [0], [1], [0, 0, 1, 1], [], []>} : vector<8x2048xbf16>, vector<2048x128xbf16>, vector<8x128xf32> -> vector<8x128xf32>
    %c0_3 = arith.constant 0 : index
    %c0_4 = arith.constant 0 : index
    %3 = vector.load %arg3[%c0_3, %c0_4] : memref<1x128xf32, #tpu.memory_space<vmem>>, vector<1x128xf32>
    %4 = vector.broadcast %3 : vector<1x128xf32> to vector<8x128xf32>
    %5 = arith.addf %2, %4 : vector<8x128xf32>
    %c0_5 = arith.constant 0 : index
    %c0_6 = arith.constant 0 : index
    %6 = vector.load %arg4[%c0_5, %c0_6] : memref<8x128xf32, #tpu.memory_space<vmem>>, vector<8x128xf32>
    tpu.vector_store %arg4[%c0_5, %c0_6], %5 {strides = array<i32>} : memref<8x128xf32, #tpu.memory_space<vmem>>, vector<8x128xf32>,
    return
  }
  func.func @transform_0(%arg0: i32) -> (i32, i32) {
    %c0_i32 = arith.constant 0 : i32
    %c0_i32_0 = arith.constant 0 : i32
    return %arg0, %c0_i32 : i32, i32
  }
  func.func @transform_1(%arg0: i32) -> (i32, i32) {
    %c0_i32 = arith.constant 0 : i32
    %c0_i32_0 = arith.constant 0 : i32
    %c0_i32_1 = arith.constant 0 : i32
    return %c0_i32, %c0_i32_0 : i32, i32
  }
  func.func @transform_2(%arg0: i32) -> (i32, i32) {
    %c0_i32 = arith.constant 0 : i32
    %c0_i32_0 = arith.constant 0 : i32
    %c0_i32_1 = arith.constant 0 : i32
    return %c0_i32, %c0_i32_0 : i32, i32
  }
  func.func @transform_3(%arg0: i32) -> (i32, i32) {
    %c0_i32 = arith.constant 0 : i32
    %c0_i32_0 = arith.constant 0 : i32
    return %arg0, %c0_i32 : i32, i32
  }
}

</mosaic_0001>

<llo_original>
// kernel: _lambda_.8
$region0: #{_lambda_.8}
  #allocation0 [shape = 'u32[]', space=smem, size = 0x4, offset = 0x4, fixed_abs, tag = 'smem constant byte address 0x4 - core index']
  #allocation1 [shape = 'u32[72,128]{1,0:T(1,128)}', space=vmem, size = 0x9000, scoped, tag = 'internal scratch']
  %s0 = inlined_call_operand.vmem [shape: bf16[512,128], index: 0, kind: input, shape index: {}]
  %s1 = inlined_call_operand.vmem [shape: bf16[128,8], index: 1, kind: input, shape index: {}]
  %s2 = inlined_call_operand.vmem [shape: f32[1,8], index: 2, kind: input, shape index: {}]
  %s3 = inlined_call_operand.vmem [shape: bf16[512,8], index: 3, kind: output, shape index: {}]
  %s4 = sld [smem:[#allocation0]]
  $region45: #{_lambda_.8} parent=0
    _
  %s6 = ssub.s32 1, %s4
  %s7 = scalar_select 0, %s6, %s4
  loop: start=0, step=1, limit=4
  $region2: #{_lambda_.8} parent=0 // loop_pre_header
    _
  $region3: #{_lambda_.8} parent=0 // loop_header
    %s9 = sphi 0, %s13
    %p10 = scmp.ge.s32.totalorder %s9, 4
    %s19 = sphi 0, %s21
    %s22 = sphi 0, %s19
    %s23 = sphi 0, %s22
    %s39 = sphi 0, %s23
    %s43 = sphi 0, %s43
    %s45 = sphi 0, %s43
    %s46 = sphi 0, %s45
    %s60 = sphi 0, %s46
    %s64 = sphi 0, %s64
    %s66 = sphi 0, %s64
    %s67 = sphi 0, %s66
    %s81 = sphi 0, %s67
    %s87 = sphi 0, %s89
    %s90 = sphi 0, %s87
    %s91 = sphi 0, %s90
    %s107 = sphi 0, %s91
  $region4: #{_lambda_.8} parent=0 // loop_header_branch
    %12 = sbr.rel (%p10) target = $region8
  $region5: #{_lambda_.8} parent=0 // loop_body
    %s14 = ssub.s32 %s9, 1
    %s15 = ssub.s32 %s9, 2
    %s16 = sadd.s32 %s9, 1
    %s17 = ssub.s32 %s9, %s16
    %p18 = scmp.eq.s32.totalorder %s17, 0
    %s20 = sadd.s32 %s19, 1
    %s21 = scalar_select %p18, %s19, %s20
    %p24 = pneg %p18
    %p25 = scmp.eq.s32.totalorder %s9, 1
    %p26 = por %p24, %p25
    %p27 = scmp.ne.s32.totalorder %s19, %s22
    %p28 = scmp.eq.s32.totalorder %s9, 0
    %p29 = por %p27, %p28
    %p30 = scmp.ne.s32.totalorder %s19, %s22
    %p31 = scmp.eq.s32.totalorder %s14, 1
    %p32 = por %p30, %p31
    %p33 = scmp.ne.s32.totalorder %s22, %s23
    %p34 = scmp.eq.s32.totalorder %s14, 0
    %p35 = por %p33, %p34
    %p36 = scmp.ne.s32.totalorder %s22, %s23
    %p37 = scmp.eq.s32.totalorder %s15, 1
    %p38 = por %p36, %p37
    %p40 = scmp.ne.s32.totalorder %s23, %s39
    %p41 = scmp.eq.s32.totalorder %s15, 0
    %p42 = por %p40, %p41
    %s44 = sadd.s32 %s43, 1
    %p47 = scmp.eq.s32.totalorder %s9, 1
    %p48 = scmp.ne.s32.totalorder %s43, %s45
    %p49 = scmp.eq.s32.totalorder %s9, 0
    %p50 = por %p48, %p49
    %p51 = scmp.ne.s32.totalorder %s43, %s45
    %p52 = scmp.eq.s32.totalorder %s14, 1
    %p53 = por %p51, %p52
    %p54 = scmp.ne.s32.totalorder %s45, %s46
    %p55 = scmp.eq.s32.totalorder %s14, 0
    %p56 = por %p54, %p55
    %p57 = scmp.ne.s32.totalorder %s45, %s46
    %p58 = scmp.eq.s32.totalorder %s15, 1
    %p59 = por %p57, %p58
    %p61 = scmp.ne.s32.totalorder %s46, %s60
    %p62 = scmp.eq.s32.totalorder %s15, 0
    %p63 = por %p61, %p62
    %s65 = sadd.s32 %s64, 1
    %p68 = scmp.eq.s32.totalorder %s9, 1
    %p69 = scmp.ne.s32.totalorder %s64, %s66
    %p70 = scmp.eq.s32.totalorder %s9, 0
    %p71 = por %p69, %p70
    %p72 = scmp.ne.s32.totalorder %s64, %s66
    %p73 = scmp.eq.s32.totalorder %s14, 1
    %p74 = por %p72, %p73
    %p75 = scmp.ne.s32.totalorder %s66, %s67
    %p76 = scmp.eq.s32.totalorder %s14, 0
    %p77 = por %p75, %p76
    %p78 = scmp.ne.s32.totalorder %s66, %s67
    %p79 = scmp.eq.s32.totalorder %s15, 1
    %p80 = por %p78, %p79
    %p82 = scmp.ne.s32.totalorder %s67, %s81
    %p83 = scmp.eq.s32.totalorder %s15, 0
    %p84 = por %p82, %p83
    %s85 = ssub.s32 %s9, %s16
    %p86 = scmp.eq.s32.totalorder %s85, 0
    %s88 = sadd.s32 %s87, 1
    %s89 = scalar_select %p86, %s87, %s88
    %p92 = pneg %p86
    %p93 = scmp.eq.s32.totalorder %s9, 1
    %p94 = por %p92, %p93
    %p95 = scmp.ne.s32.totalorder %s87, %s90
    %p96 = scmp.eq.s32.totalorder %s9, 0
    %p97 = por %p95, %p96
    %p98 = scmp.ne.s32.totalorder %s87, %s90
    %p99 = scmp.eq.s32.totalorder %s14, 1
    %p100 = por %p98, %p99
    %p101 = scmp.ne.s32.totalorder %s90, %s91
    %p102 = scmp.eq.s32.totalorder %s14, 0
    %p103 = por %p101, %p102
    %p104 = scmp.ne.s32.totalorder %s90, %s91
    %p105 = scmp.eq.s32.totalorder %s15, 1
    %p106 = por %p104, %p105
    %p108 = scmp.ne.s32.totalorder %s91, %s107
    %p109 = scmp.eq.s32.totalorder %s15, 0
    %p110 = por %p108, %p109
    %p111 = scmp.le.s32.totalorder 1, %s9
    %p112 = scmp.lt.s32.totalorder %s9, 3
    %p113 = pnand %p111, %p112
    %p114 = pneg %p113
    // Predicated region
    $region9: #{_lambda_.8} parent=5 // pred_check
      _
    $region10: #{_lambda_.8} parent=5 // pred_check_branch
      %116 = sbr.rel (%p113) target = $region12
    $region11: #{_lambda_.8} parent=5 // pred_region
      %s117 = ssub.s32 %s9, 1
      // Predicated region
      $region13: #{_lambda_.8} parent=11 // pred_check
        %p118 = pneg %p56
      $region14: #{_lambda_.8} parent=11 // pred_check_branch
        %120 = sbr.rel (%p118) target = $region16
      $region15: #{_lambda_.8} parent=11 // pred_region
        _
      $region16: #{_lambda_.8} parent=11 // pred_fallthru
        _
      // Predicated region
      $region17: #{_lambda_.8} parent=11 // pred_check
        %p121 = pneg %p77
      $region18: #{_lambda_.8} parent=11 // pred_check_branch
        %123 = sbr.rel (%p121) target = $region20
      $region19: #{_lambda_.8} parent=11 // pred_region
        _
      $region20: #{_lambda_.8} parent=11 // pred_fallthru
        _
    $region12: #{_lambda_.8} parent=5 // pred_fallthru
      _
    %p124 = scmp.lt.s32.totalorder %s9, 2
    // Predicated region
    $region21: #{_lambda_.8} parent=5 // pred_check
      %p125 = pneg %p124
    $region22: #{_lambda_.8} parent=5 // pred_check_branch
      %127 = sbr.rel (%p125) target = $region24
    $region23: #{_lambda_.8} parent=5 // pred_region
      // Predicated region
      $region25: #{_lambda_.8} parent=23 // pred_check
        %p128 = pneg %p29
      $region26: #{_lambda_.8} parent=23 // pred_check_branch
        %130 = sbr.rel (%p128) target = $region28
      $region27: #{_lambda_.8} parent=23 // pred_region
        %s131 = smul.u32 32, %s9
        %p132 = scmp.lt.s32.totalorder %s131, 63
        %s133 = scalar_select %p132, %s131, 63
        %s134 = smul.addr %s133, 4
        %s135 = scalar_lea.vmem %s0, %s134
        %s136 = smul.u32 32, %s9
      $region28: #{_lambda_.8} parent=23 // pred_fallthru
        _
    $region24: #{_lambda_.8} parent=5 // pred_fallthru
      _
    %p137 = scmp.le.s32.totalorder 1, %s9
    %p138 = scmp.lt.s32.totalorder %s9, 3
    %p139 = pnand %p137, %p138
    %p140 = pneg %p139
    // Predicated region
    $region29: #{_lambda_.8} parent=5 // pred_check
      _
    $region30: #{_lambda_.8} parent=5 // pred_check_branch
      %142 = sbr.rel (%p139) target = $region32
    $region31: #{_lambda_.8} parent=5 // pred_region
      %s143 = ssub.s32 %s9, 1
      %s144 = smul.u32 32, %s14
      %p145 = scmp.lt.s32.totalorder %s144, 63
      %s146 = scalar_select %p145, %s144, 63
      %s147 = smul.addr %s146, 4
      %s148 = scalar_lea.vmem %s0, %s147
      %p149 = pneg %p35
      %p150 = pneg %p32
      %p151 = pneg %p56
      %p152 = pneg %p53
      %p153 = pneg %p77
      %p154 = pneg %p74
      %p155 = pneg %p103
      %p156 = pneg %p100
      %s157 = smul.u32 32, %s14
      %p158 = scmp.lt.s32.totalorder %s157, 63
      %s159 = scalar_select %p158, %s157, 63
      %s160 = smul.addr %s159, 4
      %s161 = scalar_lea.vmem %s3, %s160
      %s162 = smul.u32 32, %s14
      %p163 = scmp.lt.s32.totalorder %s162, 63
      %s164 = scalar_select %p163, %s162, 63
      %s165 = smul.addr %s164, 4
      %s166 = scalar_lea.vmem %s0, %s165
      %s167 = smul.u32 32, %s14
      %s168 = smul.u32 32, %s14
      %p169 = scmp.lt.s32.totalorder %s168, 63
      %s170 = scalar_select %p169, %s168, 63
      %s171 = smul.addr %s170, 4
      %s172 = scalar_lea.vmem %s3, %s171
      %s173 = smul.u32 32, %s14
      %v174 = vld [vmem:[%s166] sm:$0xf]
      %v175 = vld [vmem:[%s166 + $0x4] sm:$0xf]
      %v176 = vld [vmem:[%s166 + $0x8] sm:$0xf]
      %v177 = vld [vmem:[%s166 + $0xc] sm:$0xf]
      %v178 = vld [vmem:[%s166 + $0x10] sm:$0xf]
      %v179 = vld [vmem:[%s166 + $0x14] sm:$0xf]
      %v180 = vld [vmem:[%s166 + $0x18] sm:$0xf]
      %v181 = vld [vmem:[%s166 + $0x1c] sm:$0xf]
      %v182 = vld [vmem:[%s166 + $0x20] sm:$0xf]
      %v183 = vld [vmem:[%s166 + $0x24] sm:$0xf]
      %v184 = vld [vmem:[%s166 + $0x28] sm:$0xf]
      %v185 = vld [vmem:[%s166 + $0x2c] sm:$0xf]
      %v186 = vld [vmem:[%s166 + $0x30] sm:$0xf]
      %v187 = vld [vmem:[%s166 + $0x34] sm:$0xf]
      %v188 = vld [vmem:[%s166 + $0x38] sm:$0xf]
      %v189 = vld [vmem:[%s166 + $0x3c] sm:$0xf]
      %v190 = vld [vmem:[%s166 + $0x40] sm:$0xf]
      %v191 = vld [vmem:[%s166 + $0x44] sm:$0xf]
      %v192 = vld [vmem:[%s166 + $0x48] sm:$0xf]
      %v193 = vld [vmem:[%s166 + $0x4c] sm:$0xf]
      %v194 = vld [vmem:[%s166 + $0x50] sm:$0xf]
      %v195 = vld [vmem:[%s166 + $0x54] sm:$0xf]
      %v196 = vld [vmem:[%s166 + $0x58] sm:$0xf]
      %v197 = vld [vmem:[%s166 + $0x5c] sm:$0xf]
      %v198 = vld [vmem:[%s166 + $0x60] sm:$0xf]
      %v199 = vld [vmem:[%s166 + $0x64] sm:$0xf]
      %v200 = vld [vmem:[%s166 + $0x68] sm:$0xf]
      %v201 = vld [vmem:[%s166 + $0x6c] sm:$0xf]
      %v202 = vld [vmem:[%s166 + $0x70] sm:$0xf]
      %v203 = vld [vmem:[%s166 + $0x74] sm:$0xf]
      %v204 = vld [vmem:[%s166 + $0x78] sm:$0xf]
      %v205 = vld [vmem:[%s166 + $0x7c] sm:$0xf]
      %v206 = vld [vmem:[%s1] sm:$0xf]
      %v207 = vld [vmem:[%s1 + $0x4] sm:$0xf]
      %v208 = vld [vmem:[%s1 + $0x8] sm:$0xf]
      %v209 = vld [vmem:[%s1 + $0xc] sm:$0xf]
      %v210 = vld [vmem:[%s1 + $0x10] sm:$0xf]
      %v211 = vld [vmem:[%s1 + $0x14] sm:$0xf]
      %v212 = vld [vmem:[%s1 + $0x18] sm:$0xf]
      %v213 = vld [vmem:[%s1 + $0x1c] sm:$0xf]
      %v214 = vld [vmem:[%s1 + $0x20] sm:$0xf]
      %v215 = vld [vmem:[%s1 + $0x24] sm:$0xf]
      %v216 = vld [vmem:[%s1 + $0x28] sm:$0xf]
      %v217 = vld [vmem:[%s1 + $0x2c] sm:$0xf]
      %v218 = vld [vmem:[%s1 + $0x30] sm:$0xf]
      %v219 = vld [vmem:[%s1 + $0x34] sm:$0xf]
      %v220 = vld [vmem:[%s1 + $0x38] sm:$0xf]
      %v221 = vld [vmem:[%s1 + $0x3c] sm:$0xf]
      %v222 = vld [vmem:[%s2] sm:$0x1]
      %v224 = vperm.slane %v222, 0
      %v258 = vunpack.c.l.b16 %v174
      %v259 = vunpack.c.l.b16 %v175
      %v260 = vunpack.c.l.b16 %v176
      %v261 = vunpack.c.l.b16 %v177
      %v262 = vunpack.c.l.b16 %v178
      %v263 = vunpack.c.l.b16 %v179
      %v264 = vunpack.c.l.b16 %v180
      %v265 = vunpack.c.l.b16 %v181
      %v266 = vunpack.c.l.b16 %v182
      %v267 = vunpack.c.l.b16 %v183
      %v268 = vunpack.c.l.b16 %v184
      %v269 = vunpack.c.l.b16 %v185
      %v270 = vunpack.c.l.b16 %v186
      %v271 = vunpack.c.l.b16 %v187
      %v272 = vunpack.c.l.b16 %v188
      %v273 = vunpack.c.l.b16 %v189
      %v274 = vunpack.c.l.b16 %v190
      %v275 = vunpack.c.l.b16 %v191
      %v276 = vunpack.c.l.b16 %v192
      %v277 = vunpack.c.l.b16 %v193
      %v278 = vunpack.c.l.b16 %v194
      %v279 = vunpack.c.l.b16 %v195
      %v280 = vunpack.c.l.b16 %v196
      %v281 = vunpack.c.l.b16 %v197
      %v282 = vunpack.c.l.b16 %v198
      %v283 = vunpack.c.l.b16 %v199
      %v284 = vunpack.c.l.b16 %v200
      %v285 = vunpack.c.l.b16 %v201
      %v286 = vunpack.c.l.b16 %v202
      %v287 = vunpack.c.l.b16 %v203
      %v288 = vunpack.c.l.b16 %v204
      %v289 = vunpack.c.l.b16 %v205
      %v290 = vpack.c.b16 %v259, %v258
      %v291 = vpack.c.b16 %v261, %v260
      %v292 = vpack.c.b16 %v263, %v262
      %v293 = vpack.c.b16 %v265, %v264
      %v294 = vpack.c.b16 %v267, %v266
      %v295 = vpack.c.b16 %v269, %v268
      %v296 = vpack.c.b16 %v271, %v270
      %v297 = vpack.c.b16 %v273, %v272
      %v298 = vpack.c.b16 %v275, %v274
      %v299 = vpack.c.b16 %v277, %v276
      %v300 = vpack.c.b16 %v279, %v278
      %v301 = vpack.c.b16 %v281, %v280
      %v302 = vpack.c.b16 %v283, %v282
      %v303 = vpack.c.b16 %v285, %v284
      %v304 = vpack.c.b16 %v287, %v286
      %v305 = vpack.c.b16 %v289, %v288
      %v338 = vunpack.c.l.b16 %v206
      %v339 = vunpack.c.l.b16 %v207
      %v340 = vunpack.c.l.b16 %v208
      %v341 = vunpack.c.l.b16 %v209
      %v342 = vunpack.c.l.b16 %v210
      %v343 = vunpack.c.l.b16 %v211
      %v344 = vunpack.c.l.b16 %v212
      %v345 = vunpack.c.l.b16 %v213
      %v346 = vunpack.c.l.b16 %v214
      %v347 = vunpack.c.l.b16 %v215
      %v348 = vunpack.c.l.b16 %v216
      %v349 = vunpack.c.l.b16 %v217
      %v350 = vunpack.c.l.b16 %v218
      %v351 = vunpack.c.l.b16 %v219
      %v352 = vunpack.c.l.b16 %v220
      %v353 = vunpack.c.l.b16 %v221
      %v354 = vpack.c.b16 %v339, %v338
      %v355 = vpack.c.b16 %v341, %v340
      %v356 = vpack.c.b16 %v343, %v342
      %v357 = vpack.c.b16 %v345, %v344
      %v358 = vpack.c.b16 %v347, %v346
      %v359 = vpack.c.b16 %v349, %v348
      %v360 = vpack.c.b16 %v351, %v350
      %v361 = vpack.c.b16 %v353, %v352
      %370 = vmatpush.bf16.msra.mxu0 %v361
      %371 = vmatpush.bf16.msra.mxu0 %v360
      %372 = vmatpush.bf16.msra.mxu0 %v359
      %373 = vmatpush.bf16.msra.mxu0 %v358
      %374 = vmatpush.bf16.msra.mxu0 %v357
      %375 = vmatpush.bf16.msra.mxu0 %v356
      %376 = vmatpush.bf16.msra.mxu0 %v355
      %377 = vmatpush.bf16.msra.mxu0 %v354
      %378 = vmatmul.bf16.gmra.mxu0 %v290
      %v379 = vpop.f32.mrf.mxu0
      %v380 = vadd.f32 %v224, %v379
      %v381 = vpop.f32.mrf.mxu0
      %v382 = vadd.f32 %v224, %v381
      %383 = vmatmul.bf16.gmra.mxu0 %v291
      %v384 = vpop.f32.mrf.mxu0
      %v385 = vadd.f32 %v224, %v384
      %v386 = vpop.f32.mrf.mxu0
      %v387 = vadd.f32 %v224, %v386
      %388 = vmatmul.bf16.gmra.mxu0 %v292
      %v389 = vpop.f32.mrf.mxu0
      %v390 = vadd.f32 %v224, %v389
      %v391 = vpop.f32.mrf.mxu0
      %v392 = vadd.f32 %v224, %v391
      %393 = vmatmul.bf16.gmra.mxu0 %v293
      %v394 = vpop.f32.mrf.mxu0
      %v395 = vadd.f32 %v224, %v394
      %v396 = vpop.f32.mrf.mxu0
      %v397 = vadd.f32 %v224, %v396
      %398 = vmatmul.bf16.gmra.mxu0 %v294
      %v399 = vpop.f32.mrf.mxu0
      %v400 = vadd.f32 %v224, %v399
      %v401 = vpop.f32.mrf.mxu0
      %v402 = vadd.f32 %v224, %v401
      %403 = vmatmul.bf16.gmra.mxu0 %v295
      %v404 = vpop.f32.mrf.mxu0
      %v405 = vadd.f32 %v224, %v404
      %v406 = vpop.f32.mrf.mxu0
      %v407 = vadd.f32 %v224, %v406
      %408 = vmatmul.bf16.gmra.mxu0 %v296
      %v409 = vpop.f32.mrf.mxu0
      %v410 = vadd.f32 %v224, %v409
      %v411 = vpop.f32.mrf.mxu0
      %v412 = vadd.f32 %v224, %v411
      %413 = vmatmul.bf16.gmra.mxu0 %v297
      %v414 = vpop.f32.mrf.mxu0
      %v415 = vadd.f32 %v224, %v414
      %v416 = vpop.f32.mrf.mxu0
      %v417 = vadd.f32 %v224, %v416
      %418 = vmatmul.bf16.gmra.mxu0 %v298
      %v419 = vpop.f32.mrf.mxu0
      %v420 = vadd.f32 %v224, %v419
      %v421 = vpop.f32.mrf.mxu0
      %v422 = vadd.f32 %v224, %v421
      %423 = vmatmul.bf16.gmra.mxu0 %v299
      %v424 = vpop.f32.mrf.mxu0
      %v425 = vadd.f32 %v224, %v424
      %v426 = vpop.f32.mrf.mxu0
      %v427 = vadd.f32 %v224, %v426
      %428 = vmatmul.bf16.gmra.mxu0 %v300
      %v429 = vpop.f32.mrf.mxu0
      %v430 = vadd.f32 %v224, %v429
      %v431 = vpop.f32.mrf.mxu0
      %v432 = vadd.f32 %v224, %v431
      %433 = vmatmul.bf16.gmra.mxu0 %v301
      %v434 = vpop.f32.mrf.mxu0
      %v435 = vadd.f32 %v224, %v434
      %v436 = vpop.f32.mrf.mxu0
      %v437 = vadd.f32 %v224, %v436
      %438 = vmatmul.bf16.gmra.mxu0 %v302
      %v439 = vpop.f32.mrf.mxu0
      %v440 = vadd.f32 %v224, %v439
      %v441 = vpop.f32.mrf.mxu0
      %v442 = vadd.f32 %v224, %v441
      %443 = vmatmul.bf16.gmra.mxu0 %v303
      %v444 = vpop.f32.mrf.mxu0
      %v445 = vadd.f32 %v224, %v444
      %v446 = vpop.f32.mrf.mxu0
      %v447 = vadd.f32 %v224, %v446
      %448 = vmatmul.bf16.gmra.mxu0 %v304
      %v449 = vpop.f32.mrf.mxu0
      %v450 = vadd.f32 %v224, %v449
      %v451 = vpop.f32.mrf.mxu0
      %v452 = vadd.f32 %v224, %v451
      %453 = vmatmul.bf16.gmra.mxu0 %v305
      %v454 = vpop.f32.mrf.mxu0
      %v455 = vadd.f32 %v224, %v454
      %v456 = vpop.f32.mrf.mxu0
      %v457 = vadd.f32 %v224, %v456
      %458 = vdwg.mxu0
      %vm459 = vcmp.ge.f32.partialorder %v380, 0.0
      %vm460 = vcmp.ge.f32.partialorder %v382, 0.0
      %vm461 = vcmp.ge.f32.partialorder %v385, 0.0
      %vm462 = vcmp.ge.f32.partialorder %v387, 0.0
      %vm463 = vcmp.ge.f32.partialorder %v390, 0.0
      %vm464 = vcmp.ge.f32.partialorder %v392, 0.0
      %vm465 = vcmp.ge.f32.partialorder %v395, 0.0
      %vm466 = vcmp.ge.f32.partialorder %v397, 0.0
      %vm467 = vcmp.ge.f32.partialorder %v400, 0.0
      %vm468 = vcmp.ge.f32.partialorder %v402, 0.0
      %vm469 = vcmp.ge.f32.partialorder %v405, 0.0
      %vm470 = vcmp.ge.f32.partialorder %v407, 0.0
      %vm471 = vcmp.ge.f32.partialorder %v410, 0.0
      %vm472 = vcmp.ge.f32.partialorder %v412, 0.0
      %vm473 = vcmp.ge.f32.partialorder %v415, 0.0
      %vm474 = vcmp.ge.f32.partialorder %v417, 0.0
      %vm475 = vcmp.ge.f32.partialorder %v420, 0.0
      %vm476 = vcmp.ge.f32.partialorder %v422, 0.0
      %vm477 = vcmp.ge.f32.partialorder %v425, 0.0
      %vm478 = vcmp.ge.f32.partialorder %v427, 0.0
      %vm479 = vcmp.ge.f32.partialorder %v430, 0.0
      %vm480 = vcmp.ge.f32.partialorder %v432, 0.0
      %vm481 = vcmp.ge.f32.partialorder %v435, 0.0
      %vm482 = vcmp.ge.f32.partialorder %v437, 0.0
      %vm483 = vcmp.ge.f32.partialorder %v440, 0.0
      %vm484 = vcmp.ge.f32.partialorder %v442, 0.0
      %vm485 = vcmp.ge.f32.partialorder %v445, 0.0
      %vm486 = vcmp.ge.f32.partialorder %v447, 0.0
      %vm487 = vcmp.ge.f32.partialorder %v450, 0.0
      %vm488 = vcmp.ge.f32.partialorder %v452, 0.0
      %vm489 = vcmp.ge.f32.partialorder %v455, 0.0
      %vm490 = vcmp.ge.f32.partialorder %v457, 0.0
      %v491 = vmul.f32 %v380, 0.2
      %v492 = vmul.f32 %v382, 0.2
      %v493 = vmul.f32 %v385, 0.2
      %v494 = vmul.f32 %v387, 0.2
      %v495 = vmul.f32 %v390, 0.2
      %v496 = vmul.f32 %v392, 0.2
      %v497 = vmul.f32 %v395, 0.2
      %v498 = vmul.f32 %v397, 0.2
      %v499 = vmul.f32 %v400, 0.2
      %v500 = vmul.f32 %v402, 0.2
      %v501 = vmul.f32 %v405, 0.2
      %v502 = vmul.f32 %v407, 0.2
      %v503 = vmul.f32 %v410, 0.2
      %v504 = vmul.f32 %v412, 0.2
      %v505 = vmul.f32 %v415, 0.2
      %v506 = vmul.f32 %v417, 0.2
      %v507 = vmul.f32 %v420, 0.2
      %v508 = vmul.f32 %v422, 0.2
      %v509 = vmul.f32 %v425, 0.2
      %v510 = vmul.f32 %v427, 0.2
      %v511 = vmul.f32 %v430, 0.2
      %v512 = vmul.f32 %v432, 0.2
      %v513 = vmul.f32 %v435, 0.2
      %v514 = vmul.f32 %v437, 0.2
      %v515 = vmul.f32 %v440, 0.2
      %v516 = vmul.f32 %v442, 0.2
      %v517 = vmul.f32 %v445, 0.2
      %v518 = vmul.f32 %v447, 0.2
      %v519 = vmul.f32 %v450, 0.2
      %v520 = vmul.f32 %v452, 0.2
      %v521 = vmul.f32 %v455, 0.2
      %v522 = vmul.f32 %v457, 0.2
      %v523 = vsel %vm459, %v380, %v491
      %v524 = vsel %vm460, %v382, %v492
      %v525 = vsel %vm461, %v385, %v493
      %v526 = vsel %vm462, %v387, %v494
      %v527 = vsel %vm463, %v390, %v495
      %v528 = vsel %vm464, %v392, %v496
      %v529 = vsel %vm465, %v395, %v497
      %v530 = vsel %vm466, %v397, %v498
      %v531 = vsel %vm467, %v400, %v499
      %v532 = vsel %vm468, %v402, %v500
      %v533 = vsel %vm469, %v405, %v501
      %v534 = vsel %vm470, %v407, %v502
      %v535 = vsel %vm471, %v410, %v503
      %v536 = vsel %vm472, %v412, %v504
      %v537 = vsel %vm473, %v415, %v505
      %v538 = vsel %vm474, %v417, %v506
      %v539 = vsel %vm475, %v420, %v507
      %v540 = vsel %vm476, %v422, %v508
      %v541 = vsel %vm477, %v425, %v509
      %v542 = vsel %vm478, %v427, %v510
      %v543 = vsel %vm479, %v430, %v511
      %v544 = vsel %vm480, %v432, %v512
      %v545 = vsel %vm481, %v435, %v513
      %v546 = vsel %vm482, %v437, %v514
      %v547 = vsel %vm483, %v440, %v515
      %v548 = vsel %vm484, %v442, %v516
      %v549 = vsel %vm485, %v445, %v517
      %v550 = vsel %vm486, %v447, %v518
      %v551 = vsel %vm487, %v450, %v519
      %v552 = vsel %vm488, %v452, %v520
      %v553 = vsel %vm489, %v455, %v521
      %v554 = vsel %vm490, %v457, %v522
      %v555 = vpack.c.bf16 %v523, %v523
      %v556 = vpack.c.bf16 %v524, %v524
      %v557 = vpack.c.bf16 %v525, %v525
      %v558 = vpack.c.bf16 %v526, %v526
      %v559 = vpack.c.bf16 %v527, %v527
      %v560 = vpack.c.bf16 %v528, %v528
      %v561 = vpack.c.bf16 %v529, %v529
      %v562 = vpack.c.bf16 %v530, %v530
      %v563 = vpack.c.bf16 %v531, %v531
      %v564 = vpack.c.bf16 %v532, %v532
      %v565 = vpack.c.bf16 %v533, %v533
      %v566 = vpack.c.bf16 %v534, %v534
      %v567 = vpack.c.bf16 %v535, %v535
      %v568 = vpack.c.bf16 %v536, %v536
      %v569 = vpack.c.bf16 %v537, %v537
      %v570 = vpack.c.bf16 %v538, %v538
      %v571 = vpack.c.bf16 %v539, %v539
      %v572 = vpack.c.bf16 %v540, %v540
      %v573 = vpack.c.bf16 %v541, %v541
      %v574 = vpack.c.bf16 %v542, %v542
      %v575 = vpack.c.bf16 %v543, %v543
      %v576 = vpack.c.bf16 %v544, %v544
      %v577 = vpack.c.bf16 %v545, %v545
      %v578 = vpack.c.bf16 %v546, %v546
      %v579 = vpack.c.bf16 %v547, %v547
      %v580 = vpack.c.bf16 %v548, %v548
      %v581 = vpack.c.bf16 %v549, %v549
      %v582 = vpack.c.bf16 %v550, %v550
      %v583 = vpack.c.bf16 %v551, %v551
      %v584 = vpack.c.bf16 %v552, %v552
      %v585 = vpack.c.bf16 %v553, %v553
      %v586 = vpack.c.bf16 %v554, %v554
      %vm587 = vcmask 60416
      %588 = vst.msk [vmem:[%s172] sm:$0xf] %vm587, %v555
      %589 = vst.msk [vmem:[%s172 + $0x4] sm:$0xf] %vm587, %v556
      %590 = vst.msk [vmem:[%s172 + $0x8] sm:$0xf] %vm587, %v557
      %591 = vst.msk [vmem:[%s172 + $0xc] sm:$0xf] %vm587, %v558
      %592 = vst.msk [vmem:[%s172 + $0x10] sm:$0xf] %vm587, %v559
      %593 = vst.msk [vmem:[%s172 + $0x14] sm:$0xf] %vm587, %v560
      %594 = vst.msk [vmem:[%s172 + $0x18] sm:$0xf] %vm587, %v561
      %595 = vst.msk [vmem:[%s172 + $0x1c] sm:$0xf] %vm587, %v562
      %596 = vst.msk [vmem:[%s172 + $0x20] sm:$0xf] %vm587, %v563
      %597 = vst.msk [vmem:[%s172 + $0x24] sm:$0xf] %vm587, %v564
      %598 = vst.msk [vmem:[%s172 + $0x28] sm:$0xf] %vm587, %v565
      %599 = vst.msk [vmem:[%s172 + $0x2c] sm:$0xf] %vm587, %v566
      %600 = vst.msk [vmem:[%s172 + $0x30] sm:$0xf] %vm587, %v567
      %601 = vst.msk [vmem:[%s172 + $0x34] sm:$0xf] %vm587, %v568
      %602 = vst.msk [vmem:[%s172 + $0x38] sm:$0xf] %vm587, %v569
      %603 = vst.msk [vmem:[%s172 + $0x3c] sm:$0xf] %vm587, %v570
      %604 = vst.msk [vmem:[%s172 + $0x40] sm:$0xf] %vm587, %v571
      %605 = vst.msk [vmem:[%s172 + $0x44] sm:$0xf] %vm587, %v572
      %606 = vst.msk [vmem:[%s172 + $0x48] sm:$0xf] %vm587, %v573
      %607 = vst.msk [vmem:[%s172 + $0x4c] sm:$0xf] %vm587, %v574
      %608 = vst.msk [vmem:[%s172 + $0x50] sm:$0xf] %vm587, %v575
      %609 = vst.msk [vmem:[%s172 + $0x54] sm:$0xf] %vm587, %v576
      %610 = vst.msk [vmem:[%s172 + $0x58] sm:$0xf] %vm587, %v577
      %611 = vst.msk [vmem:[%s172 + $0x5c] sm:$0xf] %vm587, %v578
      %612 = vst.msk [vmem:[%s172 + $0x60] sm:$0xf] %vm587, %v579
      %613 = vst.msk [vmem:[%s172 + $0x64] sm:$0xf] %vm587, %v580
      %614 = vst.msk [vmem:[%s172 + $0x68] sm:$0xf] %vm587, %v581
      %615 = vst.msk [vmem:[%s172 + $0x6c] sm:$0xf] %vm587, %v582
      %616 = vst.msk [vmem:[%s172 + $0x70] sm:$0xf] %vm587, %v583
      %617 = vst.msk [vmem:[%s172 + $0x74] sm:$0xf] %vm587, %v584
      %618 = vst.msk [vmem:[%s172 + $0x78] sm:$0xf] %vm587, %v585
      %619 = vst.msk [vmem:[%s172 + $0x7c] sm:$0xf] %vm587, %v586
      %s620 = smul.u32 32, %s14
      %p621 = scmp.lt.s32.totalorder %s620, 63
      %s622 = scalar_select %p621, %s620, 63
      %s623 = smul.addr %s622, 4
      %s624 = scalar_lea.vmem %s3, %s623
      // Predicated region
      $region33: #{_lambda_.8} parent=31 // pred_check
        %p625 = pneg %p100
      $region34: #{_lambda_.8} parent=31 // pred_check_branch
        %627 = sbr.rel (%p625) target = $region36
      $region35: #{_lambda_.8} parent=31 // pred_region
        %s628 = smul.u32 32, %s14
      $region36: #{_lambda_.8} parent=31 // pred_fallthru
        _
    $region32: #{_lambda_.8} parent=5 // pred_fallthru
      _
    %p629 = scmp.le.s32.totalorder 2, %s9
    // Predicated region
    $region37: #{_lambda_.8} parent=5 // pred_check
      %p630 = pneg %p629
    $region38: #{_lambda_.8} parent=5 // pred_check_branch
      %632 = sbr.rel (%p630) target = $region40
    $region39: #{_lambda_.8} parent=5 // pred_region
      %s633 = ssub.s32 %s9, 2
      // Predicated region
      $region41: #{_lambda_.8} parent=39 // pred_check
        %p634 = pneg %p106
      $region42: #{_lambda_.8} parent=39 // pred_check_branch
        %636 = sbr.rel (%p634) target = $region44
      $region43: #{_lambda_.8} parent=39 // pred_region
        %s637 = smul.u32 32, %s15
        %p638 = scmp.lt.s32.totalorder %s637, 63
        %s639 = scalar_select %p638, %s637, 63
        %s640 = smul.addr %s639, 4
        %s641 = scalar_lea.vmem %s3, %s640
      $region44: #{_lambda_.8} parent=39 // pred_fallthru
        _
    $region40: #{_lambda_.8} parent=5 // pred_fallthru
      _
  $region6: #{_lambda_.8} parent=0 // loop_footer
    %s13 = sadd.s32 1, %s9
  $region7: #{_lambda_.8} parent=0 // loop_footer_branch
    %8 = sbr.rel target = $region3
  $region8: #{_lambda_.8} parent=0 // loop_exit
    _

// kernel: _lambda_.9
$region0: #{_lambda_.9}
  #allocation0 [shape = 'u32[]', space=smem, size = 0x4, offset = 0x4, fixed_abs, tag = 'smem constant byte address 0x4 - core index']
  #allocation1 [shape = 'u32[72,128]{1,0:T(1,128)}', space=vmem, size = 0x9000, scoped, tag = 'internal scratch']
  %s0 = inlined_call_operand.vmem [shape: bf16[128,128], index: 0, kind: input, shape index: {}]
  %s1 = inlined_call_operand.vmem [shape: bf16[128,16], index: 1, kind: input, shape index: {}]
  %s2 = inlined_call_operand.vmem [shape: f32[1,16], index: 2, kind: input, shape index: {}]
  %s3 = inlined_call_operand.vmem [shape: bf16[128,16], index: 3, kind: output, shape index: {}]
  %s4 = sld [smem:[#allocation0]]
  $region22: #{_lambda_.9} parent=0
    _
  %s6 = ssub.s32 1, %s4
  %s7 = scalar_select 0, %s6, %s4
  // Predicated region
  $region2: #{_lambda_.9} parent=0 // pred_check
    _
  $region3: #{_lambda_.9} parent=0 // pred_check_branch
    %9 = sbr.rel (0) target = $region5
  $region4: #{_lambda_.9} parent=0 // pred_region
    _
  $region5: #{_lambda_.9} parent=0 // pred_fallthru
    _
  // Predicated region
  $region6: #{_lambda_.9} parent=0 // pred_check
    _
  $region7: #{_lambda_.9} parent=0 // pred_check_branch
    %11 = sbr.rel (0) target = $region9
  $region8: #{_lambda_.9} parent=0 // pred_region
    _
  $region9: #{_lambda_.9} parent=0 // pred_fallthru
    _
  // Predicated region
  $region10: #{_lambda_.9} parent=0 // pred_check
    _
  $region11: #{_lambda_.9} parent=0 // pred_check_branch
    %13 = sbr.rel (0) target = $region13
  $region12: #{_lambda_.9} parent=0 // pred_region
    _
  $region13: #{_lambda_.9} parent=0 // pred_fallthru
    _
  %v14 = vld [vmem:[%s0] sm:$0xf]
  %v15 = vld [vmem:[%s0 + $0x4] sm:$0xf]
  %v16 = vld [vmem:[%s0 + $0x8] sm:$0xf]
  %v17 = vld [vmem:[%s0 + $0xc] sm:$0xf]
  %v18 = vld [vmem:[%s0 + $0x10] sm:$0xf]
  %v19 = vld [vmem:[%s0 + $0x14] sm:$0xf]
  %v20 = vld [vmem:[%s0 + $0x18] sm:$0xf]
  %v21 = vld [vmem:[%s0 + $0x1c] sm:$0xf]
  %v22 = vld [vmem:[%s0 + $0x20] sm:$0xf]
  %v23 = vld [vmem:[%s0 + $0x24] sm:$0xf]
  %v24 = vld [vmem:[%s0 + $0x28] sm:$0xf]
  %v25 = vld [vmem:[%s0 + $0x2c] sm:$0xf]
  %v26 = vld [vmem:[%s0 + $0x30] sm:$0xf]
  %v27 = vld [vmem:[%s0 + $0x34] sm:$0xf]
  %v28 = vld [vmem:[%s0 + $0x38] sm:$0xf]
  %v29 = vld [vmem:[%s0 + $0x3c] sm:$0xf]
  %v30 = vld [vmem:[%s1] sm:$0xf]
  %v31 = vld [vmem:[%s1 + $0x4] sm:$0xf]
  %v32 = vld [vmem:[%s1 + $0x8] sm:$0xf]
  %v33 = vld [vmem:[%s1 + $0xc] sm:$0xf]
  %v34 = vld [vmem:[%s1 + $0x10] sm:$0xf]
  %v35 = vld [vmem:[%s1 + $0x14] sm:$0xf]
  %v36 = vld [vmem:[%s1 + $0x18] sm:$0xf]
  %v37 = vld [vmem:[%s1 + $0x1c] sm:$0xf]
  %v38 = vld [vmem:[%s1 + $0x20] sm:$0xf]
  %v39 = vld [vmem:[%s1 + $0x24] sm:$0xf]
  %v40 = vld [vmem:[%s1 + $0x28] sm:$0xf]
  %v41 = vld [vmem:[%s1 + $0x2c] sm:$0xf]
  %v42 = vld [vmem:[%s1 + $0x30] sm:$0xf]
  %v43 = vld [vmem:[%s1 + $0x34] sm:$0xf]
  %v44 = vld [vmem:[%s1 + $0x38] sm:$0xf]
  %v45 = vld [vmem:[%s1 + $0x3c] sm:$0xf]
  %v46 = vld [vmem:[%s2] sm:$0x1]
  %v48 = vperm.slane %v46, 0
  %v66 = vunpack.c.l.b16 %v14
  %v67 = vunpack.c.l.b16 %v15
  %v68 = vunpack.c.l.b16 %v16
  %v69 = vunpack.c.l.b16 %v17
  %v70 = vunpack.c.l.b16 %v18
  %v71 = vunpack.c.l.b16 %v19
  %v72 = vunpack.c.l.b16 %v20
  %v73 = vunpack.c.l.b16 %v21
  %v74 = vunpack.c.l.b16 %v22
  %v75 = vunpack.c.l.b16 %v23
  %v76 = vunpack.c.l.b16 %v24
  %v77 = vunpack.c.l.b16 %v25
  %v78 = vunpack.c.l.b16 %v26
  %v79 = vunpack.c.l.b16 %v27
  %v80 = vunpack.c.l.b16 %v28
  %v81 = vunpack.c.l.b16 %v29
  %v82 = vpack.c.b16 %v67, %v66
  %v83 = vpack.c.b16 %v69, %v68
  %v84 = vpack.c.b16 %v71, %v70
  %v85 = vpack.c.b16 %v73, %v72
  %v86 = vpack.c.b16 %v75, %v74
  %v87 = vpack.c.b16 %v77, %v76
  %v88 = vpack.c.b16 %v79, %v78
  %v89 = vpack.c.b16 %v81, %v80
  %v114 = vunpack.c.l.b16 %v30
  %v115 = vunpack.c.l.b16 %v31
  %v116 = vunpack.c.l.b16 %v32
  %v117 = vunpack.c.l.b16 %v33
  %v118 = vunpack.c.l.b16 %v34
  %v119 = vunpack.c.l.b16 %v35
  %v120 = vunpack.c.l.b16 %v36
  %v121 = vunpack.c.l.b16 %v37
  %v122 = vunpack.c.l.b16 %v38
  %v123 = vunpack.c.l.b16 %v39
  %v124 = vunpack.c.l.b16 %v40
  %v125 = vunpack.c.l.b16 %v41
  %v126 = vunpack.c.l.b16 %v42
  %v127 = vunpack.c.l.b16 %v43
  %v128 = vunpack.c.l.b16 %v44
  %v129 = vunpack.c.l.b16 %v45
  %v130 = vpack.c.b16 %v115, %v114
  %v131 = vpack.c.b16 %v117, %v116
  %v132 = vpack.c.b16 %v119, %v118
  %v133 = vpack.c.b16 %v121, %v120
  %v134 = vpack.c.b16 %v123, %v122
  %v135 = vpack.c.b16 %v125, %v124
  %v136 = vpack.c.b16 %v127, %v126
  %v137 = vpack.c.b16 %v129, %v128
  %146 = vmatpush.bf16.msra.mxu0 %v137
  %147 = vmatpush.bf16.msra.mxu0 %v136
  %148 = vmatpush.bf16.msra.mxu0 %v135
  %149 = vmatpush.bf16.msra.mxu0 %v134
  %150 = vmatpush.bf16.msra.mxu0 %v133
  %151 = vmatpush.bf16.msra.mxu0 %v132
  %152 = vmatpush.bf16.msra.mxu0 %v131
  %153 = vmatpush.bf16.msra.mxu0 %v130
  %154 = vmatmul.bf16.gmra.mxu0 %v82
  %v155 = vpop.f32.mrf.mxu0
  %v156 = vadd.f32 %v48, %v155
  %v157 = vpop.f32.mrf.mxu0
  %v158 = vadd.f32 %v48, %v157
  %159 = vmatmul.bf16.gmra.mxu0 %v83
  %v160 = vpop.f32.mrf.mxu0
  %v161 = vadd.f32 %v48, %v160
  %v162 = vpop.f32.mrf.mxu0
  %v163 = vadd.f32 %v48, %v162
  %164 = vmatmul.bf16.gmra.mxu0 %v84
  %v165 = vpop.f32.mrf.mxu0
  %v166 = vadd.f32 %v48, %v165
  %v167 = vpop.f32.mrf.mxu0
  %v168 = vadd.f32 %v48, %v167
  %169 = vmatmul.bf16.gmra.mxu0 %v85
  %v170 = vpop.f32.mrf.mxu0
  %v171 = vadd.f32 %v48, %v170
  %v172 = vpop.f32.mrf.mxu0
  %v173 = vadd.f32 %v48, %v172
  %174 = vmatmul.bf16.gmra.mxu0 %v86
  %v175 = vpop.f32.mrf.mxu0
  %v176 = vadd.f32 %v48, %v175
  %v177 = vpop.f32.mrf.mxu0
  %v178 = vadd.f32 %v48, %v177
  %179 = vmatmul.bf16.gmra.mxu0 %v87
  %v180 = vpop.f32.mrf.mxu0
  %v181 = vadd.f32 %v48, %v180
  %v182 = vpop.f32.mrf.mxu0
  %v183 = vadd.f32 %v48, %v182
  %184 = vmatmul.bf16.gmra.mxu0 %v88
  %v185 = vpop.f32.mrf.mxu0
  %v186 = vadd.f32 %v48, %v185
  %v187 = vpop.f32.mrf.mxu0
  %v188 = vadd.f32 %v48, %v187
  %189 = vmatmul.bf16.gmra.mxu0 %v89
  %v190 = vpop.f32.mrf.mxu0
  %v191 = vadd.f32 %v48, %v190
  %v192 = vpop.f32.mrf.mxu0
  %v193 = vadd.f32 %v48, %v192
  %194 = vdwg.mxu0
  %v195 = vpack.c.bf16 %v156, %v156
  %v196 = vpack.c.bf16 %v158, %v158
  %v197 = vpack.c.bf16 %v161, %v161
  %v198 = vpack.c.bf16 %v163, %v163
  %v199 = vpack.c.bf16 %v166, %v166
  %v200 = vpack.c.bf16 %v168, %v168
  %v201 = vpack.c.bf16 %v171, %v171
  %v202 = vpack.c.bf16 %v173, %v173
  %v203 = vpack.c.bf16 %v176, %v176
  %v204 = vpack.c.bf16 %v178, %v178
  %v205 = vpack.c.bf16 %v181, %v181
  %v206 = vpack.c.bf16 %v183, %v183
  %v207 = vpack.c.bf16 %v186, %v186
  %v208 = vpack.c.bf16 %v188, %v188
  %v209 = vpack.c.bf16 %v191, %v191
  %v210 = vpack.c.bf16 %v193, %v193
  %vm211 = vcmask 125952
  %212 = vst.msk [vmem:[%s3] sm:$0xf] %vm211, %v195
  %213 = vst.msk [vmem:[%s3 + $0x4] sm:$0xf] %vm211, %v196
  %214 = vst.msk [vmem:[%s3 + $0x8] sm:$0xf] %vm211, %v197
  %215 = vst.msk [vmem:[%s3 + $0xc] sm:$0xf] %vm211, %v198
  %216 = vst.msk [vmem:[%s3 + $0x10] sm:$0xf] %vm211, %v199
  %217 = vst.msk [vmem:[%s3 + $0x14] sm:$0xf] %vm211, %v200
  %218 = vst.msk [vmem:[%s3 + $0x18] sm:$0xf] %vm211, %v201
  %219 = vst.msk [vmem:[%s3 + $0x1c] sm:$0xf] %vm211, %v202
  %220 = vst.msk [vmem:[%s3 + $0x20] sm:$0xf] %vm211, %v203
  %221 = vst.msk [vmem:[%s3 + $0x24] sm:$0xf] %vm211, %v204
  %222 = vst.msk [vmem:[%s3 + $0x28] sm:$0xf] %vm211, %v205
  %223 = vst.msk [vmem:[%s3 + $0x2c] sm:$0xf] %vm211, %v206
  %224 = vst.msk [vmem:[%s3 + $0x30] sm:$0xf] %vm211, %v207
  %225 = vst.msk [vmem:[%s3 + $0x34] sm:$0xf] %vm211, %v208
  %226 = vst.msk [vmem:[%s3 + $0x38] sm:$0xf] %vm211, %v209
  %227 = vst.msk [vmem:[%s3 + $0x3c] sm:$0xf] %vm211, %v210
  // Predicated region
  $region14: #{_lambda_.9} parent=0 // pred_check
    _
  $region15: #{_lambda_.9} parent=0 // pred_check_branch
    %229 = sbr.rel (0) target = $region17
  $region16: #{_lambda_.9} parent=0 // pred_region
    _
  $region17: #{_lambda_.9} parent=0 // pred_fallthru
    _
  // Predicated region
  $region18: #{_lambda_.9} parent=0 // pred_check
    _
  $region19: #{_lambda_.9} parent=0 // pred_check_branch
    %231 = sbr.rel (0) target = $region21
  $region20: #{_lambda_.9} parent=0 // pred_region
    _
  $region21: #{_lambda_.9} parent=0 // pred_fallthru
    _

// kernel: _lambda_.10
$region0: #{_lambda_.10}
  #allocation0 [shape = 'u32[]', space=smem, size = 0x4, offset = 0x4, fixed_abs, tag = 'smem constant byte address 0x4 - core index']
  #allocation1 [shape = 'u32[72,128]{1,0:T(1,128)}', space=vmem, size = 0x9000, scoped, tag = 'internal scratch']
  %s0 = inlined_call_operand.vmem [shape: bf16[2,64,16], index: 0, kind: input, shape index: {}]
  %s1 = inlined_call_operand.vmem [shape: bf16[2,64,16], index: 1, kind: output, shape index: {}]
  %s2 = sld [smem:[#allocation0]]
  $region37: #{_lambda_.10} parent=0
    _
  %s4 = ssub.s32 1, %s2
  %s5 = scalar_select 0, %s4, %s2
  loop: start=0, step=1, limit=4
  $region2: #{_lambda_.10} parent=0 // loop_pre_header
    _
  $region3: #{_lambda_.10} parent=0 // loop_header
    %s7 = sphi 0, %s11
    %p8 = scmp.ge.s32.totalorder %s7, 4
    %s17 = sphi 0, %s19
    %s20 = sphi 0, %s17
    %s21 = sphi 0, %s20
    %s37 = sphi 0, %s21
    %s43 = sphi 0, %s45
    %s46 = sphi 0, %s43
    %s47 = sphi 0, %s46
    %s63 = sphi 0, %s47
  $region4: #{_lambda_.10} parent=0 // loop_header_branch
    %10 = sbr.rel (%p8) target = $region8
  $region5: #{_lambda_.10} parent=0 // loop_body
    %s12 = ssub.s32 %s7, 1
    %s13 = ssub.s32 %s7, 2
    %s14 = sadd.s32 %s7, 1
    %s15 = ssub.s32 %s7, %s14
    %p16 = scmp.eq.s32.totalorder %s15, 0
    %s18 = sadd.s32 %s17, 1
    %s19 = scalar_select %p16, %s17, %s18
    %p22 = pneg %p16
    %p23 = scmp.eq.s32.totalorder %s7, 1
    %p24 = por %p22, %p23
    %p25 = scmp.ne.s32.totalorder %s17, %s20
    %p26 = scmp.eq.s32.totalorder %s7, 0
    %p27 = por %p25, %p26
    %p28 = scmp.ne.s32.totalorder %s17, %s20
    %p29 = scmp.eq.s32.totalorder %s12, 1
    %p30 = por %p28, %p29
    %p31 = scmp.ne.s32.totalorder %s20, %s21
    %p32 = scmp.eq.s32.totalorder %s12, 0
    %p33 = por %p31, %p32
    %p34 = scmp.ne.s32.totalorder %s20, %s21
    %p35 = scmp.eq.s32.totalorder %s13, 1
    %p36 = por %p34, %p35
    %p38 = scmp.ne.s32.totalorder %s21, %s37
    %p39 = scmp.eq.s32.totalorder %s13, 0
    %p40 = por %p38, %p39
    %s41 = ssub.s32 %s7, %s14
    %p42 = scmp.eq.s32.totalorder %s41, 0
    %s44 = sadd.s32 %s43, 1
    %s45 = scalar_select %p42, %s43, %s44
    %p48 = pneg %p42
    %p49 = scmp.eq.s32.totalorder %s7, 1
    %p50 = por %p48, %p49
    %p51 = scmp.ne.s32.totalorder %s43, %s46
    %p52 = scmp.eq.s32.totalorder %s7, 0
    %p53 = por %p51, %p52
    %p54 = scmp.ne.s32.totalorder %s43, %s46
    %p55 = scmp.eq.s32.totalorder %s12, 1
    %p56 = por %p54, %p55
    %p57 = scmp.ne.s32.totalorder %s46, %s47
    %p58 = scmp.eq.s32.totalorder %s12, 0
    %p59 = por %p57, %p58
    %p60 = scmp.ne.s32.totalorder %s46, %s47
    %p61 = scmp.eq.s32.totalorder %s13, 1
    %p62 = por %p60, %p61
    %p64 = scmp.ne.s32.totalorder %s47, %s63
    %p65 = scmp.eq.s32.totalorder %s13, 0
    %p66 = por %p64, %p65
    %p67 = scmp.le.s32.totalorder 1, %s7
    %p68 = scmp.lt.s32.totalorder %s7, 3
    %p69 = pnand %p67, %p68
    %p70 = pneg %p69
    // Predicated region
    $region9: #{_lambda_.10} parent=5 // pred_check
      _
    $region10: #{_lambda_.10} parent=5 // pred_check_branch
      %72 = sbr.rel (%p69) target = $region12
    $region11: #{_lambda_.10} parent=5 // pred_region
      %s73 = ssub.s32 %s7, 1
    $region12: #{_lambda_.10} parent=5 // pred_fallthru
      _
    %p74 = scmp.lt.s32.totalorder %s7, 2
    // Predicated region
    $region13: #{_lambda_.10} parent=5 // pred_check
      %p75 = pneg %p74
    $region14: #{_lambda_.10} parent=5 // pred_check_branch
      %77 = sbr.rel (%p75) target = $region16
    $region15: #{_lambda_.10} parent=5 // pred_region
      // Predicated region
      $region17: #{_lambda_.10} parent=15 // pred_check
        %p78 = pneg %p27
      $region18: #{_lambda_.10} parent=15 // pred_check_branch
        %80 = sbr.rel (%p78) target = $region20
      $region19: #{_lambda_.10} parent=15 // pred_region
        %p81 = scmp.lt.s32.totalorder %s7, 1
        %s82 = scalar_select %p81, %s7, 1
        %s83 = smul.addr %s82, 8
        %s84 = smul.addr %s83, 4
        %s85 = scalar_lea.vmem %s0, %s84
      $region20: #{_lambda_.10} parent=15 // pred_fallthru
        _
    $region16: #{_lambda_.10} parent=5 // pred_fallthru
      _
    %p86 = scmp.le.s32.totalorder 1, %s7
    %p87 = scmp.lt.s32.totalorder %s7, 3
    %p88 = pnand %p86, %p87
    %p89 = pneg %p88
    // Predicated region
    $region21: #{_lambda_.10} parent=5 // pred_check
      _
    $region22: #{_lambda_.10} parent=5 // pred_check_branch
      %91 = sbr.rel (%p88) target = $region24
    $region23: #{_lambda_.10} parent=5 // pred_region
      %s92 = ssub.s32 %s7, 1
      %p93 = scmp.lt.s32.totalorder %s12, 1
      %s94 = scalar_select %p93, %s12, 1
      %s95 = smul.addr %s94, 8
      %s96 = smul.addr %s95, 4
      %s97 = scalar_lea.vmem %s0, %s96
      %p98 = pneg %p33
      %p99 = pneg %p30
      %p100 = pneg %p59
      %p101 = pneg %p56
      %p102 = scmp.lt.s32.totalorder %s12, 1
      %s103 = scalar_select %p102, %s12, 1
      %s104 = smul.addr %s103, 8
      %s105 = smul.addr %s104, 4
      %s106 = scalar_lea.vmem %s1, %s105
      %p107 = scmp.lt.s32.totalorder %s12, 1
      %s108 = scalar_select %p107, %s12, 1
      %s109 = smul.addr %s108, 8
      %s110 = smul.addr %s109, 4
      %s111 = scalar_lea.vmem %s0, %s110
      %p112 = scmp.lt.s32.totalorder %s12, 1
      %s113 = scalar_select %p112, %s12, 1
      %s114 = smul.addr %s113, 8
      %s115 = smul.addr %s114, 4
      %s116 = scalar_lea.vmem %s1, %s115
      %v117 = vld [vmem:[%s111] sm:$0xf]
      %v118 = vld [vmem:[%s111 + $0x4] sm:$0xf]
      %v119 = vld [vmem:[%s111 + $0x8] sm:$0xf]
      %v120 = vld [vmem:[%s111 + $0xc] sm:$0xf]
      %v121 = vld [vmem:[%s111 + $0x10] sm:$0xf]
      %v122 = vld [vmem:[%s111 + $0x14] sm:$0xf]
      %v123 = vld [vmem:[%s111 + $0x18] sm:$0xf]
      %v124 = vld [vmem:[%s111 + $0x1c] sm:$0xf]
      %v125 = vunpack.c.l.bf16 %v117
      %v126 = vunpack.c.l.bf16 %v118
      %v127 = vunpack.c.l.bf16 %v119
      %v128 = vunpack.c.l.bf16 %v120
      %v129 = vunpack.c.l.bf16 %v121
      %v130 = vunpack.c.l.bf16 %v122
      %v131 = vunpack.c.l.bf16 %v123
      %v132 = vunpack.c.l.bf16 %v124
      %vm133 = vcmask 130048
      %v134 = vsel %vm133, %v125, 0.0
      %v135 = vsel %vm133, %v126, 0.0
      %v136 = vadd.f32 %v134, %v135
      %v137 = vsel %vm133, %v127, 0.0
      %v138 = vadd.f32 %v136, %v137
      %v139 = vsel %vm133, %v128, 0.0
      %v140 = vadd.f32 %v138, %v139
      %v141 = vsel %vm133, %v129, 0.0
      %v142 = vadd.f32 %v140, %v141
      %v143 = vsel %vm133, %v130, 0.0
      %v144 = vadd.f32 %v142, %v143
      %v145 = vsel %vm133, %v131, 0.0
      %v146 = vadd.f32 %v144, %v145
      %v147 = vsel %vm133, %v132, 0.0
      %v148 = vadd.f32 %v146, %v147
      %v149 = vrot.slane %v148, 4
      %v150 = vadd.f32 %v148, %v149
      %v151 = vrot.slane %v150, 2
      %v152 = vadd.f32 %v150, %v151
      %v153 = vrot.slane %v152, 1
      %v154 = vadd.f32 %v152, %v153
      %v155 = vmul.f32 %v125, %v125
      %v156 = vmul.f32 %v126, %v126
      %v157 = vmul.f32 %v127, %v127
      %v158 = vmul.f32 %v128, %v128
      %v159 = vmul.f32 %v129, %v129
      %v160 = vmul.f32 %v130, %v130
      %v161 = vmul.f32 %v131, %v131
      %v162 = vmul.f32 %v132, %v132
      %v163 = vsel %vm133, %v155, 0.0
      %v164 = vsel %vm133, %v156, 0.0
      %v165 = vadd.f32 %v163, %v164
      %v166 = vsel %vm133, %v157, 0.0
      %v167 = vadd.f32 %v165, %v166
      %v168 = vsel %vm133, %v158, 0.0
      %v169 = vadd.f32 %v167, %v168
      %v170 = vsel %vm133, %v159, 0.0
      %v171 = vadd.f32 %v169, %v170
      %v172 = vsel %vm133, %v160, 0.0
      %v173 = vadd.f32 %v171, %v172
      %v174 = vsel %vm133, %v161, 0.0
      %v175 = vadd.f32 %v173, %v174
      %v176 = vsel %vm133, %v162, 0.0
      %v177 = vadd.f32 %v175, %v176
      %v178 = vrot.slane %v177, 4
      %v179 = vadd.f32 %v177, %v178
      %v180 = vrot.slane %v179, 2
      %v181 = vadd.f32 %v179, %v180
      %v182 = vrot.slane %v181, 1
      %v183 = vadd.f32 %v181, %v182
      %v184 = vmul.f32 %v154, 0.015625
      %v185 = vmul.f32 %v183, 0.015625
      %v186 = vmul.f32 %v184, %v184
      %v187 = vsub.f32 %v185, %v186
      %v188 = vmax.f32 %v187, 0.0
      %v189 = vsub.f32 %v125, %v184
      %v190 = vsub.f32 %v126, %v184
      %v191 = vsub.f32 %v127, %v184
      %v192 = vsub.f32 %v128, %v184
      %v193 = vsub.f32 %v129, %v184
      %v194 = vsub.f32 %v130, %v184
      %v195 = vsub.f32 %v131, %v184
      %v196 = vsub.f32 %v132, %v184
      %v197 = vadd.f32 %v188, 1e-05
      %v198 = vrsqrt.pop %v197
      %v199 = vmul.f32 %v198, %v197
      %v200 = vmul.f32 %v199, %v198
      %v201 = vmul.f32 0.5, %v200
      %v202 = vsub.f32 1.5, %v201
      %v203 = vmul.f32 %v198, %v202
      %vm204 = vweird.f32 %v197
      %vm205 = vweird.f32 %v198
      %vm206 = vmor %vm204, %vm205
      %v207 = vsel %vm206, %v198, %v203
      %v208 = vmul.f32 %v189, %v207
      %v209 = vmul.f32 %v190, %v207
      %v210 = vmul.f32 %v191, %v207
      %v211 = vmul.f32 %v192, %v207
      %v212 = vmul.f32 %v193, %v207
      %v213 = vmul.f32 %v194, %v207
      %v214 = vmul.f32 %v195, %v207
      %v215 = vmul.f32 %v196, %v207
      %vm216 = vcmp.ge.f32.partialorder %v208, 0.0
      %vm217 = vcmp.ge.f32.partialorder %v209, 0.0
      %vm218 = vcmp.ge.f32.partialorder %v210, 0.0
      %vm219 = vcmp.ge.f32.partialorder %v211, 0.0
      %vm220 = vcmp.ge.f32.partialorder %v212, 0.0
      %vm221 = vcmp.ge.f32.partialorder %v213, 0.0
      %vm222 = vcmp.ge.f32.partialorder %v214, 0.0
      %vm223 = vcmp.ge.f32.partialorder %v215, 0.0
      %v224 = vmul.f32 %v208, 0.2
      %v225 = vmul.f32 %v209, 0.2
      %v226 = vmul.f32 %v210, 0.2
      %v227 = vmul.f32 %v211, 0.2
      %v228 = vmul.f32 %v212, 0.2
      %v229 = vmul.f32 %v213, 0.2
      %v230 = vmul.f32 %v214, 0.2
      %v231 = vmul.f32 %v215, 0.2
      %v232 = vsel %vm216, %v208, %v224
      %v233 = vsel %vm217, %v209, %v225
      %v234 = vsel %vm218, %v210, %v226
      %v235 = vsel %vm219, %v211, %v227
      %v236 = vsel %vm220, %v212, %v228
      %v237 = vsel %vm221, %v213, %v229
      %v238 = vsel %vm222, %v214, %v230
      %v239 = vsel %vm223, %v215, %v231
      %v240 = vpack.c.bf16 %v232, %v232
      %v241 = vpack.c.bf16 %v233, %v233
      %v242 = vpack.c.bf16 %v234, %v234
      %v243 = vpack.c.bf16 %v235, %v235
      %v244 = vpack.c.bf16 %v236, %v236
      %v245 = vpack.c.bf16 %v237, %v237
      %v246 = vpack.c.bf16 %v238, %v238
      %v247 = vpack.c.bf16 %v239, %v239
      %vm248 = vcmask 125952
      %249 = vst.msk [vmem:[%s116] sm:$0xf] %vm248, %v240
      %250 = vst.msk [vmem:[%s116 + $0x4] sm:$0xf] %vm248, %v241
      %251 = vst.msk [vmem:[%s116 + $0x8] sm:$0xf] %vm248, %v242
      %252 = vst.msk [vmem:[%s116 + $0xc] sm:$0xf] %vm248, %v243
      %253 = vst.msk [vmem:[%s116 + $0x10] sm:$0xf] %vm248, %v244
      %254 = vst.msk [vmem:[%s116 + $0x14] sm:$0xf] %vm248, %v245
      %255 = vst.msk [vmem:[%s116 + $0x18] sm:$0xf] %vm248, %v246
      %256 = vst.msk [vmem:[%s116 + $0x1c] sm:$0xf] %vm248, %v247
      %p257 = scmp.lt.s32.totalorder %s12, 1
      %s258 = scalar_select %p257, %s12, 1
      %s259 = smul.addr %s258, 8
      %s260 = smul.addr %s259, 4
      %s261 = scalar_lea.vmem %s1, %s260
      // Predicated region
      $region25: #{_lambda_.10} parent=23 // pred_check
        %p262 = pneg %p56
      $region26: #{_lambda_.10} parent=23 // pred_check_branch
        %264 = sbr.rel (%p262) target = $region28
      $region27: #{_lambda_.10} parent=23 // pred_region
        _
      $region28: #{_lambda_.10} parent=23 // pred_fallthru
        _
    $region24: #{_lambda_.10} parent=5 // pred_fallthru
      _
    %p265 = scmp.le.s32.totalorder 2, %s7
    // Predicated region
    $region29: #{_lambda_.10} parent=5 // pred_check
      %p266 = pneg %p265
    $region30: #{_lambda_.10} parent=5 // pred_check_branch
      %268 = sbr.rel (%p266) target = $region32
    $region31: #{_lambda_.10} parent=5 // pred_region
      %s269 = ssub.s32 %s7, 2
      // Predicated region
      $region33: #{_lambda_.10} parent=31 // pred_check
        %p270 = pneg %p62
      $region34: #{_lambda_.10} parent=31 // pred_check_branch
        %272 = sbr.rel (%p270) target = $region36
      $region35: #{_lambda_.10} parent=31 // pred_region
        %p273 = scmp.lt.s32.totalorder %s13, 1
        %s274 = scalar_select %p273, %s13, 1
        %s275 = smul.addr %s274, 8
        %s276 = smul.addr %s275, 4
        %s277 = scalar_lea.vmem %s1, %s276
      $region36: #{_lambda_.10} parent=31 // pred_fallthru
        _
    $region32: #{_lambda_.10} parent=5 // pred_fallthru
      _
  $region6: #{_lambda_.10} parent=0 // loop_footer
    %s11 = sadd.s32 1, %s7
  $region7: #{_lambda_.10} parent=0 // loop_footer_branch
    %6 = sbr.rel target = $region3
  $region8: #{_lambda_.10} parent=0 // loop_exit
    _

// kernel: _lambda_.11
$region0: #{_lambda_.11}
  #allocation0 [shape = 'u32[]', space=smem, size = 0x4, offset = 0x4, fixed_abs, tag = 'smem constant byte address 0x4 - core index']
  #allocation1 [shape = 'u32[72,128]{1,0:T(1,128)}', space=vmem, size = 0x9000, scoped, tag = 'internal scratch']
  %s0 = inlined_call_operand.vmem [shape: bf16[32,256], index: 0, kind: input, shape index: {}]
  %s1 = inlined_call_operand.vmem [shape: bf16[256,64], index: 1, kind: input, shape index: {}]
  %s2 = inlined_call_operand.vmem [shape: f32[1,64], index: 2, kind: input, shape index: {}]
  %s3 = inlined_call_operand.vmem [shape: bf16[32,64], index: 3, kind: output, shape index: {}]
  %s4 = sld [smem:[#allocation0]]
  $region22: #{_lambda_.11} parent=0
    _
  %s6 = ssub.s32 1, %s4
  %s7 = scalar_select 0, %s6, %s4
  // Predicated region
  $region2: #{_lambda_.11} parent=0 // pred_check
    _
  $region3: #{_lambda_.11} parent=0 // pred_check_branch
    %9 = sbr.rel (0) target = $region5
  $region4: #{_lambda_.11} parent=0 // pred_region
    _
  $region5: #{_lambda_.11} parent=0 // pred_fallthru
    _
  // Predicated region
  $region6: #{_lambda_.11} parent=0 // pred_check
    _
  $region7: #{_lambda_.11} parent=0 // pred_check_branch
    %11 = sbr.rel (0) target = $region9
  $region8: #{_lambda_.11} parent=0 // pred_region
    _
  $region9: #{_lambda_.11} parent=0 // pred_fallthru
    _
  // Predicated region
  $region10: #{_lambda_.11} parent=0 // pred_check
    _
  $region11: #{_lambda_.11} parent=0 // pred_check_branch
    %13 = sbr.rel (0) target = $region13
  $region12: #{_lambda_.11} parent=0 // pred_region
    _
  $region13: #{_lambda_.11} parent=0 // pred_fallthru
    _
  %v14 = vld [vmem:[%s0] sm:$0xff]
  %v15 = vld [vmem:[%s0 + $0x8] sm:$0xff]
  %v16 = vld [vmem:[%s0 + $0x10] sm:$0xff]
  %v17 = vld [vmem:[%s0 + $0x18] sm:$0xff]
  %v18 = vld [vmem:[%s1] sm:$0xf]
  %v19 = vld [vmem:[%s1 + $0x4] sm:$0xf]
  %v20 = vld [vmem:[%s1 + $0x8] sm:$0xf]
  %v21 = vld [vmem:[%s1 + $0xc] sm:$0xf]
  %v22 = vld [vmem:[%s1 + $0x10] sm:$0xf]
  %v23 = vld [vmem:[%s1 + $0x14] sm:$0xf]
  %v24 = vld [vmem:[%s1 + $0x18] sm:$0xf]
  %v25 = vld [vmem:[%s1 + $0x1c] sm:$0xf]
  %v26 = vld [vmem:[%s1 + $0x20] sm:$0xf]
  %v27 = vld [vmem:[%s1 + $0x24] sm:$0xf]
  %v28 = vld [vmem:[%s1 + $0x28] sm:$0xf]
  %v29 = vld [vmem:[%s1 + $0x2c] sm:$0xf]
  %v30 = vld [vmem:[%s1 + $0x30] sm:$0xf]
  %v31 = vld [vmem:[%s1 + $0x34] sm:$0xf]
  %v32 = vld [vmem:[%s1 + $0x38] sm:$0xf]
  %v33 = vld [vmem:[%s1 + $0x3c] sm:$0xf]
  %v34 = vld [vmem:[%s1 + $0x40] sm:$0xf]
  %v35 = vld [vmem:[%s1 + $0x44] sm:$0xf]
  %v36 = vld [vmem:[%s1 + $0x48] sm:$0xf]
  %v37 = vld [vmem:[%s1 + $0x4c] sm:$0xf]
  %v38 = vld [vmem:[%s1 + $0x50] sm:$0xf]
  %v39 = vld [vmem:[%s1 + $0x54] sm:$0xf]
  %v40 = vld [vmem:[%s1 + $0x58] sm:$0xf]
  %v41 = vld [vmem:[%s1 + $0x5c] sm:$0xf]
  %v42 = vld [vmem:[%s1 + $0x60] sm:$0xf]
  %v43 = vld [vmem:[%s1 + $0x64] sm:$0xf]
  %v44 = vld [vmem:[%s1 + $0x68] sm:$0xf]
  %v45 = vld [vmem:[%s1 + $0x6c] sm:$0xf]
  %v46 = vld [vmem:[%s1 + $0x70] sm:$0xf]
  %v47 = vld [vmem:[%s1 + $0x74] sm:$0xf]
  %v48 = vld [vmem:[%s1 + $0x78] sm:$0xf]
  %v49 = vld [vmem:[%s1 + $0x7c] sm:$0xf]
  %v50 = vld [vmem:[%s2] sm:$0x1]
  %v52 = vperm.slane %v50, 0
  %v58 = vunpack.c.l.b16 %v14
  %v59 = vunpack.c.h.b16 %v14
  %v60 = vunpack.c.l.b16 %v15
  %v61 = vunpack.c.h.b16 %v15
  %v62 = vunpack.c.l.b16 %v16
  %v63 = vunpack.c.h.b16 %v16
  %v64 = vunpack.c.l.b16 %v17
  %v65 = vunpack.c.h.b16 %v17
  %v66 = vpack.c.b16 %v60, %v58
  %v67 = vpack.c.b16 %v61, %v59
  %v68 = vpack.c.b16 %v64, %v62
  %v69 = vpack.c.b16 %v65, %v63
  %v106 = vunpack.c.l.b16 %v18
  %v107 = vunpack.c.l.b16 %v19
  %v108 = vunpack.c.l.b16 %v20
  %v109 = vunpack.c.l.b16 %v21
  %v110 = vunpack.c.l.b16 %v22
  %v111 = vunpack.c.l.b16 %v23
  %v112 = vunpack.c.l.b16 %v24
  %v113 = vunpack.c.l.b16 %v25
  %v114 = vunpack.c.l.b16 %v26
  %v115 = vunpack.c.l.b16 %v27
  %v116 = vunpack.c.l.b16 %v28
  %v117 = vunpack.c.l.b16 %v29
  %v118 = vunpack.c.l.b16 %v30
  %v119 = vunpack.c.l.b16 %v31
  %v120 = vunpack.c.l.b16 %v32
  %v121 = vunpack.c.l.b16 %v33
  %v122 = vunpack.c.l.b16 %v34
  %v123 = vunpack.c.l.b16 %v35
  %v124 = vunpack.c.l.b16 %v36
  %v125 = vunpack.c.l.b16 %v37
  %v126 = vunpack.c.l.b16 %v38
  %v127 = vunpack.c.l.b16 %v39
  %v128 = vunpack.c.l.b16 %v40
  %v129 = vunpack.c.l.b16 %v41
  %v130 = vunpack.c.l.b16 %v42
  %v131 = vunpack.c.l.b16 %v43
  %v132 = vunpack.c.l.b16 %v44
  %v133 = vunpack.c.l.b16 %v45
  %v134 = vunpack.c.l.b16 %v46
  %v135 = vunpack.c.l.b16 %v47
  %v136 = vunpack.c.l.b16 %v48
  %v137 = vunpack.c.l.b16 %v49
  %v138 = vpack.c.b16 %v107, %v106
  %v139 = vpack.c.b16 %v109, %v108
  %v140 = vpack.c.b16 %v111, %v110
  %v141 = vpack.c.b16 %v113, %v112
  %v142 = vpack.c.b16 %v115, %v114
  %v143 = vpack.c.b16 %v117, %v116
  %v144 = vpack.c.b16 %v119, %v118
  %v145 = vpack.c.b16 %v121, %v120
  %v146 = vpack.c.b16 %v123, %v122
  %v147 = vpack.c.b16 %v125, %v124
  %v148 = vpack.c.b16 %v127, %v126
  %v149 = vpack.c.b16 %v129, %v128
  %v150 = vpack.c.b16 %v131, %v130
  %v151 = vpack.c.b16 %v133, %v132
  %v152 = vpack.c.b16 %v135, %v134
  %v153 = vpack.c.b16 %v137, %v136
  %170 = vmatpush.bf16.msra.mxu0 %v145
  %171 = vmatpush.bf16.msra.mxu0 %v144
  %172 = vmatpush.bf16.msra.mxu0 %v143
  %173 = vmatpush.bf16.msra.mxu0 %v142
  %174 = vmatpush.bf16.msra.mxu0 %v141
  %175 = vmatpush.bf16.msra.mxu0 %v140
  %176 = vmatpush.bf16.msra.mxu0 %v139
  %177 = vmatpush.bf16.msra.mxu0 %v138
  %178 = vmatmul.bf16.gmra.mxu0 %v66
  %v179 = vpop.f32.mrf.mxu0
  %v180 = vadd.f32 %v52, %v179
  %v181 = vpop.f32.mrf.mxu0
  %v182 = vadd.f32 %v52, %v181
  %183 = vmatmul.bf16.gmra.mxu0 %v68
  %v184 = vpop.f32.mrf.mxu0
  %v185 = vadd.f32 %v52, %v184
  %v186 = vpop.f32.mrf.mxu0
  %v187 = vadd.f32 %v52, %v186
  %188 = vdwg.mxu0
  %189 = vmatpush.bf16.msra.mxu0 %v153
  %190 = vmatpush.bf16.msra.mxu0 %v152
  %191 = vmatpush.bf16.msra.mxu0 %v151
  %192 = vmatpush.bf16.msra.mxu0 %v150
  %193 = vmatpush.bf16.msra.mxu0 %v149
  %194 = vmatpush.bf16.msra.mxu0 %v148
  %195 = vmatpush.bf16.msra.mxu0 %v147
  %196 = vmatpush.bf16.msra.mxu0 %v146
  %197 = vmatmul.bf16.gmra.mxu0 %v67
  %v198 = vpop.f32.mrf.mxu0
  %v199 = vadd.f32 %v180, %v198
  %v200 = vpop.f32.mrf.mxu0
  %v201 = vadd.f32 %v182, %v200
  %202 = vmatmul.bf16.gmra.mxu0 %v69
  %v203 = vpop.f32.mrf.mxu0
  %v204 = vadd.f32 %v185, %v203
  %v205 = vpop.f32.mrf.mxu0
  %v206 = vadd.f32 %v187, %v205
  %207 = vdwg.mxu0
  %v208 = vpack.c.bf16 %v199, %v199
  %v209 = vpack.c.bf16 %v201, %v201
  %v210 = vpack.c.bf16 %v204, %v204
  %v211 = vpack.c.bf16 %v206, %v206
  %vm212 = vcmask 519168
  %213 = vst.msk [vmem:[%s3] sm:$0xf] %vm212, %v208
  %214 = vst.msk [vmem:[%s3 + $0x4] sm:$0xf] %vm212, %v209
  %215 = vst.msk [vmem:[%s3 + $0x8] sm:$0xf] %vm212, %v210
  %216 = vst.msk [vmem:[%s3 + $0xc] sm:$0xf] %vm212, %v211
  // Predicated region
  $region14: #{_lambda_.11} parent=0 // pred_check
    _
  $region15: #{_lambda_.11} parent=0 // pred_check_branch
    %218 = sbr.rel (0) target = $region17
  $region16: #{_lambda_.11} parent=0 // pred_region
    _
  $region17: #{_lambda_.11} parent=0 // pred_fallthru
    _
  // Predicated region
  $region18: #{_lambda_.11} parent=0 // pred_check
    _
  $region19: #{_lambda_.11} parent=0 // pred_check_branch
    %220 = sbr.rel (0) target = $region21
  $region20: #{_lambda_.11} parent=0 // pred_region
    _
  $region21: #{_lambda_.11} parent=0 // pred_fallthru
    _

// kernel: _lambda_.12
$region0: #{_lambda_.12}
  #allocation0 [shape = 'u32[]', space=smem, size = 0x4, offset = 0x4, fixed_abs, tag = 'smem constant byte address 0x4 - core index']
  #allocation1 [shape = 'u32[72,128]{1,0:T(1,128)}', space=vmem, size = 0x9000, scoped, tag = 'internal scratch']
  %s0 = inlined_call_operand.vmem [shape: bf16[2,16,64], index: 0, kind: input, shape index: {}]
  %s1 = inlined_call_operand.vmem [shape: bf16[2,16,64], index: 1, kind: output, shape index: {}]
  %s2 = sld [smem:[#allocation0]]
  $region37: #{_lambda_.12} parent=0
    _
  %s4 = ssub.s32 1, %s2
  %s5 = scalar_select 0, %s4, %s2
  loop: start=0, step=1, limit=4
  $region2: #{_lambda_.12} parent=0 // loop_pre_header
    _
  $region3: #{_lambda_.12} parent=0 // loop_header
    %s7 = sphi 0, %s11
    %p8 = scmp.ge.s32.totalorder %s7, 4
    %s17 = sphi 0, %s19
    %s20 = sphi 0, %s17
    %s21 = sphi 0, %s20
    %s37 = sphi 0, %s21
    %s43 = sphi 0, %s45
    %s46 = sphi 0, %s43
    %s47 = sphi 0, %s46
    %s63 = sphi 0, %s47
  $region4: #{_lambda_.12} parent=0 // loop_header_branch
    %10 = sbr.rel (%p8) target = $region8
  $region5: #{_lambda_.12} parent=0 // loop_body
    %s12 = ssub.s32 %s7, 1
    %s13 = ssub.s32 %s7, 2
    %s14 = sadd.s32 %s7, 1
    %s15 = ssub.s32 %s7, %s14
    %p16 = scmp.eq.s32.totalorder %s15, 0
    %s18 = sadd.s32 %s17, 1
    %s19 = scalar_select %p16, %s17, %s18
    %p22 = pneg %p16
    %p23 = scmp.eq.s32.totalorder %s7, 1
    %p24 = por %p22, %p23
    %p25 = scmp.ne.s32.totalorder %s17, %s20
    %p26 = scmp.eq.s32.totalorder %s7, 0
    %p27 = por %p25, %p26
    %p28 = scmp.ne.s32.totalorder %s17, %s20
    %p29 = scmp.eq.s32.totalorder %s12, 1
    %p30 = por %p28, %p29
    %p31 = scmp.ne.s32.totalorder %s20, %s21
    %p32 = scmp.eq.s32.totalorder %s12, 0
    %p33 = por %p31, %p32
    %p34 = scmp.ne.s32.totalorder %s20, %s21
    %p35 = scmp.eq.s32.totalorder %s13, 1
    %p36 = por %p34, %p35
    %p38 = scmp.ne.s32.totalorder %s21, %s37
    %p39 = scmp.eq.s32.totalorder %s13, 0
    %p40 = por %p38, %p39
    %s41 = ssub.s32 %s7, %s14
    %p42 = scmp.eq.s32.totalorder %s41, 0
    %s44 = sadd.s32 %s43, 1
    %s45 = scalar_select %p42, %s43, %s44
    %p48 = pneg %p42
    %p49 = scmp.eq.s32.totalorder %s7, 1
    %p50 = por %p48, %p49
    %p51 = scmp.ne.s32.totalorder %s43, %s46
    %p52 = scmp.eq.s32.totalorder %s7, 0
    %p53 = por %p51, %p52
    %p54 = scmp.ne.s32.totalorder %s43, %s46
    %p55 = scmp.eq.s32.totalorder %s12, 1
    %p56 = por %p54, %p55
    %p57 = scmp.ne.s32.totalorder %s46, %s47
    %p58 = scmp.eq.s32.totalorder %s12, 0
    %p59 = por %p57, %p58
    %p60 = scmp.ne.s32.totalorder %s46, %s47
    %p61 = scmp.eq.s32.totalorder %s13, 1
    %p62 = por %p60, %p61
    %p64 = scmp.ne.s32.totalorder %s47, %s63
    %p65 = scmp.eq.s32.totalorder %s13, 0
    %p66 = por %p64, %p65
    %p67 = scmp.le.s32.totalorder 1, %s7
    %p68 = scmp.lt.s32.totalorder %s7, 3
    %p69 = pnand %p67, %p68
    %p70 = pneg %p69
    // Predicated region
    $region9: #{_lambda_.12} parent=5 // pred_check
      _
    $region10: #{_lambda_.12} parent=5 // pred_check_branch
      %72 = sbr.rel (%p69) target = $region12
    $region11: #{_lambda_.12} parent=5 // pred_region
      %s73 = ssub.s32 %s7, 1
    $region12: #{_lambda_.12} parent=5 // pred_fallthru
      _
    %p74 = scmp.lt.s32.totalorder %s7, 2
    // Predicated region
    $region13: #{_lambda_.12} parent=5 // pred_check
      %p75 = pneg %p74
    $region14: #{_lambda_.12} parent=5 // pred_check_branch
      %77 = sbr.rel (%p75) target = $region16
    $region15: #{_lambda_.12} parent=5 // pred_region
      // Predicated region
      $region17: #{_lambda_.12} parent=15 // pred_check
        %p78 = pneg %p27
      $region18: #{_lambda_.12} parent=15 // pred_check_branch
        %80 = sbr.rel (%p78) target = $region20
      $region19: #{_lambda_.12} parent=15 // pred_region
        %p81 = scmp.lt.s32.totalorder %s7, 1
        %s82 = scalar_select %p81, %s7, 1
        %s83 = smul.addr %s82, 2
        %s84 = smul.addr %s83, 4
        %s85 = scalar_lea.vmem %s0, %s84
      $region20: #{_lambda_.12} parent=15 // pred_fallthru
        _
    $region16: #{_lambda_.12} parent=5 // pred_fallthru
      _
    %p86 = scmp.le.s32.totalorder 1, %s7
    %p87 = scmp.lt.s32.totalorder %s7, 3
    %p88 = pnand %p86, %p87
    %p89 = pneg %p88
    // Predicated region
    $region21: #{_lambda_.12} parent=5 // pred_check
      _
    $region22: #{_lambda_.12} parent=5 // pred_check_branch
      %91 = sbr.rel (%p88) target = $region24
    $region23: #{_lambda_.12} parent=5 // pred_region
      %s92 = ssub.s32 %s7, 1
      %p93 = scmp.lt.s32.totalorder %s12, 1
      %s94 = scalar_select %p93, %s12, 1
      %s95 = smul.addr %s94, 2
      %s96 = smul.addr %s95, 4
      %s97 = scalar_lea.vmem %s0, %s96
      %p98 = pneg %p33
      %p99 = pneg %p30
      %p100 = pneg %p59
      %p101 = pneg %p56
      %p102 = scmp.lt.s32.totalorder %s12, 1
      %s103 = scalar_select %p102, %s12, 1
      %s104 = smul.addr %s103, 2
      %s105 = smul.addr %s104, 4
      %s106 = scalar_lea.vmem %s1, %s105
      %p107 = scmp.lt.s32.totalorder %s12, 1
      %s108 = scalar_select %p107, %s12, 1
      %s109 = smul.addr %s108, 2
      %s110 = smul.addr %s109, 4
      %s111 = scalar_lea.vmem %s0, %s110
      %p112 = scmp.lt.s32.totalorder %s12, 1
      %s113 = scalar_select %p112, %s12, 1
      %s114 = smul.addr %s113, 2
      %s115 = smul.addr %s114, 4
      %s116 = scalar_lea.vmem %s1, %s115
      %v117 = vld [vmem:[%s111] sm:$0xf]
      %v118 = vld [vmem:[%s111 + $0x4] sm:$0xf]
      %v119 = vunpack.c.l.bf16 %v117
      %v120 = vunpack.c.l.bf16 %v118
      %vm121 = vcmask 523264
      %v122 = vsel %vm121, %v119, 0.0
      %v123 = vsel %vm121, %v120, 0.0
      %v124 = vadd.f32 %v122, %v123
      %v125 = vrot.slane %v124, 4
      %v126 = vadd.f32 %v124, %v125
      %v127 = vrot.slane %v126, 2
      %v128 = vadd.f32 %v126, %v127
      %v129 = vrot.slane %v128, 1
      %v130 = vadd.f32 %v128, %v129
      %v131 = vmul.f32 %v119, %v119
      %v132 = vmul.f32 %v120, %v120
      %v133 = vsel %vm121, %v131, 0.0
      %v134 = vsel %vm121, %v132, 0.0
      %v135 = vadd.f32 %v133, %v134
      %v136 = vrot.slane %v135, 4
      %v137 = vadd.f32 %v135, %v136
      %v138 = vrot.slane %v137, 2
      %v139 = vadd.f32 %v137, %v138
      %v140 = vrot.slane %v139, 1
      %v141 = vadd.f32 %v139, %v140
      %v142 = vmul.f32 %v130, 0.0625
      %v143 = vmul.f32 %v141, 0.0625
      %v144 = vmul.f32 %v142, %v142
      %v145 = vsub.f32 %v143, %v144
      %v146 = vmax.f32 %v145, 0.0
      %v147 = vsub.f32 %v119, %v142
      %v148 = vsub.f32 %v120, %v142
      %v149 = vadd.f32 %v146, 1e-05
      %v150 = vrsqrt.pop %v149
      %v151 = vmul.f32 %v150, %v149
      %v152 = vmul.f32 %v151, %v150
      %v153 = vmul.f32 0.5, %v152
      %v154 = vsub.f32 1.5, %v153
      %v155 = vmul.f32 %v150, %v154
      %vm156 = vweird.f32 %v149
      %vm157 = vweird.f32 %v150
      %vm158 = vmor %vm156, %vm157
      %v159 = vsel %vm158, %v150, %v155
      %v160 = vmul.f32 %v147, %v159
      %v161 = vmul.f32 %v148, %v159
      %vm162 = vcmp.ge.f32.partialorder %v160, 0.0
      %vm163 = vcmp.ge.f32.partialorder %v161, 0.0
      %v164 = vmul.f32 %v160, 0.2
      %v165 = vmul.f32 %v161, 0.2
      %v166 = vsel %vm162, %v160, %v164
      %v167 = vsel %vm163, %v161, %v165
      %v168 = vpack.c.bf16 %v166, %v166
      %v169 = vpack.c.bf16 %v167, %v167
      %vm170 = vcmask 519168
      %171 = vst.msk [vmem:[%s116] sm:$0xf] %vm170, %v168
      %172 = vst.msk [vmem:[%s116 + $0x4] sm:$0xf] %vm170, %v169
      %p173 = scmp.lt.s32.totalorder %s12, 1
      %s174 = scalar_select %p173, %s12, 1
      %s175 = smul.addr %s174, 2
      %s176 = smul.addr %s175, 4
      %s177 = scalar_lea.vmem %s1, %s176
      // Predicated region
      $region25: #{_lambda_.12} parent=23 // pred_check
        %p178 = pneg %p56
      $region26: #{_lambda_.12} parent=23 // pred_check_branch
        %180 = sbr.rel (%p178) target = $region28
      $region27: #{_lambda_.12} parent=23 // pred_region
        _
      $region28: #{_lambda_.12} parent=23 // pred_fallthru
        _
    $region24: #{_lambda_.12} parent=5 // pred_fallthru
      _
    %p181 = scmp.le.s32.totalorder 2, %s7
    // Predicated region
    $region29: #{_lambda_.12} parent=5 // pred_check
      %p182 = pneg %p181
    $region30: #{_lambda_.12} parent=5 // pred_check_branch
      %184 = sbr.rel (%p182) target = $region32
    $region31: #{_lambda_.12} parent=5 // pred_region
      %s185 = ssub.s32 %s7, 2
      // Predicated region
      $region33: #{_lambda_.12} parent=31 // pred_check
        %p186 = pneg %p62
      $region34: #{_lambda_.12} parent=31 // pred_check_branch
        %188 = sbr.rel (%p186) target = $region36
      $region35: #{_lambda_.12} parent=31 // pred_region
        %p189 = scmp.lt.s32.totalorder %s13, 1
        %s190 = scalar_select %p189, %s13, 1
        %s191 = smul.addr %s190, 2
        %s192 = smul.addr %s191, 4
        %s193 = scalar_lea.vmem %s1, %s192
      $region36: #{_lambda_.12} parent=31 // pred_fallthru
        _
    $region32: #{_lambda_.12} parent=5 // pred_fallthru
      _
  $region6: #{_lambda_.12} parent=0 // loop_footer
    %s11 = sadd.s32 1, %s7
  $region7: #{_lambda_.12} parent=0 // loop_footer_branch
    %6 = sbr.rel target = $region3
  $region8: #{_lambda_.12} parent=0 // loop_exit
    _

// kernel: _lambda_.14
$region0: #{_lambda_.14}
  #allocation0 [shape = 'u32[]', space=smem, size = 0x4, offset = 0x4, fixed_abs, tag = 'smem constant byte address 0x4 - core index']
  #allocation1 [shape = 'u32[72,128]{1,0:T(1,128)}', space=vmem, size = 0x9000, scoped, tag = 'internal scratch']
  %s0 = inlined_call_operand.vmem [shape: bf16[2,9,128], index: 0, kind: input, shape index: {}]
  %s1 = inlined_call_operand.vmem [shape: bf16[2,9,128], index: 1, kind: output, shape index: {}]
  %s2 = sld [smem:[#allocation0]]
  $region37: #{_lambda_.14} parent=0
    _
  %s4 = ssub.s32 1, %s2
  %s5 = scalar_select 0, %s4, %s2
  loop: start=0, step=1, limit=4
  $region2: #{_lambda_.14} parent=0 // loop_pre_header
    _
  $region3: #{_lambda_.14} parent=0 // loop_header
    %s7 = sphi 0, %s11
    %p8 = scmp.ge.s32.totalorder %s7, 4
    %s17 = sphi 0, %s19
    %s20 = sphi 0, %s17
    %s21 = sphi 0, %s20
    %s37 = sphi 0, %s21
    %s43 = sphi 0, %s45
    %s46 = sphi 0, %s43
    %s47 = sphi 0, %s46
    %s63 = sphi 0, %s47
  $region4: #{_lambda_.14} parent=0 // loop_header_branch
    %10 = sbr.rel (%p8) target = $region8
  $region5: #{_lambda_.14} parent=0 // loop_body
    %s12 = ssub.s32 %s7, 1
    %s13 = ssub.s32 %s7, 2
    %s14 = sadd.s32 %s7, 1
    %s15 = ssub.s32 %s7, %s14
    %p16 = scmp.eq.s32.totalorder %s15, 0
    %s18 = sadd.s32 %s17, 1
    %s19 = scalar_select %p16, %s17, %s18
    %p22 = pneg %p16
    %p23 = scmp.eq.s32.totalorder %s7, 1
    %p24 = por %p22, %p23
    %p25 = scmp.ne.s32.totalorder %s17, %s20
    %p26 = scmp.eq.s32.totalorder %s7, 0
    %p27 = por %p25, %p26
    %p28 = scmp.ne.s32.totalorder %s17, %s20
    %p29 = scmp.eq.s32.totalorder %s12, 1
    %p30 = por %p28, %p29
    %p31 = scmp.ne.s32.totalorder %s20, %s21
    %p32 = scmp.eq.s32.totalorder %s12, 0
    %p33 = por %p31, %p32
    %p34 = scmp.ne.s32.totalorder %s20, %s21
    %p35 = scmp.eq.s32.totalorder %s13, 1
    %p36 = por %p34, %p35
    %p38 = scmp.ne.s32.totalorder %s21, %s37
    %p39 = scmp.eq.s32.totalorder %s13, 0
    %p40 = por %p38, %p39
    %s41 = ssub.s32 %s7, %s14
    %p42 = scmp.eq.s32.totalorder %s41, 0
    %s44 = sadd.s32 %s43, 1
    %s45 = scalar_select %p42, %s43, %s44
    %p48 = pneg %p42
    %p49 = scmp.eq.s32.totalorder %s7, 1
    %p50 = por %p48, %p49
    %p51 = scmp.ne.s32.totalorder %s43, %s46
    %p52 = scmp.eq.s32.totalorder %s7, 0
    %p53 = por %p51, %p52
    %p54 = scmp.ne.s32.totalorder %s43, %s46
    %p55 = scmp.eq.s32.totalorder %s12, 1
    %p56 = por %p54, %p55
    %p57 = scmp.ne.s32.totalorder %s46, %s47
    %p58 = scmp.eq.s32.totalorder %s12, 0
    %p59 = por %p57, %p58
    %p60 = scmp.ne.s32.totalorder %s46, %s47
    %p61 = scmp.eq.s32.totalorder %s13, 1
    %p62 = por %p60, %p61
    %p64 = scmp.ne.s32.totalorder %s47, %s63
    %p65 = scmp.eq.s32.totalorder %s13, 0
    %p66 = por %p64, %p65
    %p67 = scmp.le.s32.totalorder 1, %s7
    %p68 = scmp.lt.s32.totalorder %s7, 3
    %p69 = pnand %p67, %p68
    %p70 = pneg %p69
    // Predicated region
    $region9: #{_lambda_.14} parent=5 // pred_check
      _
    $region10: #{_lambda_.14} parent=5 // pred_check_branch
      %72 = sbr.rel (%p69) target = $region12
    $region11: #{_lambda_.14} parent=5 // pred_region
      %s73 = ssub.s32 %s7, 1
    $region12: #{_lambda_.14} parent=5 // pred_fallthru
      _
    %p74 = scmp.lt.s32.totalorder %s7, 2
    // Predicated region
    $region13: #{_lambda_.14} parent=5 // pred_check
      %p75 = pneg %p74
    $region14: #{_lambda_.14} parent=5 // pred_check_branch
      %77 = sbr.rel (%p75) target = $region16
    $region15: #{_lambda_.14} parent=5 // pred_region
      // Predicated region
      $region17: #{_lambda_.14} parent=15 // pred_check
        %p78 = pneg %p27
      $region18: #{_lambda_.14} parent=15 // pred_check_branch
        %80 = sbr.rel (%p78) target = $region20
      $region19: #{_lambda_.14} parent=15 // pred_region
        %p81 = scmp.lt.s32.totalorder %s7, 1
        %s82 = scalar_select %p81, %s7, 1
        %s83 = smul.addr %s82, 2
        %s84 = smul.addr %s83, 4
        %s85 = scalar_lea.vmem %s0, %s84
      $region20: #{_lambda_.14} parent=15 // pred_fallthru
        _
    $region16: #{_lambda_.14} parent=5 // pred_fallthru
      _
    %p86 = scmp.le.s32.totalorder 1, %s7
    %p87 = scmp.lt.s32.totalorder %s7, 3
    %p88 = pnand %p86, %p87
    %p89 = pneg %p88
    // Predicated region
    $region21: #{_lambda_.14} parent=5 // pred_check
      _
    $region22: #{_lambda_.14} parent=5 // pred_check_branch
      %91 = sbr.rel (%p88) target = $region24
    $region23: #{_lambda_.14} parent=5 // pred_region
      %s92 = ssub.s32 %s7, 1
      %p93 = scmp.lt.s32.totalorder %s12, 1
      %s94 = scalar_select %p93, %s12, 1
      %s95 = smul.addr %s94, 2
      %s96 = smul.addr %s95, 4
      %s97 = scalar_lea.vmem %s0, %s96
      %p98 = pneg %p33
      %p99 = pneg %p30
      %p100 = pneg %p59
      %p101 = pneg %p56
      %p102 = scmp.lt.s32.totalorder %s12, 1
      %s103 = scalar_select %p102, %s12, 1
      %s104 = smul.addr %s103, 2
      %s105 = smul.addr %s104, 4
      %s106 = scalar_lea.vmem %s1, %s105
      %p107 = scmp.lt.s32.totalorder %s12, 1
      %s108 = scalar_select %p107, %s12, 1
      %s109 = smul.addr %s108, 2
      %s110 = smul.addr %s109, 4
      %s111 = scalar_lea.vmem %s0, %s110
      %p112 = scmp.lt.s32.totalorder %s12, 1
      %s113 = scalar_select %p112, %s12, 1
      %s114 = smul.addr %s113, 2
      %s115 = smul.addr %s114, 4
      %s116 = scalar_lea.vmem %s1, %s115
      %v117 = vld [vmem:[%s111] sm:$0xf]
      %v118 = vld [vmem:[%s111 + $0x4] sm:$0x1]
      %v119 = vunpack.c.l.bf16 %v117
      %v120 = vunpack.c.l.bf16 %v118
      %vm121 = vcmask 1040384
      %v122 = vsel %vm121, %v120, 0.0
      %v123 = vadd.f32 %v119, %v122
      %v124 = vrot.slane %v123, 4
      %v125 = vadd.f32 %v123, %v124
      %v126 = vrot.slane %v125, 2
      %v127 = vadd.f32 %v125, %v126
      %v128 = vrot.slane %v127, 1
      %v129 = vadd.f32 %v127, %v128
      %v130 = vmul.f32 %v119, %v119
      %v131 = vmul.f32 %v120, %v120
      %v132 = vsel %vm121, %v131, 0.0
      %v133 = vadd.f32 %v130, %v132
      %v134 = vrot.slane %v133, 4
      %v135 = vadd.f32 %v133, %v134
      %v136 = vrot.slane %v135, 2
      %v137 = vadd.f32 %v135, %v136
      %v138 = vrot.slane %v137, 1
      %v139 = vadd.f32 %v137, %v138
      %v140 = vmul.f32 %v129, 0.11111111
      %v141 = vmul.f32 %v139, 0.11111111
      %v142 = vmul.f32 %v140, %v140
      %v143 = vsub.f32 %v141, %v142
      %v144 = vmax.f32 %v143, 0.0
      %v145 = vsub.f32 %v119, %v140
      %v146 = vsub.f32 %v120, %v140
      %v147 = vadd.f32 %v144, 1e-05
      %v148 = vrsqrt.pop %v147
      %v149 = vmul.f32 %v148, %v147
      %v150 = vmul.f32 %v149, %v148
      %v151 = vmul.f32 0.5, %v150
      %v152 = vsub.f32 1.5, %v151
      %v153 = vmul.f32 %v148, %v152
      %vm154 = vweird.f32 %v147
      %vm155 = vweird.f32 %v148
      %vm156 = vmor %vm154, %vm155
      %v157 = vsel %vm156, %v148, %v153
      %v158 = vmul.f32 %v145, %v157
      %v159 = vmul.f32 %v146, %v157
      %vm160 = vcmp.ge.f32.partialorder %v158, 0.0
      %vm161 = vcmp.ge.f32.partialorder %v159, 0.0
      %v162 = vmul.f32 %v158, 0.2
      %v163 = vmul.f32 %v159, 0.2
      %v164 = vsel %vm160, %v158, %v162
      %v165 = vsel %vm161, %v159, %v163
      %v166 = vpack.c.bf16 %v164, %v164
      %v167 = vpack.c.bf16 %v165, %v165
      %168 = vst [vmem:[%s116] sm:$0xf] %v166
      %vm169 = vcmask 1040384
      %vm170 = vsmask.f32 256
      %vm171 = vmand %vm169, %vm170
      %v172 = vld [vmem:[%s116 + $0x4] sm:$0x1]
      %v173 = vsel %vm171, %v167, %v172
      %174 = vst [vmem:[%s116 + $0x4] sm:$0x1] %v173
      %p175 = scmp.lt.s32.totalorder %s12, 1
      %s176 = scalar_select %p175, %s12, 1
      %s177 = smul.addr %s176, 2
      %s178 = smul.addr %s177, 4
      %s179 = scalar_lea.vmem %s1, %s178
      // Predicated region
      $region25: #{_lambda_.14} parent=23 // pred_check
        %p180 = pneg %p56
      $region26: #{_lambda_.14} parent=23 // pred_check_branch
        %182 = sbr.rel (%p180) target = $region28
      $region27: #{_lambda_.14} parent=23 // pred_region
        _
      $region28: #{_lambda_.14} parent=23 // pred_fallthru
        _
    $region24: #{_lambda_.14} parent=5 // pred_fallthru
      _
    %p183 = scmp.le.s32.totalorder 2, %s7
    // Predicated region
    $region29: #{_lambda_.14} parent=5 // pred_check
      %p184 = pneg %p183
    $region30: #{_lambda_.14} parent=5 // pred_check_branch
      %186 = sbr.rel (%p184) target = $region32
    $region31: #{_lambda_.14} parent=5 // pred_region
      %s187 = ssub.s32 %s7, 2
      // Predicated region
      $region33: #{_lambda_.14} parent=31 // pred_check
        %p188 = pneg %p62
      $region34: #{_lambda_.14} parent=31 // pred_check_branch
        %190 = sbr.rel (%p188) target = $region36
      $region35: #{_lambda_.14} parent=31 // pred_region
        %p191 = scmp.lt.s32.totalorder %s13, 1
        %s192 = scalar_select %p191, %s13, 1
        %s193 = smul.addr %s192, 2
        %s194 = smul.addr %s193, 4
        %s195 = scalar_lea.vmem %s1, %s194
      $region36: #{_lambda_.14} parent=31 // pred_fallthru
        _
    $region32: #{_lambda_.14} parent=5 // pred_fallthru
      _
  $region6: #{_lambda_.14} parent=0 // loop_footer
    %s11 = sadd.s32 1, %s7
  $region7: #{_lambda_.14} parent=0 // loop_footer_branch
    %6 = sbr.rel target = $region3
  $region8: #{_lambda_.14} parent=0 // loop_exit
    _

// kernel: _lambda_.13
$region0: #{_lambda_.13}
  #allocation0 [shape = 'u32[]', space=smem, size = 0x4, offset = 0x4, fixed_abs, tag = 'smem constant byte address 0x4 - core index']
  #allocation1 [shape = 'u32[72,128]{1,0:T(1,128)}', space=vmem, size = 0x9000, scoped, tag = 'internal scratch']
  %s0 = inlined_call_operand.vmem [shape: bf16[24,1024], index: 0, kind: input, shape index: {}]
  %s1 = inlined_call_operand.vmem [shape: bf16[1024,128], index: 1, kind: input, shape index: {}]
  %s2 = inlined_call_operand.vmem [shape: f32[1,128], index: 2, kind: input, shape index: {}]
  %s3 = inlined_call_operand.vmem [shape: bf16[24,128], index: 3, kind: output, shape index: {}]
  %s4 = sld [smem:[#allocation0]]
  $region22: #{_lambda_.13} parent=0
    _
  %s6 = ssub.s32 1, %s4
  %s7 = scalar_select 0, %s6, %s4
  // Predicated region
  $region2: #{_lambda_.13} parent=0 // pred_check
    _
  $region3: #{_lambda_.13} parent=0 // pred_check_branch
    %9 = sbr.rel (0) target = $region5
  $region4: #{_lambda_.13} parent=0 // pred_region
    _
  $region5: #{_lambda_.13} parent=0 // pred_fallthru
    _
  // Predicated region
  $region6: #{_lambda_.13} parent=0 // pred_check
    _
  $region7: #{_lambda_.13} parent=0 // pred_check_branch
    %11 = sbr.rel (0) target = $region9
  $region8: #{_lambda_.13} parent=0 // pred_region
    _
  $region9: #{_lambda_.13} parent=0 // pred_fallthru
    _
  // Predicated region
  $region10: #{_lambda_.13} parent=0 // pred_check
    _
  $region11: #{_lambda_.13} parent=0 // pred_check_branch
    %13 = sbr.rel (0) target = $region13
  $region12: #{_lambda_.13} parent=0 // pred_region
    _
  $region13: #{_lambda_.13} parent=0 // pred_fallthru
    _
  %v14 = vld [vmem:[%s0] sm:$0xff]
  %v15 = vld [vmem:[%s0 + $0x8] sm:$0xff]
  %v16 = vld [vmem:[%s0 + $0x10] sm:$0xff]
  %v17 = vld [vmem:[%s0 + $0x18] sm:$0xff]
  %v18 = vld [vmem:[%s0 + $0x20] sm:$0xff]
  %v19 = vld [vmem:[%s0 + $0x28] sm:$0xff]
  %v20 = vld [vmem:[%s0 + $0x30] sm:$0xff]
  %v21 = vld [vmem:[%s0 + $0x38] sm:$0xff]
  %v22 = vld [vmem:[%s0 + $0x40] sm:$0xff]
  %v23 = vld [vmem:[%s0 + $0x48] sm:$0xff]
  %v24 = vld [vmem:[%s0 + $0x50] sm:$0xff]
  %v25 = vld [vmem:[%s0 + $0x58] sm:$0xff]
  %v26 = vld [vmem:[%s1] sm:$0xf]
  %v27 = vld [vmem:[%s1 + $0x4] sm:$0xf]
  %v28 = vld [vmem:[%s1 + $0x8] sm:$0xf]
  %v29 = vld [vmem:[%s1 + $0xc] sm:$0xf]
  %v30 = vld [vmem:[%s1 + $0x10] sm:$0xf]
  %v31 = vld [vmem:[%s1 + $0x14] sm:$0xf]
  %v32 = vld [vmem:[%s1 + $0x18] sm:$0xf]
  %v33 = vld [vmem:[%s1 + $0x1c] sm:$0xf]
  %v34 = vld [vmem:[%s1 + $0x20] sm:$0xf]
  %v35 = vld [vmem:[%s1 + $0x24] sm:$0xf]
  %v36 = vld [vmem:[%s1 + $0x28] sm:$0xf]
  %v37 = vld [vmem:[%s1 + $0x2c] sm:$0xf]
  %v38 = vld [vmem:[%s1 + $0x30] sm:$0xf]
  %v39 = vld [vmem:[%s1 + $0x34] sm:$0xf]
  %v40 = vld [vmem:[%s1 + $0x38] sm:$0xf]
  %v41 = vld [vmem:[%s1 + $0x3c] sm:$0xf]
  %v42 = vld [vmem:[%s1 + $0x40] sm:$0xf]
  %v43 = vld [vmem:[%s1 + $0x44] sm:$0xf]
  %v44 = vld [vmem:[%s1 + $0x48] sm:$0xf]
  %v45 = vld [vmem:[%s1 + $0x4c] sm:$0xf]
  %v46 = vld [vmem:[%s1 + $0x50] sm:$0xf]
  %v47 = vld [vmem:[%s1 + $0x54] sm:$0xf]
  %v48 = vld [vmem:[%s1 + $0x58] sm:$0xf]
  %v49 = vld [vmem:[%s1 + $0x5c] sm:$0xf]
  %v50 = vld [vmem:[%s1 + $0x60] sm:$0xf]
  %v51 = vld [vmem:[%s1 + $0x64] sm:$0xf]
  %v52 = vld [vmem:[%s1 + $0x68] sm:$0xf]
  %v53 = vld [vmem:[%s1 + $0x6c] sm:$0xf]
  %v54 = vld [vmem:[%s1 + $0x70] sm:$0xf]
  %v55 = vld [vmem:[%s1 + $0x74] sm:$0xf]
  %v56 = vld [vmem:[%s1 + $0x78] sm:$0xf]
  %v57 = vld [vmem:[%s1 + $0x7c] sm:$0xf]
  %v58 = vld [vmem:[%s1 + $0x80] sm:$0xf]
  %v59 = vld [vmem:[%s1 + $0x84] sm:$0xf]
  %v60 = vld [vmem:[%s1 + $0x88] sm:$0xf]
  %v61 = vld [vmem:[%s1 + $0x8c] sm:$0xf]
  %v62 = vld [vmem:[%s1 + $0x90] sm:$0xf]
  %v63 = vld [vmem:[%s1 + $0x94] sm:$0xf]
  %v64 = vld [vmem:[%s1 + $0x98] sm:$0xf]
  %v65 = vld [vmem:[%s1 + $0x9c] sm:$0xf]
  %v66 = vld [vmem:[%s1 + $0xa0] sm:$0xf]
  %v67 = vld [vmem:[%s1 + $0xa4] sm:$0xf]
  %v68 = vld [vmem:[%s1 + $0xa8] sm:$0xf]
  %v69 = vld [vmem:[%s1 + $0xac] sm:$0xf]
  %v70 = vld [vmem:[%s1 + $0xb0] sm:$0xf]
  %v71 = vld [vmem:[%s1 + $0xb4] sm:$0xf]
  %v72 = vld [vmem:[%s1 + $0xb8] sm:$0xf]
  %v73 = vld [vmem:[%s1 + $0xbc] sm:$0xf]
  %v74 = vld [vmem:[%s1 + $0xc0] sm:$0xf]
  %v75 = vld [vmem:[%s1 + $0xc4] sm:$0xf]
  %v76 = vld [vmem:[%s1 + $0xc8] sm:$0xf]
  %v77 = vld [vmem:[%s1 + $0xcc] sm:$0xf]
  %v78 = vld [vmem:[%s1 + $0xd0] sm:$0xf]
  %v79 = vld [vmem:[%s1 + $0xd4] sm:$0xf]
  %v80 = vld [vmem:[%s1 + $0xd8] sm:$0xf]
  %v81 = vld [vmem:[%s1 + $0xdc] sm:$0xf]
  %v82 = vld [vmem:[%s1 + $0xe0] sm:$0xf]
  %v83 = vld [vmem:[%s1 + $0xe4] sm:$0xf]
  %v84 = vld [vmem:[%s1 + $0xe8] sm:$0xf]
  %v85 = vld [vmem:[%s1 + $0xec] sm:$0xf]
  %v86 = vld [vmem:[%s1 + $0xf0] sm:$0xf]
  %v87 = vld [vmem:[%s1 + $0xf4] sm:$0xf]
  %v88 = vld [vmem:[%s1 + $0xf8] sm:$0xf]
  %v89 = vld [vmem:[%s1 + $0xfc] sm:$0xf]
  %v90 = vld [vmem:[%s1 + $0x100] sm:$0xf]
  %v91 = vld [vmem:[%s1 + $0x104] sm:$0xf]
  %v92 = vld [vmem:[%s1 + $0x108] sm:$0xf]
  %v93 = vld [vmem:[%s1 + $0x10c] sm:$0xf]
  %v94 = vld [vmem:[%s1 + $0x110] sm:$0xf]
  %v95 = vld [vmem:[%s1 + $0x114] sm:$0xf]
  %v96 = vld [vmem:[%s1 + $0x118] sm:$0xf]
  %v97 = vld [vmem:[%s1 + $0x11c] sm:$0xf]
  %v98 = vld [vmem:[%s1 + $0x120] sm:$0xf]
  %v99 = vld [vmem:[%s1 + $0x124] sm:$0xf]
  %v100 = vld [vmem:[%s1 + $0x128] sm:$0xf]
  %v101 = vld [vmem:[%s1 + $0x12c] sm:$0xf]
  %v102 = vld [vmem:[%s1 + $0x130] sm:$0xf]
  %v103 = vld [vmem:[%s1 + $0x134] sm:$0xf]
  %v104 = vld [vmem:[%s1 + $0x138] sm:$0xf]
  %v105 = vld [vmem:[%s1 + $0x13c] sm:$0xf]
  %v106 = vld [vmem:[%s1 + $0x140] sm:$0xf]
  %v107 = vld [vmem:[%s1 + $0x144] sm:$0xf]
  %v108 = vld [vmem:[%s1 + $0x148] sm:$0xf]
  %v109 = vld [vmem:[%s1 + $0x14c] sm:$0xf]
  %v110 = vld [vmem:[%s1 + $0x150] sm:$0xf]
  %v111 = vld [vmem:[%s1 + $0x154] sm:$0xf]
  %v112 = vld [vmem:[%s1 + $0x158] sm:$0xf]
  %v113 = vld [vmem:[%s1 + $0x15c] sm:$0xf]
  %v114 = vld [vmem:[%s1 + $0x160] sm:$0xf]
  %v115 = vld [vmem:[%s1 + $0x164] sm:$0xf]
  %v116 = vld [vmem:[%s1 + $0x168] sm:$0xf]
  %v117 = vld [vmem:[%s1 + $0x16c] sm:$0xf]
  %v118 = vld [vmem:[%s1 + $0x170] sm:$0xf]
  %v119 = vld [vmem:[%s1 + $0x174] sm:$0xf]
  %v120 = vld [vmem:[%s1 + $0x178] sm:$0xf]
  %v121 = vld [vmem:[%s1 + $0x17c] sm:$0xf]
  %v122 = vld [vmem:[%s1 + $0x180] sm:$0xf]
  %v123 = vld [vmem:[%s1 + $0x184] sm:$0xf]
  %v124 = vld [vmem:[%s1 + $0x188] sm:$0xf]
  %v125 = vld [vmem:[%s1 + $0x18c] sm:$0xf]
  %v126 = vld [vmem:[%s1 + $0x190] sm:$0xf]
  %v127 = vld [vmem:[%s1 + $0x194] sm:$0xf]
  %v128 = vld [vmem:[%s1 + $0x198] sm:$0xf]
  %v129 = vld [vmem:[%s1 + $0x19c] sm:$0xf]
  %v130 = vld [vmem:[%s1 + $0x1a0] sm:$0xf]
  %v131 = vld [vmem:[%s1 + $0x1a4] sm:$0xf]
  %v132 = vld [vmem:[%s1 + $0x1a8] sm:$0xf]
  %v133 = vld [vmem:[%s1 + $0x1ac] sm:$0xf]
  %v134 = vld [vmem:[%s1 + $0x1b0] sm:$0xf]
  %v135 = vld [vmem:[%s1 + $0x1b4] sm:$0xf]
  %v136 = vld [vmem:[%s1 + $0x1b8] sm:$0xf]
  %v137 = vld [vmem:[%s1 + $0x1bc] sm:$0xf]
  %v138 = vld [vmem:[%s1 + $0x1c0] sm:$0xf]
  %v139 = vld [vmem:[%s1 + $0x1c4] sm:$0xf]
  %v140 = vld [vmem:[%s1 + $0x1c8] sm:$0xf]
  %v141 = vld [vmem:[%s1 + $0x1cc] sm:$0xf]
  %v142 = vld [vmem:[%s1 + $0x1d0] sm:$0xf]
  %v143 = vld [vmem:[%s1 + $0x1d4] sm:$0xf]
  %v144 = vld [vmem:[%s1 + $0x1d8] sm:$0xf]
  %v145 = vld [vmem:[%s1 + $0x1dc] sm:$0xf]
  %v146 = vld [vmem:[%s1 + $0x1e0] sm:$0xf]
  %v147 = vld [vmem:[%s1 + $0x1e4] sm:$0xf]
  %v148 = vld [vmem:[%s1 + $0x1e8] sm:$0xf]
  %v149 = vld [vmem:[%s1 + $0x1ec] sm:$0xf]
  %v150 = vld [vmem:[%s1 + $0x1f0] sm:$0xf]
  %v151 = vld [vmem:[%s1 + $0x1f4] sm:$0xf]
  %v152 = vld [vmem:[%s1 + $0x1f8] sm:$0xf]
  %v153 = vld [vmem:[%s1 + $0x1fc] sm:$0xf]
  %v154 = vld [vmem:[%s2] sm:$0x1]
  %v156 = vperm.slane %v154, 0
  %v170 = vunpack.c.l.b16 %v14
  %v171 = vunpack.c.h.b16 %v14
  %v172 = vunpack.c.l.b16 %v15
  %v173 = vunpack.c.h.b16 %v15
  %v174 = vunpack.c.l.b16 %v16
  %v175 = vunpack.c.h.b16 %v16
  %v176 = vunpack.c.l.b16 %v17
  %v177 = vunpack.c.h.b16 %v17
  %v178 = vunpack.c.l.b16 %v18
  %v179 = vunpack.c.h.b16 %v18
  %v180 = vunpack.c.l.b16 %v19
  %v181 = vunpack.c.h.b16 %v19
  %v182 = vunpack.c.l.b16 %v20
  %v183 = vunpack.c.h.b16 %v20
  %v184 = vunpack.c.l.b16 %v21
  %v185 = vunpack.c.h.b16 %v21
  %v186 = vunpack.c.l.b16 %v22
  %v187 = vunpack.c.h.b16 %v22
  %v188 = vunpack.c.l.b16 %v23
  %v189 = vunpack.c.h.b16 %v23
  %v190 = vunpack.c.l.b16 %v24
  %v191 = vunpack.c.h.b16 %v24
  %v192 = vunpack.c.l.b16 %v25
  %v193 = vunpack.c.h.b16 %v25
  %v194 = vpack.c.b16 %v178, %v170
  %v195 = vpack.c.b16 %v179, %v171
  %v196 = vpack.c.b16 %v180, %v172
  %v197 = vpack.c.b16 %v181, %v173
  %v198 = vpack.c.b16 %v182, %v174
  %v199 = vpack.c.b16 %v183, %v175
  %v200 = vpack.c.b16 %v184, %v176
  %v201 = vpack.c.b16 %v185, %v177
  %v202 = vpack.c.b16 %v186, %v186
  %v203 = vpack.c.b16 %v187, %v187
  %v204 = vpack.c.b16 %v188, %v188
  %v205 = vpack.c.b16 %v189, %v189
  %v206 = vpack.c.b16 %v190, %v190
  %v207 = vpack.c.b16 %v191, %v191
  %v208 = vpack.c.b16 %v192, %v192
  %v209 = vpack.c.b16 %v193, %v193
  %v354 = vunpack.c.l.b16 %v26
  %v355 = vunpack.c.l.b16 %v27
  %v356 = vunpack.c.l.b16 %v28
  %v357 = vunpack.c.l.b16 %v29
  %v358 = vunpack.c.l.b16 %v30
  %v359 = vunpack.c.l.b16 %v31
  %v360 = vunpack.c.l.b16 %v32
  %v361 = vunpack.c.l.b16 %v33
  %v362 = vunpack.c.l.b16 %v34
  %v363 = vunpack.c.l.b16 %v35
  %v364 = vunpack.c.l.b16 %v36
  %v365 = vunpack.c.l.b16 %v37
  %v366 = vunpack.c.l.b16 %v38
  %v367 = vunpack.c.l.b16 %v39
  %v368 = vunpack.c.l.b16 %v40
  %v369 = vunpack.c.l.b16 %v41
  %v370 = vunpack.c.l.b16 %v42
  %v371 = vunpack.c.l.b16 %v43
  %v372 = vunpack.c.l.b16 %v44
  %v373 = vunpack.c.l.b16 %v45
  %v374 = vunpack.c.l.b16 %v46
  %v375 = vunpack.c.l.b16 %v47
  %v376 = vunpack.c.l.b16 %v48
  %v377 = vunpack.c.l.b16 %v49
  %v378 = vunpack.c.l.b16 %v50
  %v379 = vunpack.c.l.b16 %v51
  %v380 = vunpack.c.l.b16 %v52
  %v381 = vunpack.c.l.b16 %v53
  %v382 = vunpack.c.l.b16 %v54
  %v383 = vunpack.c.l.b16 %v55
  %v384 = vunpack.c.l.b16 %v56
  %v385 = vunpack.c.l.b16 %v57
  %v386 = vunpack.c.l.b16 %v58
  %v387 = vunpack.c.l.b16 %v59
  %v388 = vunpack.c.l.b16 %v60
  %v389 = vunpack.c.l.b16 %v61
  %v390 = vunpack.c.l.b16 %v62
  %v391 = vunpack.c.l.b16 %v63
  %v392 = vunpack.c.l.b16 %v64
  %v393 = vunpack.c.l.b16 %v65
  %v394 = vunpack.c.l.b16 %v66
  %v395 = vunpack.c.l.b16 %v67
  %v396 = vunpack.c.l.b16 %v68
  %v397 = vunpack.c.l.b16 %v69
  %v398 = vunpack.c.l.b16 %v70
  %v399 = vunpack.c.l.b16 %v71
  %v400 = vunpack.c.l.b16 %v72
  %v401 = vunpack.c.l.b16 %v73
  %v402 = vunpack.c.l.b16 %v74
  %v403 = vunpack.c.l.b16 %v75
  %v404 = vunpack.c.l.b16 %v76
  %v405 = vunpack.c.l.b16 %v77
  %v406 = vunpack.c.l.b16 %v78
  %v407 = vunpack.c.l.b16 %v79
  %v408 = vunpack.c.l.b16 %v80
  %v409 = vunpack.c.l.b16 %v81
  %v410 = vunpack.c.l.b16 %v82
  %v411 = vunpack.c.l.b16 %v83
  %v412 = vunpack.c.l.b16 %v84
  %v413 = vunpack.c.l.b16 %v85
  %v414 = vunpack.c.l.b16 %v86
  %v415 = vunpack.c.l.b16 %v87
  %v416 = vunpack.c.l.b16 %v88
  %v417 = vunpack.c.l.b16 %v89
  %v418 = vunpack.c.l.b16 %v90
  %v419 = vunpack.c.l.b16 %v91
  %v420 = vunpack.c.l.b16 %v92
  %v421 = vunpack.c.l.b16 %v93
  %v422 = vunpack.c.l.b16 %v94
  %v423 = vunpack.c.l.b16 %v95
  %v424 = vunpack.c.l.b16 %v96
  %v425 = vunpack.c.l.b16 %v97
  %v426 = vunpack.c.l.b16 %v98
  %v427 = vunpack.c.l.b16 %v99
  %v428 = vunpack.c.l.b16 %v100
  %v429 = vunpack.c.l.b16 %v101
  %v430 = vunpack.c.l.b16 %v102
  %v431 = vunpack.c.l.b16 %v103
  %v432 = vunpack.c.l.b16 %v104
  %v433 = vunpack.c.l.b16 %v105
  %v434 = vunpack.c.l.b16 %v106
  %v435 = vunpack.c.l.b16 %v107
  %v436 = vunpack.c.l.b16 %v108
  %v437 = vunpack.c.l.b16 %v109
  %v438 = vunpack.c.l.b16 %v110
  %v439 = vunpack.c.l.b16 %v111
  %v440 = vunpack.c.l.b16 %v112
  %v441 = vunpack.c.l.b16 %v113
  %v442 = vunpack.c.l.b16 %v114
  %v443 = vunpack.c.l.b16 %v115
  %v444 = vunpack.c.l.b16 %v116
  %v445 = vunpack.c.l.b16 %v117
  %v446 = vunpack.c.l.b16 %v118
  %v447 = vunpack.c.l.b16 %v119
  %v448 = vunpack.c.l.b16 %v120
  %v449 = vunpack.c.l.b16 %v121
  %v450 = vunpack.c.l.b16 %v122
  %v451 = vunpack.c.l.b16 %v123
  %v452 = vunpack.c.l.b16 %v124
  %v453 = vunpack.c.l.b16 %v125
  %v454 = vunpack.c.l.b16 %v126
  %v455 = vunpack.c.l.b16 %v127
  %v456 = vunpack.c.l.b16 %v128
  %v457 = vunpack.c.l.b16 %v129
  %v458 = vunpack.c.l.b16 %v130
  %v459 = vunpack.c.l.b16 %v131
  %v460 = vunpack.c.l.b16 %v132
  %v461 = vunpack.c.l.b16 %v133
  %v462 = vunpack.c.l.b16 %v134
  %v463 = vunpack.c.l.b16 %v135
  %v464 = vunpack.c.l.b16 %v136
  %v465 = vunpack.c.l.b16 %v137
  %v466 = vunpack.c.l.b16 %v138
  %v467 = vunpack.c.l.b16 %v139
  %v468 = vunpack.c.l.b16 %v140
  %v469 = vunpack.c.l.b16 %v141
  %v470 = vunpack.c.l.b16 %v142
  %v471 = vunpack.c.l.b16 %v143
  %v472 = vunpack.c.l.b16 %v144
  %v473 = vunpack.c.l.b16 %v145
  %v474 = vunpack.c.l.b16 %v146
  %v475 = vunpack.c.l.b16 %v147
  %v476 = vunpack.c.l.b16 %v148
  %v477 = vunpack.c.l.b16 %v149
  %v478 = vunpack.c.l.b16 %v150
  %v479 = vunpack.c.l.b16 %v151
  %v480 = vunpack.c.l.b16 %v152
  %v481 = vunpack.c.l.b16 %v153
  %v482 = vpack.c.b16 %v355, %v354
  %v483 = vpack.c.b16 %v357, %v356
  %v484 = vpack.c.b16 %v359, %v358
  %v485 = vpack.c.b16 %v361, %v360
  %v486 = vpack.c.b16 %v363, %v362
  %v487 = vpack.c.b16 %v365, %v364
  %v488 = vpack.c.b16 %v367, %v366
  %v489 = vpack.c.b16 %v369, %v368
  %v490 = vpack.c.b16 %v371, %v370
  %v491 = vpack.c.b16 %v373, %v372
  %v492 = vpack.c.b16 %v375, %v374
  %v493 = vpack.c.b16 %v377, %v376
  %v494 = vpack.c.b16 %v379, %v378
  %v495 = vpack.c.b16 %v381, %v380
  %v496 = vpack.c.b16 %v383, %v382
  %v497 = vpack.c.b16 %v385, %v384
  %v498 = vpack.c.b16 %v387, %v386
  %v499 = vpack.c.b16 %v389, %v388
  %v500 = vpack.c.b16 %v391, %v390
  %v501 = vpack.c.b16 %v393, %v392
  %v502 = vpack.c.b16 %v395, %v394
  %v503 = vpack.c.b16 %v397, %v396
  %v504 = vpack.c.b16 %v399, %v398
  %v505 = vpack.c.b16 %v401, %v400
  %v506 = vpack.c.b16 %v403, %v402
  %v507 = vpack.c.b16 %v405, %v404
  %v508 = vpack.c.b16 %v407, %v406
  %v509 = vpack.c.b16 %v409, %v408
  %v510 = vpack.c.b16 %v411, %v410
  %v511 = vpack.c.b16 %v413, %v412
  %v512 = vpack.c.b16 %v415, %v414
  %v513 = vpack.c.b16 %v417, %v416
  %v514 = vpack.c.b16 %v419, %v418
  %v515 = vpack.c.b16 %v421, %v420
  %v516 = vpack.c.b16 %v423, %v422
  %v517 = vpack.c.b16 %v425, %v424
  %v518 = vpack.c.b16 %v427, %v426
  %v519 = vpack.c.b16 %v429, %v428
  %v520 = vpack.c.b16 %v431, %v430
  %v521 = vpack.c.b16 %v433, %v432
  %v522 = vpack.c.b16 %v435, %v434
  %v523 = vpack.c.b16 %v437, %v436
  %v524 = vpack.c.b16 %v439, %v438
  %v525 = vpack.c.b16 %v441, %v440
  %v526 = vpack.c.b16 %v443, %v442
  %v527 = vpack.c.b16 %v445, %v444
  %v528 = vpack.c.b16 %v447, %v446
  %v529 = vpack.c.b16 %v449, %v448
  %v530 = vpack.c.b16 %v451, %v450
  %v531 = vpack.c.b16 %v453, %v452
  %v532 = vpack.c.b16 %v455, %v454
  %v533 = vpack.c.b16 %v457, %v456
  %v534 = vpack.c.b16 %v459, %v458
  %v535 = vpack.c.b16 %v461, %v460
  %v536 = vpack.c.b16 %v463, %v462
  %v537 = vpack.c.b16 %v465, %v464
  %v538 = vpack.c.b16 %v467, %v466
  %v539 = vpack.c.b16 %v469, %v468
  %v540 = vpack.c.b16 %v471, %v470
  %v541 = vpack.c.b16 %v473, %v472
  %v542 = vpack.c.b16 %v475, %v474
  %v543 = vpack.c.b16 %v477, %v476
  %v544 = vpack.c.b16 %v479, %v478
  %v545 = vpack.c.b16 %v481, %v480
  %610 = vmatpush.bf16.msra.mxu0 %v489
  %611 = vmatpush.bf16.msra.mxu0 %v488
  %612 = vmatpush.bf16.msra.mxu0 %v487
  %613 = vmatpush.bf16.msra.mxu0 %v486
  %614 = vmatpush.bf16.msra.mxu0 %v485
  %615 = vmatpush.bf16.msra.mxu0 %v484
  %616 = vmatpush.bf16.msra.mxu0 %v483
  %617 = vmatpush.bf16.msra.mxu0 %v482
  %618 = vmatmul.bf16.gmra.mxu0 %v194
  %v619 = vpop.f32.mrf.mxu0
  %v620 = vadd.f32 %v156, %v619
  %v621 = vpop.f32.mrf.mxu0
  %v622 = vadd.f32 %v156, %v621
  %623 = vmatmul.bf16.gmra.mxu0 %v202
  %v624 = vpop.f32.mrf.mxu0
  %v625 = vadd.f32 %v156, %v624
  %v626 = vpop.f32.mrf.mxu0
  %627 = vdwg.mxu0
  %628 = vmatpush.bf16.msra.mxu0 %v497
  %629 = vmatpush.bf16.msra.mxu0 %v496
  %630 = vmatpush.bf16.msra.mxu0 %v495
  %631 = vmatpush.bf16.msra.mxu0 %v494
  %632 = vmatpush.bf16.msra.mxu0 %v493
  %633 = vmatpush.bf16.msra.mxu0 %v492
  %634 = vmatpush.bf16.msra.mxu0 %v491
  %635 = vmatpush.bf16.msra.mxu0 %v490
  %636 = vmatmul.bf16.gmra.mxu0 %v195
  %v637 = vpop.f32.mrf.mxu0
  %v638 = vadd.f32 %v620, %v637
  %v639 = vpop.f32.mrf.mxu0
  %v640 = vadd.f32 %v622, %v639
  %641 = vmatmul.bf16.gmra.mxu0 %v203
  %v642 = vpop.f32.mrf.mxu0
  %v643 = vadd.f32 %v625, %v642
  %v644 = vpop.f32.mrf.mxu0
  %645 = vdwg.mxu0
  %646 = vmatpush.bf16.msra.mxu0 %v505
  %647 = vmatpush.bf16.msra.mxu0 %v504
  %648 = vmatpush.bf16.msra.mxu0 %v503
  %649 = vmatpush.bf16.msra.mxu0 %v502
  %650 = vmatpush.bf16.msra.mxu0 %v501
  %651 = vmatpush.bf16.msra.mxu0 %v500
  %652 = vmatpush.bf16.msra.mxu0 %v499
  %653 = vmatpush.bf16.msra.mxu0 %v498
  %654 = vmatmul.bf16.gmra.mxu0 %v196
  %v655 = vpop.f32.mrf.mxu0
  %v656 = vadd.f32 %v638, %v655
  %v657 = vpop.f32.mrf.mxu0
  %v658 = vadd.f32 %v640, %v657
  %659 = vmatmul.bf16.gmra.mxu0 %v204
  %v660 = vpop.f32.mrf.mxu0
  %v661 = vadd.f32 %v643, %v660
  %v662 = vpop.f32.mrf.mxu0
  %663 = vdwg.mxu0
  %664 = vmatpush.bf16.msra.mxu0 %v513
  %665 = vmatpush.bf16.msra.mxu0 %v512
  %666 = vmatpush.bf16.msra.mxu0 %v511
  %667 = vmatpush.bf16.msra.mxu0 %v510
  %668 = vmatpush.bf16.msra.mxu0 %v509
  %669 = vmatpush.bf16.msra.mxu0 %v508
  %670 = vmatpush.bf16.msra.mxu0 %v507
  %671 = vmatpush.bf16.msra.mxu0 %v506
  %672 = vmatmul.bf16.gmra.mxu0 %v197
  %v673 = vpop.f32.mrf.mxu0
  %v674 = vadd.f32 %v656, %v673
  %v675 = vpop.f32.mrf.mxu0
  %v676 = vadd.f32 %v658, %v675
  %677 = vmatmul.bf16.gmra.mxu0 %v205
  %v678 = vpop.f32.mrf.mxu0
  %v679 = vadd.f32 %v661, %v678
  %v680 = vpop.f32.mrf.mxu0
  %681 = vdwg.mxu0
  %682 = vmatpush.bf16.msra.mxu0 %v521
  %683 = vmatpush.bf16.msra.mxu0 %v520
  %684 = vmatpush.bf16.msra.mxu0 %v519
  %685 = vmatpush.bf16.msra.mxu0 %v518
  %686 = vmatpush.bf16.msra.mxu0 %v517
  %687 = vmatpush.bf16.msra.mxu0 %v516
  %688 = vmatpush.bf16.msra.mxu0 %v515
  %689 = vmatpush.bf16.msra.mxu0 %v514
  %690 = vmatmul.bf16.gmra.mxu0 %v198
  %v691 = vpop.f32.mrf.mxu0
  %v692 = vadd.f32 %v674, %v691
  %v693 = vpop.f32.mrf.mxu0
  %v694 = vadd.f32 %v676, %v693
  %695 = vmatmul.bf16.gmra.mxu0 %v206
  %v696 = vpop.f32.mrf.mxu0
  %v697 = vadd.f32 %v679, %v696
  %v698 = vpop.f32.mrf.mxu0
  %699 = vdwg.mxu0
  %700 = vmatpush.bf16.msra.mxu0 %v529
  %701 = vmatpush.bf16.msra.mxu0 %v528
  %702 = vmatpush.bf16.msra.mxu0 %v527
  %703 = vmatpush.bf16.msra.mxu0 %v526
  %704 = vmatpush.bf16.msra.mxu0 %v525
  %705 = vmatpush.bf16.msra.mxu0 %v524
  %706 = vmatpush.bf16.msra.mxu0 %v523
  %707 = vmatpush.bf16.msra.mxu0 %v522
  %708 = vmatmul.bf16.gmra.mxu0 %v199
  %v709 = vpop.f32.mrf.mxu0
  %v710 = vadd.f32 %v692, %v709
  %v711 = vpop.f32.mrf.mxu0
  %v712 = vadd.f32 %v694, %v711
  %713 = vmatmul.bf16.gmra.mxu0 %v207
  %v714 = vpop.f32.mrf.mxu0
  %v715 = vadd.f32 %v697, %v714
  %v716 = vpop.f32.mrf.mxu0
  %717 = vdwg.mxu0
  %718 = vmatpush.bf16.msra.mxu0 %v537
  %719 = vmatpush.bf16.msra.mxu0 %v536
  %720 = vmatpush.bf16.msra.mxu0 %v535
  %721 = vmatpush.bf16.msra.mxu0 %v534
  %722 = vmatpush.bf16.msra.mxu0 %v533
  %723 = vmatpush.bf16.msra.mxu0 %v532
  %724 = vmatpush.bf16.msra.mxu0 %v531
  %725 = vmatpush.bf16.msra.mxu0 %v530
  %726 = vmatmul.bf16.gmra.mxu0 %v200
  %v727 = vpop.f32.mrf.mxu0
  %v728 = vadd.f32 %v710, %v727
  %v729 = vpop.f32.mrf.mxu0
  %v730 = vadd.f32 %v712, %v729
  %731 = vmatmul.bf16.gmra.mxu0 %v208
  %v732 = vpop.f32.mrf.mxu0
  %v733 = vadd.f32 %v715, %v732
  %v734 = vpop.f32.mrf.mxu0
  %735 = vdwg.mxu0
  %736 = vmatpush.bf16.msra.mxu0 %v545
  %737 = vmatpush.bf16.msra.mxu0 %v544
  %738 = vmatpush.bf16.msra.mxu0 %v543
  %739 = vmatpush.bf16.msra.mxu0 %v542
  %740 = vmatpush.bf16.msra.mxu0 %v541
  %741 = vmatpush.bf16.msra.mxu0 %v540
  %742 = vmatpush.bf16.msra.mxu0 %v539
  %743 = vmatpush.bf16.msra.mxu0 %v538
  %744 = vmatmul.bf16.gmra.mxu0 %v201
  %v745 = vpop.f32.mrf.mxu0
  %v746 = vadd.f32 %v728, %v745
  %v747 = vpop.f32.mrf.mxu0
  %v748 = vadd.f32 %v730, %v747
  %749 = vmatmul.bf16.gmra.mxu0 %v209
  %v750 = vpop.f32.mrf.mxu0
  %v751 = vadd.f32 %v733, %v750
  %v752 = vpop.f32.mrf.mxu0
  %753 = vdwg.mxu0
  %v754 = vpack.c.bf16 %v746, %v746
  %v755 = vpack.c.bf16 %v748, %v748
  %v756 = vpack.c.bf16 %v751, %v751
  %757 = vst [vmem:[%s3] sm:$0xf] %v754
  %758 = vst [vmem:[%s3 + $0x4] sm:$0xf] %v755
  %759 = vst [vmem:[%s3 + $0x8] sm:$0xf] %v756
  // Predicated region
  $region14: #{_lambda_.13} parent=0 // pred_check
    _
  $region15: #{_lambda_.13} parent=0 // pred_check_branch
    %761 = sbr.rel (0) target = $region17
  $region16: #{_lambda_.13} parent=0 // pred_region
    _
  $region17: #{_lambda_.13} parent=0 // pred_fallthru
    _
  // Predicated region
  $region18: #{_lambda_.13} parent=0 // pred_check
    _
  $region19: #{_lambda_.13} parent=0 // pred_check_branch
    %763 = sbr.rel (0) target = $region21
  $region20: #{_lambda_.13} parent=0 // pred_region
    _
  $region21: #{_lambda_.13} parent=0 // pred_fallthru
    _

// kernel: _lambda_.15
$region0: #{_lambda_.15}
  #allocation0 [shape = 'u32[]', space=smem, size = 0x4, offset = 0x4, fixed_abs, tag = 'smem constant byte address 0x4 - core index']
  #allocation1 [shape = 'u32[72,128]{1,0:T(1,128)}', space=vmem, size = 0x9000, scoped, tag = 'internal scratch']
  %s0 = inlined_call_operand.vmem [shape: bf16[8,2048], index: 0, kind: input, shape index: {}]
  %s1 = inlined_call_operand.vmem [shape: bf16[2048,128], index: 1, kind: input, shape index: {}]
  %s2 = inlined_call_operand.vmem [shape: f32[1,128], index: 2, kind: input, shape index: {}]
  %s3 = inlined_call_operand.vmem [shape: f32[8,128], index: 3, kind: output, shape index: {}]
  %s4 = sld [smem:[#allocation0]]
  $region22: #{_lambda_.15} parent=0
    _
  %s6 = ssub.s32 1, %s4
  %s7 = scalar_select 0, %s6, %s4
  // Predicated region
  $region2: #{_lambda_.15} parent=0 // pred_check
    _
  $region3: #{_lambda_.15} parent=0 // pred_check_branch
    %9 = sbr.rel (0) target = $region5
  $region4: #{_lambda_.15} parent=0 // pred_region
    _
  $region5: #{_lambda_.15} parent=0 // pred_fallthru
    _
  // Predicated region
  $region6: #{_lambda_.15} parent=0 // pred_check
    _
  $region7: #{_lambda_.15} parent=0 // pred_check_branch
    %11 = sbr.rel (0) target = $region9
  $region8: #{_lambda_.15} parent=0 // pred_region
    _
  $region9: #{_lambda_.15} parent=0 // pred_fallthru
    _
  // Predicated region
  $region10: #{_lambda_.15} parent=0 // pred_check
    _
  $region11: #{_lambda_.15} parent=0 // pred_check_branch
    %13 = sbr.rel (0) target = $region13
  $region12: #{_lambda_.15} parent=0 // pred_region
    _
  $region13: #{_lambda_.15} parent=0 // pred_fallthru
    _
  %v14 = vld [vmem:[%s0] sm:$0xff]
  %v15 = vld [vmem:[%s0 + $0x8] sm:$0xff]
  %v16 = vld [vmem:[%s0 + $0x10] sm:$0xff]
  %v17 = vld [vmem:[%s0 + $0x18] sm:$0xff]
  %v18 = vld [vmem:[%s0 + $0x20] sm:$0xff]
  %v19 = vld [vmem:[%s0 + $0x28] sm:$0xff]
  %v20 = vld [vmem:[%s0 + $0x30] sm:$0xff]
  %v21 = vld [vmem:[%s0 + $0x38] sm:$0xff]
  %v22 = vld [vmem:[%s1] sm:$0xf]
  %v23 = vld [vmem:[%s1 + $0x4] sm:$0xf]
  %v24 = vld [vmem:[%s1 + $0x8] sm:$0xf]
  %v25 = vld [vmem:[%s1 + $0xc] sm:$0xf]
  %v26 = vld [vmem:[%s1 + $0x10] sm:$0xf]
  %v27 = vld [vmem:[%s1 + $0x14] sm:$0xf]
  %v28 = vld [vmem:[%s1 + $0x18] sm:$0xf]
  %v29 = vld [vmem:[%s1 + $0x1c] sm:$0xf]
  %v30 = vld [vmem:[%s1 + $0x20] sm:$0xf]
  %v31 = vld [vmem:[%s1 + $0x24] sm:$0xf]
  %v32 = vld [vmem:[%s1 + $0x28] sm:$0xf]
  %v33 = vld [vmem:[%s1 + $0x2c] sm:$0xf]
  %v34 = vld [vmem:[%s1 + $0x30] sm:$0xf]
  %v35 = vld [vmem:[%s1 + $0x34] sm:$0xf]
  %v36 = vld [vmem:[%s1 + $0x38] sm:$0xf]
  %v37 = vld [vmem:[%s1 + $0x3c] sm:$0xf]
  %v38 = vld [vmem:[%s1 + $0x40] sm:$0xf]
  %v39 = vld [vmem:[%s1 + $0x44] sm:$0xf]
  %v40 = vld [vmem:[%s1 + $0x48] sm:$0xf]
  %v41 = vld [vmem:[%s1 + $0x4c] sm:$0xf]
  %v42 = vld [vmem:[%s1 + $0x50] sm:$0xf]
  %v43 = vld [vmem:[%s1 + $0x54] sm:$0xf]
  %v44 = vld [vmem:[%s1 + $0x58] sm:$0xf]
  %v45 = vld [vmem:[%s1 + $0x5c] sm:$0xf]
  %v46 = vld [vmem:[%s1 + $0x60] sm:$0xf]
  %v47 = vld [vmem:[%s1 + $0x64] sm:$0xf]
  %v48 = vld [vmem:[%s1 + $0x68] sm:$0xf]
  %v49 = vld [vmem:[%s1 + $0x6c] sm:$0xf]
  %v50 = vld [vmem:[%s1 + $0x70] sm:$0xf]
  %v51 = vld [vmem:[%s1 + $0x74] sm:$0xf]
  %v52 = vld [vmem:[%s1 + $0x78] sm:$0xf]
  %v53 = vld [vmem:[%s1 + $0x7c] sm:$0xf]
  %v54 = vld [vmem:[%s1 + $0x80] sm:$0xf]
  %v55 = vld [vmem:[%s1 + $0x84] sm:$0xf]
  %v56 = vld [vmem:[%s1 + $0x88] sm:$0xf]
  %v57 = vld [vmem:[%s1 + $0x8c] sm:$0xf]
  %v58 = vld [vmem:[%s1 + $0x90] sm:$0xf]
  %v59 = vld [vmem:[%s1 + $0x94] sm:$0xf]
  %v60 = vld [vmem:[%s1 + $0x98] sm:$0xf]
  %v61 = vld [vmem:[%s1 + $0x9c] sm:$0xf]
  %v62 = vld [vmem:[%s1 + $0xa0] sm:$0xf]
  %v63 = vld [vmem:[%s1 + $0xa4] sm:$0xf]
  %v64 = vld [vmem:[%s1 + $0xa8] sm:$0xf]
  %v65 = vld [vmem:[%s1 + $0xac] sm:$0xf]
  %v66 = vld [vmem:[%s1 + $0xb0] sm:$0xf]
  %v67 = vld [vmem:[%s1 + $0xb4] sm:$0xf]
  %v68 = vld [vmem:[%s1 + $0xb8] sm:$0xf]
  %v69 = vld [vmem:[%s1 + $0xbc] sm:$0xf]
  %v70 = vld [vmem:[%s1 + $0xc0] sm:$0xf]
  %v71 = vld [vmem:[%s1 + $0xc4] sm:$0xf]
  %v72 = vld [vmem:[%s1 + $0xc8] sm:$0xf]
  %v73 = vld [vmem:[%s1 + $0xcc] sm:$0xf]
  %v74 = vld [vmem:[%s1 + $0xd0] sm:$0xf]
  %v75 = vld [vmem:[%s1 + $0xd4] sm:$0xf]
  %v76 = vld [vmem:[%s1 + $0xd8] sm:$0xf]
  %v77 = vld [vmem:[%s1 + $0xdc] sm:$0xf]
  %v78 = vld [vmem:[%s1 + $0xe0] sm:$0xf]
  %v79 = vld [vmem:[%s1 + $0xe4] sm:$0xf]
  %v80 = vld [vmem:[%s1 + $0xe8] sm:$0xf]
  %v81 = vld [vmem:[%s1 + $0xec] sm:$0xf]
  %v82 = vld [vmem:[%s1 + $0xf0] sm:$0xf]
  %v83 = vld [vmem:[%s1 + $0xf4] sm:$0xf]
  %v84 = vld [vmem:[%s1 + $0xf8] sm:$0xf]
  %v85 = vld [vmem:[%s1 + $0xfc] sm:$0xf]
  %v86 = vld [vmem:[%s1 + $0x100] sm:$0xf]
  %v87 = vld [vmem:[%s1 + $0x104] sm:$0xf]
  %v88 = vld [vmem:[%s1 + $0x108] sm:$0xf]
  %v89 = vld [vmem:[%s1 + $0x10c] sm:$0xf]
  %v90 = vld [vmem:[%s1 + $0x110] sm:$0xf]
  %v91 = vld [vmem:[%s1 + $0x114] sm:$0xf]
  %v92 = vld [vmem:[%s1 + $0x118] sm:$0xf]
  %v93 = vld [vmem:[%s1 + $0x11c] sm:$0xf]
  %v94 = vld [vmem:[%s1 + $0x120] sm:$0xf]
  %v95 = vld [vmem:[%s1 + $0x124] sm:$0xf]
  %v96 = vld [vmem:[%s1 + $0x128] sm:$0xf]
  %v97 = vld [vmem:[%s1 + $0x12c] sm:$0xf]
  %v98 = vld [vmem:[%s1 + $0x130] sm:$0xf]
  %v99 = vld [vmem:[%s1 + $0x134] sm:$0xf]
  %v100 = vld [vmem:[%s1 + $0x138] sm:$0xf]
  %v101 = vld [vmem:[%s1 + $0x13c] sm:$0xf]
  %v102 = vld [vmem:[%s1 + $0x140] sm:$0xf]
  %v103 = vld [vmem:[%s1 + $0x144] sm:$0xf]
  %v104 = vld [vmem:[%s1 + $0x148] sm:$0xf]
  %v105 = vld [vmem:[%s1 + $0x14c] sm:$0xf]
  %v106 = vld [vmem:[%s1 + $0x150] sm:$0xf]
  %v107 = vld [vmem:[%s1 + $0x154] sm:$0xf]
  %v108 = vld [vmem:[%s1 + $0x158] sm:$0xf]
  %v109 = vld [vmem:[%s1 + $0x15c] sm:$0xf]
  %v110 = vld [vmem:[%s1 + $0x160] sm:$0xf]
  %v111 = vld [vmem:[%s1 + $0x164] sm:$0xf]
  %v112 = vld [vmem:[%s1 + $0x168] sm:$0xf]
  %v113 = vld [vmem:[%s1 + $0x16c] sm:$0xf]
  %v114 = vld [vmem:[%s1 + $0x170] sm:$0xf]
  %v115 = vld [vmem:[%s1 + $0x174] sm:$0xf]
  %v116 = vld [vmem:[%s1 + $0x178] sm:$0xf]
  %v117 = vld [vmem:[%s1 + $0x17c] sm:$0xf]
  %v118 = vld [vmem:[%s1 + $0x180] sm:$0xf]
  %v119 = vld [vmem:[%s1 + $0x184] sm:$0xf]
  %v120 = vld [vmem:[%s1 + $0x188] sm:$0xf]
  %v121 = vld [vmem:[%s1 + $0x18c] sm:$0xf]
  %v122 = vld [vmem:[%s1 + $0x190] sm:$0xf]
  %v123 = vld [vmem:[%s1 + $0x194] sm:$0xf]
  %v124 = vld [vmem:[%s1 + $0x198] sm:$0xf]
  %v125 = vld [vmem:[%s1 + $0x19c] sm:$0xf]
  %v126 = vld [vmem:[%s1 + $0x1a0] sm:$0xf]
  %v127 = vld [vmem:[%s1 + $0x1a4] sm:$0xf]
  %v128 = vld [vmem:[%s1 + $0x1a8] sm:$0xf]
  %v129 = vld [vmem:[%s1 + $0x1ac] sm:$0xf]
  %v130 = vld [vmem:[%s1 + $0x1b0] sm:$0xf]
  %v131 = vld [vmem:[%s1 + $0x1b4] sm:$0xf]
  %v132 = vld [vmem:[%s1 + $0x1b8] sm:$0xf]
  %v133 = vld [vmem:[%s1 + $0x1bc] sm:$0xf]
  %v134 = vld [vmem:[%s1 + $0x1c0] sm:$0xf]
  %v135 = vld [vmem:[%s1 + $0x1c4] sm:$0xf]
  %v136 = vld [vmem:[%s1 + $0x1c8] sm:$0xf]
  %v137 = vld [vmem:[%s1 + $0x1cc] sm:$0xf]
  %v138 = vld [vmem:[%s1 + $0x1d0] sm:$0xf]
  %v139 = vld [vmem:[%s1 + $0x1d4] sm:$0xf]
  %v140 = vld [vmem:[%s1 + $0x1d8] sm:$0xf]
  %v141 = vld [vmem:[%s1 + $0x1dc] sm:$0xf]
  %v142 = vld [vmem:[%s1 + $0x1e0] sm:$0xf]
  %v143 = vld [vmem:[%s1 + $0x1e4] sm:$0xf]
  %v144 = vld [vmem:[%s1 + $0x1e8] sm:$0xf]
  %v145 = vld [vmem:[%s1 + $0x1ec] sm:$0xf]
  %v146 = vld [vmem:[%s1 + $0x1f0] sm:$0xf]
  %v147 = vld [vmem:[%s1 + $0x1f4] sm:$0xf]
  %v148 = vld [vmem:[%s1 + $0x1f8] sm:$0xf]
  %v149 = vld [vmem:[%s1 + $0x1fc] sm:$0xf]
  %v150 = vld [vmem:[%s1 + $0x200] sm:$0xf]
  %v151 = vld [vmem:[%s1 + $0x204] sm:$0xf]
  %v152 = vld [vmem:[%s1 + $0x208] sm:$0xf]
  %v153 = vld [vmem:[%s1 + $0x20c] sm:$0xf]
  %v154 = vld [vmem:[%s1 + $0x210] sm:$0xf]
  %v155 = vld [vmem:[%s1 + $0x214] sm:$0xf]
  %v156 = vld [vmem:[%s1 + $0x218] sm:$0xf]
  %v157 = vld [vmem:[%s1 + $0x21c] sm:$0xf]
  %v158 = vld [vmem:[%s1 + $0x220] sm:$0xf]
  %v159 = vld [vmem:[%s1 + $0x224] sm:$0xf]
  %v160 = vld [vmem:[%s1 + $0x228] sm:$0xf]
  %v161 = vld [vmem:[%s1 + $0x22c] sm:$0xf]
  %v162 = vld [vmem:[%s1 + $0x230] sm:$0xf]
  %v163 = vld [vmem:[%s1 + $0x234] sm:$0xf]
  %v164 = vld [vmem:[%s1 + $0x238] sm:$0xf]
  %v165 = vld [vmem:[%s1 + $0x23c] sm:$0xf]
  %v166 = vld [vmem:[%s1 + $0x240] sm:$0xf]
  %v167 = vld [vmem:[%s1 + $0x244] sm:$0xf]
  %v168 = vld [vmem:[%s1 + $0x248] sm:$0xf]
  %v169 = vld [vmem:[%s1 + $0x24c] sm:$0xf]
  %v170 = vld [vmem:[%s1 + $0x250] sm:$0xf]
  %v171 = vld [vmem:[%s1 + $0x254] sm:$0xf]
  %v172 = vld [vmem:[%s1 + $0x258] sm:$0xf]
  %v173 = vld [vmem:[%s1 + $0x25c] sm:$0xf]
  %v174 = vld [vmem:[%s1 + $0x260] sm:$0xf]
  %v175 = vld [vmem:[%s1 + $0x264] sm:$0xf]
  %v176 = vld [vmem:[%s1 + $0x268] sm:$0xf]
  %v177 = vld [vmem:[%s1 + $0x26c] sm:$0xf]
  %v178 = vld [vmem:[%s1 + $0x270] sm:$0xf]
  %v179 = vld [vmem:[%s1 + $0x274] sm:$0xf]
  %v180 = vld [vmem:[%s1 + $0x278] sm:$0xf]
  %v181 = vld [vmem:[%s1 + $0x27c] sm:$0xf]
  %v182 = vld [vmem:[%s1 + $0x280] sm:$0xf]
  %v183 = vld [vmem:[%s1 + $0x284] sm:$0xf]
  %v184 = vld [vmem:[%s1 + $0x288] sm:$0xf]
  %v185 = vld [vmem:[%s1 + $0x28c] sm:$0xf]
  %v186 = vld [vmem:[%s1 + $0x290] sm:$0xf]
  %v187 = vld [vmem:[%s1 + $0x294] sm:$0xf]
  %v188 = vld [vmem:[%s1 + $0x298] sm:$0xf]
  %v189 = vld [vmem:[%s1 + $0x29c] sm:$0xf]
  %v190 = vld [vmem:[%s1 + $0x2a0] sm:$0xf]
  %v191 = vld [vmem:[%s1 + $0x2a4] sm:$0xf]
  %v192 = vld [vmem:[%s1 + $0x2a8] sm:$0xf]
  %v193 = vld [vmem:[%s1 + $0x2ac] sm:$0xf]
  %v194 = vld [vmem:[%s1 + $0x2b0] sm:$0xf]
  %v195 = vld [vmem:[%s1 + $0x2b4] sm:$0xf]
  %v196 = vld [vmem:[%s1 + $0x2b8] sm:$0xf]
  %v197 = vld [vmem:[%s1 + $0x2bc] sm:$0xf]
  %v198 = vld [vmem:[%s1 + $0x2c0] sm:$0xf]
  %v199 = vld [vmem:[%s1 + $0x2c4] sm:$0xf]
  %v200 = vld [vmem:[%s1 + $0x2c8] sm:$0xf]
  %v201 = vld [vmem:[%s1 + $0x2cc] sm:$0xf]
  %v202 = vld [vmem:[%s1 + $0x2d0] sm:$0xf]
  %v203 = vld [vmem:[%s1 + $0x2d4] sm:$0xf]
  %v204 = vld [vmem:[%s1 + $0x2d8] sm:$0xf]
  %v205 = vld [vmem:[%s1 + $0x2dc] sm:$0xf]
  %v206 = vld [vmem:[%s1 + $0x2e0] sm:$0xf]
  %v207 = vld [vmem:[%s1 + $0x2e4] sm:$0xf]
  %v208 = vld [vmem:[%s1 + $0x2e8] sm:$0xf]
  %v209 = vld [vmem:[%s1 + $0x2ec] sm:$0xf]
  %v210 = vld [vmem:[%s1 + $0x2f0] sm:$0xf]
  %v211 = vld [vmem:[%s1 + $0x2f4] sm:$0xf]
  %v212 = vld [vmem:[%s1 + $0x2f8] sm:$0xf]
  %v213 = vld [vmem:[%s1 + $0x2fc] sm:$0xf]
  %v214 = vld [vmem:[%s1 + $0x300] sm:$0xf]
  %v215 = vld [vmem:[%s1 + $0x304] sm:$0xf]
  %v216 = vld [vmem:[%s1 + $0x308] sm:$0xf]
  %v217 = vld [vmem:[%s1 + $0x30c] sm:$0xf]
  %v218 = vld [vmem:[%s1 + $0x310] sm:$0xf]
  %v219 = vld [vmem:[%s1 + $0x314] sm:$0xf]
  %v220 = vld [vmem:[%s1 + $0x318] sm:$0xf]
  %v221 = vld [vmem:[%s1 + $0x31c] sm:$0xf]
  %v222 = vld [vmem:[%s1 + $0x320] sm:$0xf]
  %v223 = vld [vmem:[%s1 + $0x324] sm:$0xf]
  %v224 = vld [vmem:[%s1 + $0x328] sm:$0xf]
  %v225 = vld [vmem:[%s1 + $0x32c] sm:$0xf]
  %v226 = vld [vmem:[%s1 + $0x330] sm:$0xf]
  %v227 = vld [vmem:[%s1 + $0x334] sm:$0xf]
  %v228 = vld [vmem:[%s1 + $0x338] sm:$0xf]
  %v229 = vld [vmem:[%s1 + $0x33c] sm:$0xf]
  %v230 = vld [vmem:[%s1 + $0x340] sm:$0xf]
  %v231 = vld [vmem:[%s1 + $0x344] sm:$0xf]
  %v232 = vld [vmem:[%s1 + $0x348] sm:$0xf]
  %v233 = vld [vmem:[%s1 + $0x34c] sm:$0xf]
  %v234 = vld [vmem:[%s1 + $0x350] sm:$0xf]
  %v235 = vld [vmem:[%s1 + $0x354] sm:$0xf]
  %v236 = vld [vmem:[%s1 + $0x358] sm:$0xf]
  %v237 = vld [vmem:[%s1 + $0x35c] sm:$0xf]
  %v238 = vld [vmem:[%s1 + $0x360] sm:$0xf]
  %v239 = vld [vmem:[%s1 + $0x364] sm:$0xf]
  %v240 = vld [vmem:[%s1 + $0x368] sm:$0xf]
  %v241 = vld [vmem:[%s1 + $0x36c] sm:$0xf]
  %v242 = vld [vmem:[%s1 + $0x370] sm:$0xf]
  %v243 = vld [vmem:[%s1 + $0x374] sm:$0xf]
  %v244 = vld [vmem:[%s1 + $0x378] sm:$0xf]
  %v245 = vld [vmem:[%s1 + $0x37c] sm:$0xf]
  %v246 = vld [vmem:[%s1 + $0x380] sm:$0xf]
  %v247 = vld [vmem:[%s1 + $0x384] sm:$0xf]
  %v248 = vld [vmem:[%s1 + $0x388] sm:$0xf]
  %v249 = vld [vmem:[%s1 + $0x38c] sm:$0xf]
  %v250 = vld [vmem:[%s1 + $0x390] sm:$0xf]
  %v251 = vld [vmem:[%s1 + $0x394] sm:$0xf]
  %v252 = vld [vmem:[%s1 + $0x398] sm:$0xf]
  %v253 = vld [vmem:[%s1 + $0x39c] sm:$0xf]
  %v254 = vld [vmem:[%s1 + $0x3a0] sm:$0xf]
  %v255 = vld [vmem:[%s1 + $0x3a4] sm:$0xf]
  %v256 = vld [vmem:[%s1 + $0x3a8] sm:$0xf]
  %v257 = vld [vmem:[%s1 + $0x3ac] sm:$0xf]
  %v258 = vld [vmem:[%s1 + $0x3b0] sm:$0xf]
  %v259 = vld [vmem:[%s1 + $0x3b4] sm:$0xf]
  %v260 = vld [vmem:[%s1 + $0x3b8] sm:$0xf]
  %v261 = vld [vmem:[%s1 + $0x3bc] sm:$0xf]
  %v262 = vld [vmem:[%s1 + $0x3c0] sm:$0xf]
  %v263 = vld [vmem:[%s1 + $0x3c4] sm:$0xf]
  %v264 = vld [vmem:[%s1 + $0x3c8] sm:$0xf]
  %v265 = vld [vmem:[%s1 + $0x3cc] sm:$0xf]
  %v266 = vld [vmem:[%s1 + $0x3d0] sm:$0xf]
  %v267 = vld [vmem:[%s1 + $0x3d4] sm:$0xf]
  %v268 = vld [vmem:[%s1 + $0x3d8] sm:$0xf]
  %v269 = vld [vmem:[%s1 + $0x3dc] sm:$0xf]
  %v270 = vld [vmem:[%s1 + $0x3e0] sm:$0xf]
  %v271 = vld [vmem:[%s1 + $0x3e4] sm:$0xf]
  %v272 = vld [vmem:[%s1 + $0x3e8] sm:$0xf]
  %v273 = vld [vmem:[%s1 + $0x3ec] sm:$0xf]
  %v274 = vld [vmem:[%s1 + $0x3f0] sm:$0xf]
  %v275 = vld [vmem:[%s1 + $0x3f4] sm:$0xf]
  %v276 = vld [vmem:[%s1 + $0x3f8] sm:$0xf]
  %v277 = vld [vmem:[%s1 + $0x3fc] sm:$0xf]
  %v278 = vld [vmem:[%s2] sm:$0x1]
  %v280 = vperm.slane %v278, 0
  %v290 = vunpack.c.l.b16 %v14
  %v291 = vunpack.c.h.b16 %v14
  %v292 = vunpack.c.l.b16 %v15
  %v293 = vunpack.c.h.b16 %v15
  %v294 = vunpack.c.l.b16 %v16
  %v295 = vunpack.c.h.b16 %v16
  %v296 = vunpack.c.l.b16 %v17
  %v297 = vunpack.c.h.b16 %v17
  %v298 = vunpack.c.l.b16 %v18
  %v299 = vunpack.c.h.b16 %v18
  %v300 = vunpack.c.l.b16 %v19
  %v301 = vunpack.c.h.b16 %v19
  %v302 = vunpack.c.l.b16 %v20
  %v303 = vunpack.c.h.b16 %v20
  %v304 = vunpack.c.l.b16 %v21
  %v305 = vunpack.c.h.b16 %v21
  %v306 = vpack.c.b16 %v290, %v290
  %v307 = vpack.c.b16 %v291, %v291
  %v308 = vpack.c.b16 %v292, %v292
  %v309 = vpack.c.b16 %v293, %v293
  %v310 = vpack.c.b16 %v294, %v294
  %v311 = vpack.c.b16 %v295, %v295
  %v312 = vpack.c.b16 %v296, %v296
  %v313 = vpack.c.b16 %v297, %v297
  %v314 = vpack.c.b16 %v298, %v298
  %v315 = vpack.c.b16 %v299, %v299
  %v316 = vpack.c.b16 %v300, %v300
  %v317 = vpack.c.b16 %v301, %v301
  %v318 = vpack.c.b16 %v302, %v302
  %v319 = vpack.c.b16 %v303, %v303
  %v320 = vpack.c.b16 %v304, %v304
  %v321 = vpack.c.b16 %v305, %v305
  %v594 = vunpack.c.l.b16 %v22
  %v595 = vunpack.c.l.b16 %v23
  %v596 = vunpack.c.l.b16 %v24
  %v597 = vunpack.c.l.b16 %v25
  %v598 = vunpack.c.l.b16 %v26
  %v599 = vunpack.c.l.b16 %v27
  %v600 = vunpack.c.l.b16 %v28
  %v601 = vunpack.c.l.b16 %v29
  %v602 = vunpack.c.l.b16 %v30
  %v603 = vunpack.c.l.b16 %v31
  %v604 = vunpack.c.l.b16 %v32
  %v605 = vunpack.c.l.b16 %v33
  %v606 = vunpack.c.l.b16 %v34
  %v607 = vunpack.c.l.b16 %v35
  %v608 = vunpack.c.l.b16 %v36
  %v609 = vunpack.c.l.b16 %v37
  %v610 = vunpack.c.l.b16 %v38
  %v611 = vunpack.c.l.b16 %v39
  %v612 = vunpack.c.l.b16 %v40
  %v613 = vunpack.c.l.b16 %v41
  %v614 = vunpack.c.l.b16 %v42
  %v615 = vunpack.c.l.b16 %v43
  %v616 = vunpack.c.l.b16 %v44
  %v617 = vunpack.c.l.b16 %v45
  %v618 = vunpack.c.l.b16 %v46
  %v619 = vunpack.c.l.b16 %v47
  %v620 = vunpack.c.l.b16 %v48
  %v621 = vunpack.c.l.b16 %v49
  %v622 = vunpack.c.l.b16 %v50
  %v623 = vunpack.c.l.b16 %v51
  %v624 = vunpack.c.l.b16 %v52
  %v625 = vunpack.c.l.b16 %v53
  %v626 = vunpack.c.l.b16 %v54
  %v627 = vunpack.c.l.b16 %v55
  %v628 = vunpack.c.l.b16 %v56
  %v629 = vunpack.c.l.b16 %v57
  %v630 = vunpack.c.l.b16 %v58
  %v631 = vunpack.c.l.b16 %v59
  %v632 = vunpack.c.l.b16 %v60
  %v633 = vunpack.c.l.b16 %v61
  %v634 = vunpack.c.l.b16 %v62
  %v635 = vunpack.c.l.b16 %v63
  %v636 = vunpack.c.l.b16 %v64
  %v637 = vunpack.c.l.b16 %v65
  %v638 = vunpack.c.l.b16 %v66
  %v639 = vunpack.c.l.b16 %v67
  %v640 = vunpack.c.l.b16 %v68
  %v641 = vunpack.c.l.b16 %v69
  %v642 = vunpack.c.l.b16 %v70
  %v643 = vunpack.c.l.b16 %v71
  %v644 = vunpack.c.l.b16 %v72
  %v645 = vunpack.c.l.b16 %v73
  %v646 = vunpack.c.l.b16 %v74
  %v647 = vunpack.c.l.b16 %v75
  %v648 = vunpack.c.l.b16 %v76
  %v649 = vunpack.c.l.b16 %v77
  %v650 = vunpack.c.l.b16 %v78
  %v651 = vunpack.c.l.b16 %v79
  %v652 = vunpack.c.l.b16 %v80
  %v653 = vunpack.c.l.b16 %v81
  %v654 = vunpack.c.l.b16 %v82
  %v655 = vunpack.c.l.b16 %v83
  %v656 = vunpack.c.l.b16 %v84
  %v657 = vunpack.c.l.b16 %v85
  %v658 = vunpack.c.l.b16 %v86
  %v659 = vunpack.c.l.b16 %v87
  %v660 = vunpack.c.l.b16 %v88
  %v661 = vunpack.c.l.b16 %v89
  %v662 = vunpack.c.l.b16 %v90
  %v663 = vunpack.c.l.b16 %v91
  %v664 = vunpack.c.l.b16 %v92
  %v665 = vunpack.c.l.b16 %v93
  %v666 = vunpack.c.l.b16 %v94
  %v667 = vunpack.c.l.b16 %v95
  %v668 = vunpack.c.l.b16 %v96
  %v669 = vunpack.c.l.b16 %v97
  %v670 = vunpack.c.l.b16 %v98
  %v671 = vunpack.c.l.b16 %v99
  %v672 = vunpack.c.l.b16 %v100
  %v673 = vunpack.c.l.b16 %v101
  %v674 = vunpack.c.l.b16 %v102
  %v675 = vunpack.c.l.b16 %v103
  %v676 = vunpack.c.l.b16 %v104
  %v677 = vunpack.c.l.b16 %v105
  %v678 = vunpack.c.l.b16 %v106
  %v679 = vunpack.c.l.b16 %v107
  %v680 = vunpack.c.l.b16 %v108
  %v681 = vunpack.c.l.b16 %v109
  %v682 = vunpack.c.l.b16 %v110
  %v683 = vunpack.c.l.b16 %v111
  %v684 = vunpack.c.l.b16 %v112
  %v685 = vunpack.c.l.b16 %v113
  %v686 = vunpack.c.l.b16 %v114
  %v687 = vunpack.c.l.b16 %v115
  %v688 = vunpack.c.l.b16 %v116
  %v689 = vunpack.c.l.b16 %v117
  %v690 = vunpack.c.l.b16 %v118
  %v691 = vunpack.c.l.b16 %v119
  %v692 = vunpack.c.l.b16 %v120
  %v693 = vunpack.c.l.b16 %v121
  %v694 = vunpack.c.l.b16 %v122
  %v695 = vunpack.c.l.b16 %v123
  %v696 = vunpack.c.l.b16 %v124
  %v697 = vunpack.c.l.b16 %v125
  %v698 = vunpack.c.l.b16 %v126
  %v699 = vunpack.c.l.b16 %v127
  %v700 = vunpack.c.l.b16 %v128
  %v701 = vunpack.c.l.b16 %v129
  %v702 = vunpack.c.l.b16 %v130
  %v703 = vunpack.c.l.b16 %v131
  %v704 = vunpack.c.l.b16 %v132
  %v705 = vunpack.c.l.b16 %v133
  %v706 = vunpack.c.l.b16 %v134
  %v707 = vunpack.c.l.b16 %v135
  %v708 = vunpack.c.l.b16 %v136
  %v709 = vunpack.c.l.b16 %v137
  %v710 = vunpack.c.l.b16 %v138
  %v711 = vunpack.c.l.b16 %v139
  %v712 = vunpack.c.l.b16 %v140
  %v713 = vunpack.c.l.b16 %v141
  %v714 = vunpack.c.l.b16 %v142
  %v715 = vunpack.c.l.b16 %v143
  %v716 = vunpack.c.l.b16 %v144
  %v717 = vunpack.c.l.b16 %v145
  %v718 = vunpack.c.l.b16 %v146
  %v719 = vunpack.c.l.b16 %v147
  %v720 = vunpack.c.l.b16 %v148
  %v721 = vunpack.c.l.b16 %v149
  %v722 = vunpack.c.l.b16 %v150
  %v723 = vunpack.c.l.b16 %v151
  %v724 = vunpack.c.l.b16 %v152
  %v725 = vunpack.c.l.b16 %v153
  %v726 = vunpack.c.l.b16 %v154
  %v727 = vunpack.c.l.b16 %v155
  %v728 = vunpack.c.l.b16 %v156
  %v729 = vunpack.c.l.b16 %v157
  %v730 = vunpack.c.l.b16 %v158
  %v731 = vunpack.c.l.b16 %v159
  %v732 = vunpack.c.l.b16 %v160
  %v733 = vunpack.c.l.b16 %v161
  %v734 = vunpack.c.l.b16 %v162
  %v735 = vunpack.c.l.b16 %v163
  %v736 = vunpack.c.l.b16 %v164
  %v737 = vunpack.c.l.b16 %v165
  %v738 = vunpack.c.l.b16 %v166
  %v739 = vunpack.c.l.b16 %v167
  %v740 = vunpack.c.l.b16 %v168
  %v741 = vunpack.c.l.b16 %v169
  %v742 = vunpack.c.l.b16 %v170
  %v743 = vunpack.c.l.b16 %v171
  %v744 = vunpack.c.l.b16 %v172
  %v745 = vunpack.c.l.b16 %v173
  %v746 = vunpack.c.l.b16 %v174
  %v747 = vunpack.c.l.b16 %v175
  %v748 = vunpack.c.l.b16 %v176
  %v749 = vunpack.c.l.b16 %v177
  %v750 = vunpack.c.l.b16 %v178
  %v751 = vunpack.c.l.b16 %v179
  %v752 = vunpack.c.l.b16 %v180
  %v753 = vunpack.c.l.b16 %v181
  %v754 = vunpack.c.l.b16 %v182
  %v755 = vunpack.c.l.b16 %v183
  %v756 = vunpack.c.l.b16 %v184
  %v757 = vunpack.c.l.b16 %v185
  %v758 = vunpack.c.l.b16 %v186
  %v759 = vunpack.c.l.b16 %v187
  %v760 = vunpack.c.l.b16 %v188
  %v761 = vunpack.c.l.b16 %v189
  %v762 = vunpack.c.l.b16 %v190
  %v763 = vunpack.c.l.b16 %v191
  %v764 = vunpack.c.l.b16 %v192
  %v765 = vunpack.c.l.b16 %v193
  %v766 = vunpack.c.l.b16 %v194
  %v767 = vunpack.c.l.b16 %v195
  %v768 = vunpack.c.l.b16 %v196
  %v769 = vunpack.c.l.b16 %v197
  %v770 = vunpack.c.l.b16 %v198
  %v771 = vunpack.c.l.b16 %v199
  %v772 = vunpack.c.l.b16 %v200
  %v773 = vunpack.c.l.b16 %v201
  %v774 = vunpack.c.l.b16 %v202
  %v775 = vunpack.c.l.b16 %v203
  %v776 = vunpack.c.l.b16 %v204
  %v777 = vunpack.c.l.b16 %v205
  %v778 = vunpack.c.l.b16 %v206
  %v779 = vunpack.c.l.b16 %v207
  %v780 = vunpack.c.l.b16 %v208
  %v781 = vunpack.c.l.b16 %v209
  %v782 = vunpack.c.l.b16 %v210
  %v783 = vunpack.c.l.b16 %v211
  %v784 = vunpack.c.l.b16 %v212
  %v785 = vunpack.c.l.b16 %v213
  %v786 = vunpack.c.l.b16 %v214
  %v787 = vunpack.c.l.b16 %v215
  %v788 = vunpack.c.l.b16 %v216
  %v789 = vunpack.c.l.b16 %v217
  %v790 = vunpack.c.l.b16 %v218
  %v791 = vunpack.c.l.b16 %v219
  %v792 = vunpack.c.l.b16 %v220
  %v793 = vunpack.c.l.b16 %v221
  %v794 = vunpack.c.l.b16 %v222
  %v795 = vunpack.c.l.b16 %v223
  %v796 = vunpack.c.l.b16 %v224
  %v797 = vunpack.c.l.b16 %v225
  %v798 = vunpack.c.l.b16 %v226
  %v799 = vunpack.c.l.b16 %v227
  %v800 = vunpack.c.l.b16 %v228
  %v801 = vunpack.c.l.b16 %v229
  %v802 = vunpack.c.l.b16 %v230
  %v803 = vunpack.c.l.b16 %v231
  %v804 = vunpack.c.l.b16 %v232
  %v805 = vunpack.c.l.b16 %v233
  %v806 = vunpack.c.l.b16 %v234
  %v807 = vunpack.c.l.b16 %v235
  %v808 = vunpack.c.l.b16 %v236
  %v809 = vunpack.c.l.b16 %v237
  %v810 = vunpack.c.l.b16 %v238
  %v811 = vunpack.c.l.b16 %v239
  %v812 = vunpack.c.l.b16 %v240
  %v813 = vunpack.c.l.b16 %v241
  %v814 = vunpack.c.l.b16 %v242
  %v815 = vunpack.c.l.b16 %v243
  %v816 = vunpack.c.l.b16 %v244
  %v817 = vunpack.c.l.b16 %v245
  %v818 = vunpack.c.l.b16 %v246
  %v819 = vunpack.c.l.b16 %v247
  %v820 = vunpack.c.l.b16 %v248
  %v821 = vunpack.c.l.b16 %v249
  %v822 = vunpack.c.l.b16 %v250
  %v823 = vunpack.c.l.b16 %v251
  %v824 = vunpack.c.l.b16 %v252
  %v825 = vunpack.c.l.b16 %v253
  %v826 = vunpack.c.l.b16 %v254
  %v827 = vunpack.c.l.b16 %v255
  %v828 = vunpack.c.l.b16 %v256
  %v829 = vunpack.c.l.b16 %v257
  %v830 = vunpack.c.l.b16 %v258
  %v831 = vunpack.c.l.b16 %v259
  %v832 = vunpack.c.l.b16 %v260
  %v833 = vunpack.c.l.b16 %v261
  %v834 = vunpack.c.l.b16 %v262
  %v835 = vunpack.c.l.b16 %v263
  %v836 = vunpack.c.l.b16 %v264
  %v837 = vunpack.c.l.b16 %v265
  %v838 = vunpack.c.l.b16 %v266
  %v839 = vunpack.c.l.b16 %v267
  %v840 = vunpack.c.l.b16 %v268
  %v841 = vunpack.c.l.b16 %v269
  %v842 = vunpack.c.l.b16 %v270
  %v843 = vunpack.c.l.b16 %v271
  %v844 = vunpack.c.l.b16 %v272
  %v845 = vunpack.c.l.b16 %v273
  %v846 = vunpack.c.l.b16 %v274
  %v847 = vunpack.c.l.b16 %v275
  %v848 = vunpack.c.l.b16 %v276
  %v849 = vunpack.c.l.b16 %v277
  %v850 = vpack.c.b16 %v595, %v594
  %v851 = vpack.c.b16 %v597, %v596
  %v852 = vpack.c.b16 %v599, %v598
  %v853 = vpack.c.b16 %v601, %v600
  %v854 = vpack.c.b16 %v603, %v602
  %v855 = vpack.c.b16 %v605, %v604
  %v856 = vpack.c.b16 %v607, %v606
  %v857 = vpack.c.b16 %v609, %v608
  %v858 = vpack.c.b16 %v611, %v610
  %v859 = vpack.c.b16 %v613, %v612
  %v860 = vpack.c.b16 %v615, %v614
  %v861 = vpack.c.b16 %v617, %v616
  %v862 = vpack.c.b16 %v619, %v618
  %v863 = vpack.c.b16 %v621, %v620
  %v864 = vpack.c.b16 %v623, %v622
  %v865 = vpack.c.b16 %v625, %v624
  %v866 = vpack.c.b16 %v627, %v626
  %v867 = vpack.c.b16 %v629, %v628
  %v868 = vpack.c.b16 %v631, %v630
  %v869 = vpack.c.b16 %v633, %v632
  %v870 = vpack.c.b16 %v635, %v634
  %v871 = vpack.c.b16 %v637, %v636
  %v872 = vpack.c.b16 %v639, %v638
  %v873 = vpack.c.b16 %v641, %v640
  %v874 = vpack.c.b16 %v643, %v642
  %v875 = vpack.c.b16 %v645, %v644
  %v876 = vpack.c.b16 %v647, %v646
  %v877 = vpack.c.b16 %v649, %v648
  %v878 = vpack.c.b16 %v651, %v650
  %v879 = vpack.c.b16 %v653, %v652
  %v880 = vpack.c.b16 %v655, %v654
  %v881 = vpack.c.b16 %v657, %v656
  %v882 = vpack.c.b16 %v659, %v658
  %v883 = vpack.c.b16 %v661, %v660
  %v884 = vpack.c.b16 %v663, %v662
  %v885 = vpack.c.b16 %v665, %v664
  %v886 = vpack.c.b16 %v667, %v666
  %v887 = vpack.c.b16 %v669, %v668
  %v888 = vpack.c.b16 %v671, %v670
  %v889 = vpack.c.b16 %v673, %v672
  %v890 = vpack.c.b16 %v675, %v674
  %v891 = vpack.c.b16 %v677, %v676
  %v892 = vpack.c.b16 %v679, %v678
  %v893 = vpack.c.b16 %v681, %v680
  %v894 = vpack.c.b16 %v683, %v682
  %v895 = vpack.c.b16 %v685, %v684
  %v896 = vpack.c.b16 %v687, %v686
  %v897 = vpack.c.b16 %v689, %v688
  %v898 = vpack.c.b16 %v691, %v690
  %v899 = vpack.c.b16 %v693, %v692
  %v900 = vpack.c.b16 %v695, %v694
  %v901 = vpack.c.b16 %v697, %v696
  %v902 = vpack.c.b16 %v699, %v698
  %v903 = vpack.c.b16 %v701, %v700
  %v904 = vpack.c.b16 %v703, %v702
  %v905 = vpack.c.b16 %v705, %v704
  %v906 = vpack.c.b16 %v707, %v706
  %v907 = vpack.c.b16 %v709, %v708
  %v908 = vpack.c.b16 %v711, %v710
  %v909 = vpack.c.b16 %v713, %v712
  %v910 = vpack.c.b16 %v715, %v714
  %v911 = vpack.c.b16 %v717, %v716
  %v912 = vpack.c.b16 %v719, %v718
  %v913 = vpack.c.b16 %v721, %v720
  %v914 = vpack.c.b16 %v723, %v722
  %v915 = vpack.c.b16 %v725, %v724
  %v916 = vpack.c.b16 %v727, %v726
  %v917 = vpack.c.b16 %v729, %v728
  %v918 = vpack.c.b16 %v731, %v730
  %v919 = vpack.c.b16 %v733, %v732
  %v920 = vpack.c.b16 %v735, %v734
  %v921 = vpack.c.b16 %v737, %v736
  %v922 = vpack.c.b16 %v739, %v738
  %v923 = vpack.c.b16 %v741, %v740
  %v924 = vpack.c.b16 %v743, %v742
  %v925 = vpack.c.b16 %v745, %v744
  %v926 = vpack.c.b16 %v747, %v746
  %v927 = vpack.c.b16 %v749, %v748
  %v928 = vpack.c.b16 %v751, %v750
  %v929 = vpack.c.b16 %v753, %v752
  %v930 = vpack.c.b16 %v755, %v754
  %v931 = vpack.c.b16 %v757, %v756
  %v932 = vpack.c.b16 %v759, %v758
  %v933 = vpack.c.b16 %v761, %v760
  %v934 = vpack.c.b16 %v763, %v762
  %v935 = vpack.c.b16 %v765, %v764
  %v936 = vpack.c.b16 %v767, %v766
  %v937 = vpack.c.b16 %v769, %v768
  %v938 = vpack.c.b16 %v771, %v770
  %v939 = vpack.c.b16 %v773, %v772
  %v940 = vpack.c.b16 %v775, %v774
  %v941 = vpack.c.b16 %v777, %v776
  %v942 = vpack.c.b16 %v779, %v778
  %v943 = vpack.c.b16 %v781, %v780
  %v944 = vpack.c.b16 %v783, %v782
  %v945 = vpack.c.b16 %v785, %v784
  %v946 = vpack.c.b16 %v787, %v786
  %v947 = vpack.c.b16 %v789, %v788
  %v948 = vpack.c.b16 %v791, %v790
  %v949 = vpack.c.b16 %v793, %v792
  %v950 = vpack.c.b16 %v795, %v794
  %v951 = vpack.c.b16 %v797, %v796
  %v952 = vpack.c.b16 %v799, %v798
  %v953 = vpack.c.b16 %v801, %v800
  %v954 = vpack.c.b16 %v803, %v802
  %v955 = vpack.c.b16 %v805, %v804
  %v956 = vpack.c.b16 %v807, %v806
  %v957 = vpack.c.b16 %v809, %v808
  %v958 = vpack.c.b16 %v811, %v810
  %v959 = vpack.c.b16 %v813, %v812
  %v960 = vpack.c.b16 %v815, %v814
  %v961 = vpack.c.b16 %v817, %v816
  %v962 = vpack.c.b16 %v819, %v818
  %v963 = vpack.c.b16 %v821, %v820
  %v964 = vpack.c.b16 %v823, %v822
  %v965 = vpack.c.b16 %v825, %v824
  %v966 = vpack.c.b16 %v827, %v826
  %v967 = vpack.c.b16 %v829, %v828
  %v968 = vpack.c.b16 %v831, %v830
  %v969 = vpack.c.b16 %v833, %v832
  %v970 = vpack.c.b16 %v835, %v834
  %v971 = vpack.c.b16 %v837, %v836
  %v972 = vpack.c.b16 %v839, %v838
  %v973 = vpack.c.b16 %v841, %v840
  %v974 = vpack.c.b16 %v843, %v842
  %v975 = vpack.c.b16 %v845, %v844
  %v976 = vpack.c.b16 %v847, %v846
  %v977 = vpack.c.b16 %v849, %v848
  %1106 = vmatpush.bf16.msra.mxu0 %v857
  %1107 = vmatpush.bf16.msra.mxu0 %v856
  %1108 = vmatpush.bf16.msra.mxu0 %v855
  %1109 = vmatpush.bf16.msra.mxu0 %v854
  %1110 = vmatpush.bf16.msra.mxu0 %v853
  %1111 = vmatpush.bf16.msra.mxu0 %v852
  %1112 = vmatpush.bf16.msra.mxu0 %v851
  %1113 = vmatpush.bf16.msra.mxu0 %v850
  %1114 = vmatmul.bf16.gmra.mxu0 %v306
  %v1115 = vpop.f32.mrf.mxu0
  %v1116 = vadd.f32 %v280, %v1115
  %v1117 = vpop.f32.mrf.mxu0
  %1118 = vdwg.mxu0
  %1119 = vmatpush.bf16.msra.mxu0 %v865
  %1120 = vmatpush.bf16.msra.mxu0 %v864
  %1121 = vmatpush.bf16.msra.mxu0 %v863
  %1122 = vmatpush.bf16.msra.mxu0 %v862
  %1123 = vmatpush.bf16.msra.mxu0 %v861
  %1124 = vmatpush.bf16.msra.mxu0 %v860
  %1125 = vmatpush.bf16.msra.mxu0 %v859
  %1126 = vmatpush.bf16.msra.mxu0 %v858
  %1127 = vmatmul.bf16.gmra.mxu0 %v307
  %v1128 = vpop.f32.mrf.mxu0
  %v1129 = vadd.f32 %v1116, %v1128
  %v1130 = vpop.f32.mrf.mxu0
  %1131 = vdwg.mxu0
  %1132 = vmatpush.bf16.msra.mxu0 %v873
  %1133 = vmatpush.bf16.msra.mxu0 %v872
  %1134 = vmatpush.bf16.msra.mxu0 %v871
  %1135 = vmatpush.bf16.msra.mxu0 %v870
  %1136 = vmatpush.bf16.msra.mxu0 %v869
  %1137 = vmatpush.bf16.msra.mxu0 %v868
  %1138 = vmatpush.bf16.msra.mxu0 %v867
  %1139 = vmatpush.bf16.msra.mxu0 %v866
  %1140 = vmatmul.bf16.gmra.mxu0 %v308
  %v1141 = vpop.f32.mrf.mxu0
  %v1142 = vadd.f32 %v1129, %v1141
  %v1143 = vpop.f32.mrf.mxu0
  %1144 = vdwg.mxu0
  %1145 = vmatpush.bf16.msra.mxu0 %v881
  %1146 = vmatpush.bf16.msra.mxu0 %v880
  %1147 = vmatpush.bf16.msra.mxu0 %v879
  %1148 = vmatpush.bf16.msra.mxu0 %v878
  %1149 = vmatpush.bf16.msra.mxu0 %v877
  %1150 = vmatpush.bf16.msra.mxu0 %v876
  %1151 = vmatpush.bf16.msra.mxu0 %v875
  %1152 = vmatpush.bf16.msra.mxu0 %v874
  %1153 = vmatmul.bf16.gmra.mxu0 %v309
  %v1154 = vpop.f32.mrf.mxu0
  %v1155 = vadd.f32 %v1142, %v1154
  %v1156 = vpop.f32.mrf.mxu0
  %1157 = vdwg.mxu0
  %1158 = vmatpush.bf16.msra.mxu0 %v889
  %1159 = vmatpush.bf16.msra.mxu0 %v888
  %1160 = vmatpush.bf16.msra.mxu0 %v887
  %1161 = vmatpush.bf16.msra.mxu0 %v886
  %1162 = vmatpush.bf16.msra.mxu0 %v885
  %1163 = vmatpush.bf16.msra.mxu0 %v884
  %1164 = vmatpush.bf16.msra.mxu0 %v883
  %1165 = vmatpush.bf16.msra.mxu0 %v882
  %1166 = vmatmul.bf16.gmra.mxu0 %v310
  %v1167 = vpop.f32.mrf.mxu0
  %v1168 = vadd.f32 %v1155, %v1167
  %v1169 = vpop.f32.mrf.mxu0
  %1170 = vdwg.mxu0
  %1171 = vmatpush.bf16.msra.mxu0 %v897
  %1172 = vmatpush.bf16.msra.mxu0 %v896
  %1173 = vmatpush.bf16.msra.mxu0 %v895
  %1174 = vmatpush.bf16.msra.mxu0 %v894
  %1175 = vmatpush.bf16.msra.mxu0 %v893
  %1176 = vmatpush.bf16.msra.mxu0 %v892
  %1177 = vmatpush.bf16.msra.mxu0 %v891
  %1178 = vmatpush.bf16.msra.mxu0 %v890
  %1179 = vmatmul.bf16.gmra.mxu0 %v311
  %v1180 = vpop.f32.mrf.mxu0
  %v1181 = vadd.f32 %v1168, %v1180
  %v1182 = vpop.f32.mrf.mxu0
  %1183 = vdwg.mxu0
  %1184 = vmatpush.bf16.msra.mxu0 %v905
  %1185 = vmatpush.bf16.msra.mxu0 %v904
  %1186 = vmatpush.bf16.msra.mxu0 %v903
  %1187 = vmatpush.bf16.msra.mxu0 %v902
  %1188 = vmatpush.bf16.msra.mxu0 %v901
  %1189 = vmatpush.bf16.msra.mxu0 %v900
  %1190 = vmatpush.bf16.msra.mxu0 %v899
  %1191 = vmatpush.bf16.msra.mxu0 %v898
  %1192 = vmatmul.bf16.gmra.mxu0 %v312
  %v1193 = vpop.f32.mrf.mxu0
  %v1194 = vadd.f32 %v1181, %v1193
  %v1195 = vpop.f32.mrf.mxu0
  %1196 = vdwg.mxu0
  %1197 = vmatpush.bf16.msra.mxu0 %v913
  %1198 = vmatpush.bf16.msra.mxu0 %v912
  %1199 = vmatpush.bf16.msra.mxu0 %v911
  %1200 = vmatpush.bf16.msra.mxu0 %v910
  %1201 = vmatpush.bf16.msra.mxu0 %v909
  %1202 = vmatpush.bf16.msra.mxu0 %v908
  %1203 = vmatpush.bf16.msra.mxu0 %v907
  %1204 = vmatpush.bf16.msra.mxu0 %v906
  %1205 = vmatmul.bf16.gmra.mxu0 %v313
  %v1206 = vpop.f32.mrf.mxu0
  %v1207 = vadd.f32 %v1194, %v1206
  %v1208 = vpop.f32.mrf.mxu0
  %1209 = vdwg.mxu0
  %1210 = vmatpush.bf16.msra.mxu0 %v921
  %1211 = vmatpush.bf16.msra.mxu0 %v920
  %1212 = vmatpush.bf16.msra.mxu0 %v919
  %1213 = vmatpush.bf16.msra.mxu0 %v918
  %1214 = vmatpush.bf16.msra.mxu0 %v917
  %1215 = vmatpush.bf16.msra.mxu0 %v916
  %1216 = vmatpush.bf16.msra.mxu0 %v915
  %1217 = vmatpush.bf16.msra.mxu0 %v914
  %1218 = vmatmul.bf16.gmra.mxu0 %v314
  %v1219 = vpop.f32.mrf.mxu0
  %v1220 = vadd.f32 %v1207, %v1219
  %v1221 = vpop.f32.mrf.mxu0
  %1222 = vdwg.mxu0
  %1223 = vmatpush.bf16.msra.mxu0 %v929
  %1224 = vmatpush.bf16.msra.mxu0 %v928
  %1225 = vmatpush.bf16.msra.mxu0 %v927
  %1226 = vmatpush.bf16.msra.mxu0 %v926
  %1227 = vmatpush.bf16.msra.mxu0 %v925
  %1228 = vmatpush.bf16.msra.mxu0 %v924
  %1229 = vmatpush.bf16.msra.mxu0 %v923
  %1230 = vmatpush.bf16.msra.mxu0 %v922
  %1231 = vmatmul.bf16.gmra.mxu0 %v315
  %v1232 = vpop.f32.mrf.mxu0
  %v1233 = vadd.f32 %v1220, %v1232
  %v1234 = vpop.f32.mrf.mxu0
  %1235 = vdwg.mxu0
  %1236 = vmatpush.bf16.msra.mxu0 %v937
  %1237 = vmatpush.bf16.msra.mxu0 %v936
  %1238 = vmatpush.bf16.msra.mxu0 %v935
  %1239 = vmatpush.bf16.msra.mxu0 %v934
  %1240 = vmatpush.bf16.msra.mxu0 %v933
  %1241 = vmatpush.bf16.msra.mxu0 %v932
  %1242 = vmatpush.bf16.msra.mxu0 %v931
  %1243 = vmatpush.bf16.msra.mxu0 %v930
  %1244 = vmatmul.bf16.gmra.mxu0 %v316
  %v1245 = vpop.f32.mrf.mxu0
  %v1246 = vadd.f32 %v1233, %v1245
  %v1247 = vpop.f32.mrf.mxu0
  %1248 = vdwg.mxu0
  %1249 = vmatpush.bf16.msra.mxu0 %v945
  %1250 = vmatpush.bf16.msra.mxu0 %v944
  %1251 = vmatpush.bf16.msra.mxu0 %v943
  %1252 = vmatpush.bf16.msra.mxu0 %v942
  %1253 = vmatpush.bf16.msra.mxu0 %v941
  %1254 = vmatpush.bf16.msra.mxu0 %v940
  %1255 = vmatpush.bf16.msra.mxu0 %v939
  %1256 = vmatpush.bf16.msra.mxu0 %v938
  %1257 = vmatmul.bf16.gmra.mxu0 %v317
  %v1258 = vpop.f32.mrf.mxu0
  %v1259 = vadd.f32 %v1246, %v1258
  %v1260 = vpop.f32.mrf.mxu0
  %1261 = vdwg.mxu0
  %1262 = vmatpush.bf16.msra.mxu0 %v953
  %1263 = vmatpush.bf16.msra.mxu0 %v952
  %1264 = vmatpush.bf16.msra.mxu0 %v951
  %1265 = vmatpush.bf16.msra.mxu0 %v950
  %1266 = vmatpush.bf16.msra.mxu0 %v949
  %1267 = vmatpush.bf16.msra.mxu0 %v948
  %1268 = vmatpush.bf16.msra.mxu0 %v947
  %1269 = vmatpush.bf16.msra.mxu0 %v946
  %1270 = vmatmul.bf16.gmra.mxu0 %v318
  %v1271 = vpop.f32.mrf.mxu0
  %v1272 = vadd.f32 %v1259, %v1271
  %v1273 = vpop.f32.mrf.mxu0
  %1274 = vdwg.mxu0
  %1275 = vmatpush.bf16.msra.mxu0 %v961
  %1276 = vmatpush.bf16.msra.mxu0 %v960
  %1277 = vmatpush.bf16.msra.mxu0 %v959
  %1278 = vmatpush.bf16.msra.mxu0 %v958
  %1279 = vmatpush.bf16.msra.mxu0 %v957
  %1280 = vmatpush.bf16.msra.mxu0 %v956
  %1281 = vmatpush.bf16.msra.mxu0 %v955
  %1282 = vmatpush.bf16.msra.mxu0 %v954
  %1283 = vmatmul.bf16.gmra.mxu0 %v319
  %v1284 = vpop.f32.mrf.mxu0
  %v1285 = vadd.f32 %v1272, %v1284
  %v1286 = vpop.f32.mrf.mxu0
  %1287 = vdwg.mxu0
  %1288 = vmatpush.bf16.msra.mxu0 %v969
  %1289 = vmatpush.bf16.msra.mxu0 %v968
  %1290 = vmatpush.bf16.msra.mxu0 %v967
  %1291 = vmatpush.bf16.msra.mxu0 %v966
  %1292 = vmatpush.bf16.msra.mxu0 %v965
  %1293 = vmatpush.bf16.msra.mxu0 %v964
  %1294 = vmatpush.bf16.msra.mxu0 %v963
  %1295 = vmatpush.bf16.msra.mxu0 %v962
  %1296 = vmatmul.bf16.gmra.mxu0 %v320
  %v1297 = vpop.f32.mrf.mxu0
  %v1298 = vadd.f32 %v1285, %v1297
  %v1299 = vpop.f32.mrf.mxu0
  %1300 = vdwg.mxu0
  %1301 = vmatpush.bf16.msra.mxu0 %v977
  %1302 = vmatpush.bf16.msra.mxu0 %v976
  %1303 = vmatpush.bf16.msra.mxu0 %v975
  %1304 = vmatpush.bf16.msra.mxu0 %v974
  %1305 = vmatpush.bf16.msra.mxu0 %v973
  %1306 = vmatpush.bf16.msra.mxu0 %v972
  %1307 = vmatpush.bf16.msra.mxu0 %v971
  %1308 = vmatpush.bf16.msra.mxu0 %v970
  %1309 = vmatmul.bf16.gmra.mxu0 %v321
  %v1310 = vpop.f32.mrf.mxu0
  %v1311 = vadd.f32 %v1298, %v1310
  %v1312 = vpop.f32.mrf.mxu0
  %1313 = vdwg.mxu0
  %1314 = vst [vmem:[%s3] sm:$0xff] %v1311
  // Predicated region
  $region14: #{_lambda_.15} parent=0 // pred_check
    _
  $region15: #{_lambda_.15} parent=0 // pred_check_branch
    %1316 = sbr.rel (0) target = $region17
  $region16: #{_lambda_.15} parent=0 // pred_region
    _
  $region17: #{_lambda_.15} parent=0 // pred_fallthru
    _
  // Predicated region
  $region18: #{_lambda_.15} parent=0 // pred_check
    _
  $region19: #{_lambda_.15} parent=0 // pred_check_branch
    %1318 = sbr.rel (0) target = $region21
  $region20: #{_lambda_.15} parent=0 // pred_region
    _
  $region21: #{_lambda_.15} parent=0 // pred_fallthru
    _

</llo_original>
